<compile_context>
chip_gen: v5e
topology: v5e:2x2
jax: 0.10.0
libtpu: 0.0.40
codegen_flags: <defaults>
</compile_context>

<pallas_src>
import jax
import jax.numpy as jnp
from jax.experimental import pallas as pl
from jax.experimental.pallas import tpu as pltpu


_NUM_ACC = 6           # [mse_fake_vs_1, mse_fake_vs_0, mse_real_vs_1, l1_f1, l1_f2, l1_img]
_SPATIAL_ALIGN = 8 * 128   # pad flattened H*W to a multiple of one (8,128) tile


def _tpu_vmem_capacity():
    try:
        return int(pltpu.get_tpu_info().vmem_capacity_bytes)
    except Exception:
        return 64 << 20    # conservative fallback (v7x per-core VMEM)


_VMEM_CAP = _tpu_vmem_capacity()
# Tile budget: ~24 MiB on 64 MiB-VMEM chips (v7x), ~48 MiB on 128 MiB chips.
_TILE_VMEM_BUDGET = (24 << 20) if _VMEM_CAP <= (64 << 20) else (48 << 20)
_VMEM_LIMIT_BYTES = max(32 << 20, min(_VMEM_CAP - (16 << 20), 100 << 20))


# ----------------------------------------------------------------------------
# Layout / tiling helpers
# ----------------------------------------------------------------------------
def _to_lane_view(x_nchw):
    """(N,C,H,W) -> (N,C,rows,128) with the spatial axis padded to 8*128."""
    n, c, h, w = x_nchw.shape
    s = h * w
    s_pad = ((s + _SPATIAL_ALIGN - 1) // _SPATIAL_ALIGN) * _SPATIAL_ALIGN
    x = x_nchw.reshape(n, c, s)
    if s_pad != s:
        x = jnp.pad(x, ((0, 0), (0, 0), (0, s_pad - s)))
    return x.reshape(n, c, s_pad // 128, 128), s, s_pad


def _pick_rows(rows_avail, bytes_per_row, budget, cap=None):
    """Largest multiple-of-8 row count that divides rows_avail and fits budget."""
    r = (budget // max(bytes_per_row, 1)) // 8 * 8
    if cap is not None:
        r = min(r, cap)
    r = max(8, min(r, rows_avail))
    while rows_avail % r != 0:
        r -= 8
    return max(r, 8)


# ----------------------------------------------------------------------------
# Kernel factories
# ----------------------------------------------------------------------------
def _make_fused_kernel(n, c, dch, rows_blk, rows_split, s_valid, s_pad,
                       use_disc, want_img):
    """Fused generator (+to_image) (+discriminator) + loss partial sums."""
    need_mask = (s_valid != s_pad)
    num_acc = _NUM_ACC if use_disc else 1

    def kernel(*refs):
        if use_disc:
            gw, gb, d1w, d1b, d2w, d2b, d3w, d3b = refs[:8]
            x_ref, t_ref = refs[8], refs[9]
            rest = refs[10:]
        else:
            gw, gb = refs[:2]
            x_ref, t_ref = refs[2], refs[3]
            rest = refs[4:]
        if want_img:
            img_ref, acc_ref = rest
        else:
            (acc_ref,) = rest

        si = pl.program_id(1)

        @pl.when(si == 0)
        def _init():
            acc_ref[...] = jnp.zeros_like(acc_ref)

        xv = x_ref[...].astype(jnp.float32)          # (N, C, R, 128)
        tv = t_ref[...].astype(jnp.float32)
        x = [xv[:, ci] for ci in range(c)]           # list of (N, R, 128)
        t = [tv[:, ci] for ci in range(c)]

        def mix(chans, w_ref, b_ref, cout, act=None):
            # Per-pixel channel mixing (1x1 conv) as a VPU broadcast-FMA chain;
            # outputs stay as a Python list of (N, R, 128) arrays (no concat).
            outs = []
            for co in range(cout):
                a = chans[0] * w_ref[0, co] + b_ref[co]
                for ci in range(1, len(chans)):
                    a = a + chans[ci] * w_ref[ci, co]
                if act == "lrelu":
                    a = jnp.where(a >= 0.0, a, 0.2 * a)
                elif act == "tanh":
                    a = jnp.tanh(a)
                outs.append(a)
            return outs

        # Generator stand-in: tanh head.
        nv = mix(x, gw, gb, c, "tanh")

        if want_img:
            # Fused to_image(): (x + 1) / 2 clamped to [0, 1].  Stack is along a
            # non-minor axis (channels), so no sublane relayout.
            img = jnp.stack([jnp.clip((ch + 1.0) * 0.5, 0.0, 1.0) for ch in nv],
                            axis=1)
            img_ref[...] = img.astype(img_ref.dtype)

        if need_mask:
            base = (pl.program_id(0) * rows_split + si * rows_blk) * 128
            pos = (base
                   + jax.lax.broadcasted_iota(jnp.int32, (rows_blk, 128), 0) * 128
                   + jax.lax.broadcasted_iota(jnp.int32, (rows_blk, 128), 1))
            mask = (pos < s_valid).astype(jnp.float32)      # (R, 128)
        else:
            mask = None

        def accum(k, term):
            # term: (N, R, 128) f32 elementwise partial.  Pure VPU adds into the
            # resident lane-wise accumulator block; no per-step XLU reduction.
            part = term.sum(axis=0) if n > 1 else term[0]   # (R, 128)
            if mask is not None:
                part = part * mask
            acc_ref[:, k:k + 1, :, :] += part[None, None]

        if use_disc:
            # Discriminator stand-in: two lrelu 1x1 layers + linear prediction,
            # applied to fake (nv) and real (target); features never leave VMEM.
            f1f = mix(nv, d1w, d1b, dch, "lrelu")
            f2f = mix(f1f, d2w, d2b, dch, "lrelu")
            pf = mix(f2f, d3w, d3b, 1)[0]
            f1r = mix(t, d1w, d1b, dch, "lrelu")
            f2r = mix(f1r, d2w, d2b, dch, "lrelu")
            pr = mix(f2r, d3w, d3b, 1)[0]

            accum(0, (pf - 1.0) * (pf - 1.0))                       # LSGAN fake vs 1
            accum(1, pf * pf)                                       # LSGAN fake vs 0
            accum(2, (pr - 1.0) * (pr - 1.0))                       # LSGAN real vs 1
            accum(3, sum(jnp.abs(a - b) for a, b in zip(f1f, f1r))) # GAN_Feat layer 1
            accum(4, sum(jnp.abs(a - b) for a, b in zip(f2f, f2r))) # GAN_Feat layer 2
            accum(5, sum(jnp.abs(a - b) for a, b in zip(nv, t)))    # synthesis L1
        else:
            accum(0, sum(jnp.abs(a - b) for a, b in zip(nv, t)))    # synthesis L1

    return kernel


def _make_infer_kernel(c):
    """Generator stand-in only: tanh head (novel view) + sigmoid head (alpha)."""
    def kernel(gw, gb, aw, ab, x_ref, nv_ref, alpha_ref):
        xv = x_ref[...].astype(jnp.float32)
        x = [xv[:, ci] for ci in range(c)]

        nv = []
        for co in range(c):
            a = x[0] * gw[0, co] + gb[co]
            for ci in range(1, c):
                a = a + x[ci] * gw[ci, co]
            nv.append(jnp.tanh(a))
        nv_ref[...] = jnp.stack(nv, axis=1).astype(nv_ref.dtype)

        a = x[0] * aw[0, 0] + ab[0]
        for ci in range(1, c):
            a = a + x[ci] * aw[ci, 0]
        alpha_ref[...] = jax.nn.sigmoid(a)[:, None].astype(alpha_ref.dtype)

    return kernel


# ----------------------------------------------------------------------------
# Wrappers
# ----------------------------------------------------------------------------
def fused_generator_step(x_nchw, target_nchw, p, *, use_disc, want_img,
                         max_rows_blk=None):
    """One fused pass: generator (+img) (+disc) and mean losses (no HBM round-trip)."""
    n, c, h, w = x_nchw.shape
    dch = p["d1_w"].shape[1]
    num_acc = _NUM_ACC if use_disc else 1
    dtype = x_nchw.dtype
    itemsize = jnp.dtype(dtype).itemsize

    x4, s, s_pad = _to_lane_view(x_nchw)
    t4, _, _ = _to_lane_view(target_nchw.astype(dtype))
    rows_total = s_pad // 128

    n_split = 2 if rows_total % 16 == 0 else 1          # megacore partial sums
    rows_split = rows_total // n_split

    # VMEM budget per row of 128 lanes: double-buffered I/O + resident acc +
    # live f32 intermediates (nv, f1/f2 for fake+real, preds, casts).
    per_row = 128 * (
        2 * n * c * itemsize * 2                               # x + target (x2 buf)
        + (n * c * itemsize * 2 if want_img else 0)            # img out (x2 buf)
        + 2 * num_acc * 4                                      # accumulator block
        + n * (3 * c + (4 * dch + 2 if use_disc else 0) + 2) * 4)
    rows_blk = _pick_rows(rows_split, per_row, _TILE_VMEM_BUDGET, max_rows_blk)
    blocks_per_split = rows_split // rows_blk
    grid = (n_split, blocks_per_split)

    def data_map(g, si):
        return (0, 0, g * blocks_per_split + si, 0)

    smem = pl.BlockSpec(memory_space=pltpu.MemorySpace.SMEM)
    data_spec = pl.BlockSpec((n, c, rows_blk, 128), data_map)
    acc_spec = pl.BlockSpec((1, num_acc, rows_blk, 128), lambda g, si: (g, 0, 0, 0))

    if use_disc:
        weights = (p["g_w"], p["g_b"], p["d1_w"], p["d1_b"],
                   p["d2_w"], p["d2_b"], p["d3_w"], p["d3_b"])
    else:
        weights = (p["g_w"], p["g_b"])
    in_specs = [smem] * len(weights) + [data_spec, data_spec]

    acc_shape = jax.ShapeDtypeStruct((n_split, num_acc, rows_blk, 128), jnp.float32)
    if want_img:
        out_shape = (jax.ShapeDtypeStruct((n, c, rows_total, 128), dtype), acc_shape)
        out_specs = (data_spec, acc_spec)
    else:
        out_shape = acc_shape
        out_specs = acc_spec

    kernel = _make_fused_kernel(n, c, dch, rows_blk, rows_split, s, s_pad,
                                use_disc, want_img)
    out = pl.pallas_call(
        kernel, out_shape=out_shape, grid=grid,
        in_specs=in_specs, out_specs=out_specs,
        compiler_params=pltpu.CompilerParams(
            dimension_semantics=("parallel", "arbitrary"),
            vmem_limit_bytes=_VMEM_LIMIT_BYTES),
    )(*weights, x4, t4)

    if want_img:
        img4, acc = out
    else:
        acc, img4 = out, None

    sums = jnp.sum(acc, axis=(0, 2, 3))                 # (num_acc,) final reduce

    res = {}
    img_count = float(n * c * s)
    if use_disc:
        pred_count = float(n * 1 * s)
        feat_count = float(n * dch * s)
        res.update({
            "mse_fake_vs_one": sums[0] / pred_count,
            "mse_fake_vs_zero": sums[1] / pred_count,
            "mse_real_vs_one": sums[2] / pred_count,
            "l1_feat1": sums[3] / feat_count,
            "l1_feat2": sums[4] / feat_count,
            "l1": sums[5] / img_count,
        })
    else:
        res["l1"] = sums[0] / img_count

    if want_img:
        res["img"] = img4.reshape(n, c, s_pad)[:, :, :s].reshape(n, c, h, w)
    return res


def generator_infer(x_nchw, p, *, max_rows_blk=None):
    """Inference: novel view (tanh head) + alpha (sigmoid head)."""
    n, c, h, w = x_nchw.shape
    dtype = x_nchw.dtype
    itemsize = jnp.dtype(dtype).itemsize

    x4, s, s_pad = _to_lane_view(x_nchw)
    rows_total = s_pad // 128

    per_row = 128 * (n * c * itemsize * 2          # x (x2 buf)
                     + (n * c + n) * itemsize * 2  # nv + alpha out (x2 buf)
                     + n * (2 * c + 3) * 4)        # live f32 temps
    rows_blk = _pick_rows(rows_total, per_row, _TILE_VMEM_BUDGET, max_rows_blk)
    grid = (rows_total // rows_blk,)

    smem = pl.BlockSpec(memory_space=pltpu.MemorySpace.SMEM)
    data_spec = pl.BlockSpec((n, c, rows_blk, 128), lambda si: (0, 0, si, 0))
    alpha_spec = pl.BlockSpec((n, 1, rows_blk, 128), lambda si: (0, 0, si, 0))

    nv4, a4 = pl.pallas_call(
        _make_infer_kernel(c),
        out_shape=(jax.ShapeDtypeStruct((n, c, rows_total, 128), dtype),
                   jax.ShapeDtypeStruct((n, 1, rows_total, 128), dtype)),
        grid=grid,
        in_specs=[smem, smem, smem, smem, data_spec],
        out_specs=(data_spec, alpha_spec),
        compiler_params=pltpu.CompilerParams(
            dimension_semantics=("parallel",),
            vmem_limit_bytes=_VMEM_LIMIT_BYTES),
    )(p["g_w"], p["g_b"], p["a_w"], p["a_b"], x4)

    nv = nv4.reshape(n, c, s_pad)[:, :, :s].reshape(n, c, h, w)
    alpha = a4.reshape(n, 1, s_pad)[:, :, :s].reshape(n, 1, h, w)
    return nv, alpha


# ----------------------------------------------------------------------------
# Trainer (JAX/Pallas port)
# ----------------------------------------------------------------------------
class TrainerPallas:
    def __init__(self, opts, configs, params):
        self.opts = opts
        self.configs = configs
        self.p = params
        self.num_D = 1                 # single stand-in discriminator
        self._max_rows_blk = configs.get("max_rows_blk", None)
        self.fake = None
        self.real = None

    def forward(self, input_data, mode="generator"):
        x = input_data["input_img"]
        if mode == "generator":
            target = input_data["target_img"]
            use_disc = self.configs["use_disc"]
            res = fused_generator_step(x, target, self.p, use_disc=use_disc,
                                       want_img=True,
                                       max_rows_blk=self._max_rows_blk)
            losses = {}
            if use_disc:
                # GANLoss(lsgan): MSE of prediction vs the real label, averaged.
                losses["GAN"] = res["mse_fake_vs_one"] / self.num_D
                if not self.opts["no_ganFeat_loss"]:
                    losses["GAN_Feat"] = ((res["l1_feat1"] + res["l1_feat2"])
                                          * self.opts["lambda_feat"] / self.num_D)
            losses["L1"] = res["l1"]
            # TODO(synk): SynthesisLoss's own weighting/extra terms are not
            # reproduced; Total Loss is the plain sum of all computed terms.
            losses["Total Loss"] = sum(losses.values())
            self.fake = jax.lax.stop_gradient(res["img"])   # to_image(nv.data)
            self.real = target
            return losses

        elif mode == "discriminator":
            target = input_data["target_img"]
            res = fused_generator_step(x, target, self.p, use_disc=True,
                                       want_img=False,
                                       max_rows_blk=self._max_rows_blk)
            return {"D_Fake": res["mse_fake_vs_zero"] / self.num_D,
                    "D_real": res["mse_real_vs_one"] / self.num_D}

        elif mode == "inference":
            nv, _alpha = generator_infer(x, self.p,
                                         max_rows_blk=self._max_rows_blk)
            return nv

        raise KeyError("Mode should be in [generator, discriminator, inference]")


# ----------------------------------------------------------------------------
# Pure-JAX reference (for validation only)
# ----------------------------------------------------------------------------
def _reference(x, tgt, p, use_disc):
    n, c, h, w = x.shape
    xf = x.reshape(n, c, -1).astype(jnp.float32)
    tf = tgt.reshape(n, c, -1).astype(jnp.float32)

    def mix(v, wmat, b, act=None):
        y = jnp.einsum("ncs,ck->nks", v, wmat) + b[None, :, None]
        if act == "lrelu":
            y = jnp.where(y >= 0.0, y, 0.2 * y)
        elif act == "tanh":
            y = jnp.tanh(y)
        elif act == "sigmoid":
            y = jax.nn.sigmoid(y)
        return y

    nv = mix(xf, p["g_w"], p["g_b"], "tanh")
    img = jnp.clip((nv + 1.0) * 0.5, 0.0, 1.0)
    out = {"nv": nv.reshape(n, c, h, w), "img": img.reshape(n, c, h, w),
           "l1": jnp.mean(jnp.abs(nv - tf))}
    if use_disc:
        def disc(v):
            f1 = mix(v, p["d1_w"], p["d1_b"], "lrelu")
            f2 = mix(f1, p["d2_w"], p["d2_b"], "lrelu")
            return f1, f2, mix(f2, p["d3_w"], p["d3_b"])
        f1f, f2f, pf = disc(nv)
        f1r, f2r, pr = disc(tf)
        out.update({
            "mse_fake_vs_one": jnp.mean((pf - 1.0) ** 2),
            "mse_fake_vs_zero": jnp.mean(pf ** 2),
            "mse_real_vs_one": jnp.mean((pr - 1.0) ** 2),
            "l1_feat1": jnp.mean(jnp.abs(f1f - f1r)),
            "l1_feat2": jnp.mean(jnp.abs(f2f - f2r)),
        })
    return out


def _check_scalar(a, b, rtol=1e-3, atol=1e-4):
    a, b = float(a), float(b)
    assert abs(a - b) <= atol + rtol * abs(b), (a, b)


# ----------------------------------------------------------------------------
# Main
# ----------------------------------------------------------------------------
if __name__ == "__main__":
    key = jax.random.PRNGKey(0)
    ks = jax.random.split(key, 12)

    N, C, H, W = 2, 3, 64, 64      # H*W = 4096 -> 32 spatial rows of 128
    DCH = 8                        # stand-in discriminator hidden channels

    input_img = jax.random.normal(ks[0], (N, C, H, W), jnp.float32)
    target_img = jnp.tanh(jax.random.normal(ks[1], (N, C, H, W), jnp.float32))
    k_mats = jax.random.normal(ks[2], (N, 3, 3), jnp.float32)
    r_mats = jax.random.normal(ks[3], (N, 3, 3), jnp.float32)
    t_vecs = jax.random.normal(ks[4], (N, 3, 1), jnp.float32)

    params = {
        "g_w": 0.1 * jax.random.normal(ks[5], (C, C), jnp.float32),
        "g_b": jnp.zeros((C,), jnp.float32),
        "a_w": 0.1 * jax.random.normal(ks[6], (C, 1), jnp.float32),
        "a_b": jnp.zeros((1,), jnp.float32),
        "d1_w": 0.1 * jax.random.normal(ks[7], (C, DCH), jnp.float32),
        "d1_b": jnp.zeros((DCH,), jnp.float32),
        "d2_w": 0.1 * jax.random.normal(ks[8], (DCH, DCH), jnp.float32),
        "d2_b": jnp.zeros((DCH,), jnp.float32),
        "d3_w": 0.1 * jax.random.normal(ks[9], (DCH, 1), jnp.float32),
        "d3_b": jnp.zeros((1,), jnp.float32),
    }

    opts = {"gan_mode": "lsgan", "no_ganFeat_loss": False, "lambda_feat": 10.0}
    input_data = {"input_img": input_img, "target_img": target_img,
                  "k_mats": k_mats, "r_mats": r_mats, "t_vecs": t_vecs}

    # max_rows_blk=8 forces a multi-step grid + 2 parallel splits at this
    # small demo size so the accumulator / split logic is actually exercised.
    trainer = TrainerPallas(opts, {"use_disc": True, "max_rows_blk": 8}, params)
    gen_losses = trainer.forward(input_data, mode="generator")
    disc_losses = trainer.forward(input_data, mode="discriminator")
    infer_view = trainer.forward(input_data, mode="inference")
    jax.block_until_ready((gen_losses, disc_losses, infer_view, trainer.fake))

    ref = _reference(input_img, target_img, params, use_disc=True)
    _check_scalar(gen_losses["L1"], ref["l1"])
    _check_scalar(gen_losses["GAN"], ref["mse_fake_vs_one"])
    _check_scalar(gen_losses["GAN_Feat"],
                  (ref["l1_feat1"] + ref["l1_feat2"]) * opts["lambda_feat"])
    _check_scalar(disc_losses["D_Fake"], ref["mse_fake_vs_zero"])
    _check_scalar(disc_losses["D_real"], ref["mse_real_vs_one"])
    assert float(jnp.max(jnp.abs(infer_view - ref["nv"]))) < 1e-4
    assert float(jnp.max(jnp.abs(trainer.fake - ref["img"]))) < 1e-4

    # Non-128-multiple spatial extent (masked padding) + no-discriminator path.
    Hm, Wm = 30, 32
    in_m = jax.random.normal(ks[10], (N, C, Hm, Wm), jnp.float32)
    tgt_m = jnp.tanh(jax.random.normal(ks[11], (N, C, Hm, Wm), jnp.float32))
    data_m = {"input_img": in_m, "target_img": tgt_m,
              "k_mats": k_mats, "r_mats": r_mats, "t_vecs": t_vecs}
    trainer_nodisc = TrainerPallas(opts, {"use_disc": False}, params)
    losses_nodisc = trainer_nodisc.forward(data_m, mode="generator")
    jax.block_until_ready(losses_nodisc)
    ref_m = _reference(in_m, tgt_m, params, use_disc=False)
    _check_scalar(losses_nodisc["L1"], ref_m["l1"])

    print("KERNEL_OK")
</pallas_src>

<mosaic_0001>
module attributes {stable_mosaic.version = 11 : i64} {
  func.func @kernel(%arg0: i32, %arg1: i32, %arg2: memref<3x3xf32, #tpu.memory_space<smem>>, %arg3: memref<3xf32, #tpu.memory_space<smem>>, %arg4: memref<3x8xf32, #tpu.memory_space<smem>>, %arg5: memref<8xf32, #tpu.memory_space<smem>>, %arg6: memref<8x8xf32, #tpu.memory_space<smem>>, %arg7: memref<8xf32, #tpu.memory_space<smem>>, %arg8: memref<8x1xf32, #tpu.memory_space<smem>>, %arg9: memref<1xf32, #tpu.memory_space<smem>>, %arg10: memref<2x3x8x128xf32, #tpu.memory_space<vmem>>, %arg11: memref<2x3x8x128xf32, #tpu.memory_space<vmem>>, %arg12: memref<2x3x8x128xf32, #tpu.memory_space<vmem>>, %arg13: memref<1x6x8x128xf32, #tpu.memory_space<vmem>>) attributes {dimension_semantics = [#tpu.dimension_semantics<parallel>, #tpu.dimension_semantics<arbitrary>], iteration_bounds = array<i64: 2, 2>, scalar_prefetch = 0 : i64, scratch_operands = 0 : i64, tpu.core_type = #tpu.core_type<tc>, window_params = [{transform_indices = @transform_0, window_bounds = array<i64: 3, 3>}, {transform_indices = @transform_1, window_bounds = array<i64: 3>}, {transform_indices = @transform_2, window_bounds = array<i64: 3, 8>}, {transform_indices = @transform_3, window_bounds = array<i64: 8>}, {transform_indices = @transform_4, window_bounds = array<i64: 8, 8>}, {transform_indices = @transform_5, window_bounds = array<i64: 8>}, {transform_indices = @transform_6, window_bounds = array<i64: 8, 1>}, {transform_indices = @transform_7, window_bounds = array<i64: 1>}, {transform_indices = @transform_8, window_bounds = array<i64: 2, 3, 8, 128>}, {transform_indices = @transform_9, window_bounds = array<i64: 2, 3, 8, 128>}, {transform_indices = @transform_10, window_bounds = array<i64: 2, 3, 8, 128>}, {transform_indices = @transform_11, window_bounds = array<i64: 1, 6, 8, 128>}]} {
    %c0_i32 = arith.constant 0 : i32
    %0 = arith.cmpi eq, %arg1, %c0_i32 : i32
    %1 = arith.extui %0 : i1 to i32
    %c0_i32_0 = arith.constant 0 : i32
    %2 = arith.cmpi ne, %1, %c0_i32_0 : i32
    scf.if %2 {
      %cst_580 = arith.constant 0.000000e+00 : f32
      %1188 = vector.broadcast %cst_580 : f32 to vector<1x6x8x128xf32>
      %c0_581 = arith.constant 0 : index
      %c0_582 = arith.constant 0 : index
      %c0_583 = arith.constant 0 : index
      %c0_584 = arith.constant 0 : index
      %1189 = vector.load %arg13[%c0_581, %c0_582, %c0_583, %c0_584] : memref<1x6x8x128xf32, #tpu.memory_space<vmem>>, vector<1x6x8x128xf32>
      tpu.vector_store %arg13[%c0_581, %c0_582, %c0_583, %c0_584], %1188 {strides = array<i32>} : memref<1x6x8x128xf32, #tpu.memory_space<vmem>>, vector<1x6x8x128xf32>,
    } else {
    }
    %c0 = arith.constant 0 : index
    %c0_1 = arith.constant 0 : index
    %c0_2 = arith.constant 0 : index
    %c0_3 = arith.constant 0 : index
    %3 = vector.load %arg10[%c0, %c0_1, %c0_2, %c0_3] : memref<2x3x8x128xf32, #tpu.memory_space<vmem>>, vector<2x3x8x128xf32>
    %c0_4 = arith.constant 0 : index
    %c0_5 = arith.constant 0 : index
    %c0_6 = arith.constant 0 : index
    %c0_7 = arith.constant 0 : index
    %4 = vector.load %arg11[%c0_4, %c0_5, %c0_6, %c0_7] : memref<2x3x8x128xf32, #tpu.memory_space<vmem>>, vector<2x3x8x128xf32>
    %5 = vector.extract_strided_slice %3 {offsets = [0, 0, 0, 0], sizes = [2, 1, 8, 128], strides = [1, 1, 1, 1]} : vector<2x3x8x128xf32> to vector<2x1x8x128xf32>
    %6 = vector.shape_cast %5 : vector<2x1x8x128xf32> to vector<2x8x128xf32>
    %7 = vector.extract_strided_slice %3 {offsets = [0, 1, 0, 0], sizes = [2, 1, 8, 128], strides = [1, 1, 1, 1]} : vector<2x3x8x128xf32> to vector<2x1x8x128xf32>
    %8 = vector.shape_cast %7 : vector<2x1x8x128xf32> to vector<2x8x128xf32>
    %9 = vector.extract_strided_slice %3 {offsets = [0, 2, 0, 0], sizes = [2, 1, 8, 128], strides = [1, 1, 1, 1]} : vector<2x3x8x128xf32> to vector<2x1x8x128xf32>
    %10 = vector.shape_cast %9 : vector<2x1x8x128xf32> to vector<2x8x128xf32>
    %11 = vector.extract_strided_slice %4 {offsets = [0, 0, 0, 0], sizes = [2, 1, 8, 128], strides = [1, 1, 1, 1]} : vector<2x3x8x128xf32> to vector<2x1x8x128xf32>
    %12 = vector.shape_cast %11 : vector<2x1x8x128xf32> to vector<2x8x128xf32>
    %13 = vector.extract_strided_slice %4 {offsets = [0, 1, 0, 0], sizes = [2, 1, 8, 128], strides = [1, 1, 1, 1]} : vector<2x3x8x128xf32> to vector<2x1x8x128xf32>
    %14 = vector.shape_cast %13 : vector<2x1x8x128xf32> to vector<2x8x128xf32>
    %15 = vector.extract_strided_slice %4 {offsets = [0, 2, 0, 0], sizes = [2, 1, 8, 128], strides = [1, 1, 1, 1]} : vector<2x3x8x128xf32> to vector<2x1x8x128xf32>
    %16 = vector.shape_cast %15 : vector<2x1x8x128xf32> to vector<2x8x128xf32>
    %c0_8 = arith.constant 0 : index
    %c0_9 = arith.constant 0 : index
    %17 = memref.load %arg2[%c0_8, %c0_9] : memref<3x3xf32, #tpu.memory_space<smem>>
    %18 = vector.broadcast %17 : f32 to vector<2x8x128xf32>
    %19 = arith.mulf %6, %18 : vector<2x8x128xf32>
    %c0_10 = arith.constant 0 : index
    %20 = memref.load %arg3[%c0_10] : memref<3xf32, #tpu.memory_space<smem>>
    %21 = vector.broadcast %20 : f32 to vector<2x8x128xf32>
    %22 = arith.addf %19, %21 : vector<2x8x128xf32>
    %c1 = arith.constant 1 : index
    %c0_11 = arith.constant 0 : index
    %23 = memref.load %arg2[%c1, %c0_11] : memref<3x3xf32, #tpu.memory_space<smem>>
    %24 = vector.broadcast %23 : f32 to vector<2x8x128xf32>
    %25 = arith.mulf %8, %24 : vector<2x8x128xf32>
    %26 = arith.addf %22, %25 : vector<2x8x128xf32>
    %c2 = arith.constant 2 : index
    %c0_12 = arith.constant 0 : index
    %27 = memref.load %arg2[%c2, %c0_12] : memref<3x3xf32, #tpu.memory_space<smem>>
    %28 = vector.broadcast %27 : f32 to vector<2x8x128xf32>
    %29 = arith.mulf %10, %28 : vector<2x8x128xf32>
    %30 = arith.addf %26, %29 : vector<2x8x128xf32>
    %31 = math.tanh %30 : vector<2x8x128xf32>
    %c0_13 = arith.constant 0 : index
    %c1_14 = arith.constant 1 : index
    %32 = memref.load %arg2[%c0_13, %c1_14] : memref<3x3xf32, #tpu.memory_space<smem>>
    %33 = vector.broadcast %32 : f32 to vector<2x8x128xf32>
    %34 = arith.mulf %6, %33 : vector<2x8x128xf32>
    %c1_15 = arith.constant 1 : index
    %35 = memref.load %arg3[%c1_15] : memref<3xf32, #tpu.memory_space<smem>>
    %36 = vector.broadcast %35 : f32 to vector<2x8x128xf32>
    %37 = arith.addf %34, %36 : vector<2x8x128xf32>
    %c1_16 = arith.constant 1 : index
    %c1_17 = arith.constant 1 : index
    %38 = memref.load %arg2[%c1_16, %c1_17] : memref<3x3xf32, #tpu.memory_space<smem>>
    %39 = vector.broadcast %38 : f32 to vector<2x8x128xf32>
    %40 = arith.mulf %8, %39 : vector<2x8x128xf32>
    %41 = arith.addf %37, %40 : vector<2x8x128xf32>
    %c2_18 = arith.constant 2 : index
    %c1_19 = arith.constant 1 : index
    %42 = memref.load %arg2[%c2_18, %c1_19] : memref<3x3xf32, #tpu.memory_space<smem>>
    %43 = vector.broadcast %42 : f32 to vector<2x8x128xf32>
    %44 = arith.mulf %10, %43 : vector<2x8x128xf32>
    %45 = arith.addf %41, %44 : vector<2x8x128xf32>
    %46 = math.tanh %45 : vector<2x8x128xf32>
    %c0_20 = arith.constant 0 : index
    %c2_21 = arith.constant 2 : index
    %47 = memref.load %arg2[%c0_20, %c2_21] : memref<3x3xf32, #tpu.memory_space<smem>>
    %48 = vector.broadcast %47 : f32 to vector<2x8x128xf32>
    %49 = arith.mulf %6, %48 : vector<2x8x128xf32>
    %c2_22 = arith.constant 2 : index
    %50 = memref.load %arg3[%c2_22] : memref<3xf32, #tpu.memory_space<smem>>
    %51 = vector.broadcast %50 : f32 to vector<2x8x128xf32>
    %52 = arith.addf %49, %51 : vector<2x8x128xf32>
    %c1_23 = arith.constant 1 : index
    %c2_24 = arith.constant 2 : index
    %53 = memref.load %arg2[%c1_23, %c2_24] : memref<3x3xf32, #tpu.memory_space<smem>>
    %54 = vector.broadcast %53 : f32 to vector<2x8x128xf32>
    %55 = arith.mulf %8, %54 : vector<2x8x128xf32>
    %56 = arith.addf %52, %55 : vector<2x8x128xf32>
    %c2_25 = arith.constant 2 : index
    %c2_26 = arith.constant 2 : index
    %57 = memref.load %arg2[%c2_25, %c2_26] : memref<3x3xf32, #tpu.memory_space<smem>>
    %58 = vector.broadcast %57 : f32 to vector<2x8x128xf32>
    %59 = arith.mulf %10, %58 : vector<2x8x128xf32>
    %60 = arith.addf %56, %59 : vector<2x8x128xf32>
    %61 = math.tanh %60 : vector<2x8x128xf32>
    %cst = arith.constant 1.000000e+00 : f32
    %62 = vector.broadcast %cst : f32 to vector<2x8x128xf32>
    %63 = arith.addf %31, %62 : vector<2x8x128xf32>
    %cst_27 = arith.constant 5.000000e-01 : f32
    %64 = vector.broadcast %cst_27 : f32 to vector<2x8x128xf32>
    %65 = arith.mulf %63, %64 : vector<2x8x128xf32>
    %cst_28 = arith.constant 0.000000e+00 : f32
    %cst_29 = arith.constant 1.000000e+00 : f32
    %66 = vector.broadcast %cst_28 : f32 to vector<2x8x128xf32>
    %67 = arith.maximumf %66, %65 : vector<2x8x128xf32>
    %68 = vector.broadcast %cst_29 : f32 to vector<2x8x128xf32>
    %69 = arith.minimumf %68, %67 : vector<2x8x128xf32>
    %cst_30 = arith.constant 1.000000e+00 : f32
    %70 = vector.broadcast %cst_30 : f32 to vector<2x8x128xf32>
    %71 = arith.addf %46, %70 : vector<2x8x128xf32>
    %cst_31 = arith.constant 5.000000e-01 : f32
    %72 = vector.broadcast %cst_31 : f32 to vector<2x8x128xf32>
    %73 = arith.mulf %71, %72 : vector<2x8x128xf32>
    %cst_32 = arith.constant 0.000000e+00 : f32
    %cst_33 = arith.constant 1.000000e+00 : f32
    %74 = vector.broadcast %cst_32 : f32 to vector<2x8x128xf32>
    %75 = arith.maximumf %74, %73 : vector<2x8x128xf32>
    %76 = vector.broadcast %cst_33 : f32 to vector<2x8x128xf32>
    %77 = arith.minimumf %76, %75 : vector<2x8x128xf32>
    %cst_34 = arith.constant 1.000000e+00 : f32
    %78 = vector.broadcast %cst_34 : f32 to vector<2x8x128xf32>
    %79 = arith.addf %61, %78 : vector<2x8x128xf32>
    %cst_35 = arith.constant 5.000000e-01 : f32
    %80 = vector.broadcast %cst_35 : f32 to vector<2x8x128xf32>
    %81 = arith.mulf %79, %80 : vector<2x8x128xf32>
    %cst_36 = arith.constant 0.000000e+00 : f32
    %cst_37 = arith.constant 1.000000e+00 : f32
    %82 = vector.broadcast %cst_36 : f32 to vector<2x8x128xf32>
    %83 = arith.maximumf %82, %81 : vector<2x8x128xf32>
    %84 = vector.broadcast %cst_37 : f32 to vector<2x8x128xf32>
    %85 = arith.minimumf %84, %83 : vector<2x8x128xf32>
    %86 = vector.shape_cast %69 : vector<2x8x128xf32> to vector<2x1x8x128xf32>
    %87 = vector.shape_cast %77 : vector<2x8x128xf32> to vector<2x1x8x128xf32>
    %88 = vector.shape_cast %85 : vector<2x8x128xf32> to vector<2x1x8x128xf32>
    %89 = tpu.concatenate %86, %87, %88 in 1 : vector<2x1x8x128xf32>, vector<2x1x8x128xf32>, vector<2x1x8x128xf32> -> vector<2x3x8x128xf32>
    %c0_38 = arith.constant 0 : index
    %c0_39 = arith.constant 0 : index
    %c0_40 = arith.constant 0 : index
    %c0_41 = arith.constant 0 : index
    %90 = vector.load %arg12[%c0_38, %c0_39, %c0_40, %c0_41] : memref<2x3x8x128xf32, #tpu.memory_space<vmem>>, vector<2x3x8x128xf32>
    tpu.vector_store %arg12[%c0_38, %c0_39, %c0_40, %c0_41], %89 {strides = array<i32>} : memref<2x3x8x128xf32, #tpu.memory_space<vmem>>, vector<2x3x8x128xf32>,
    %c0_42 = arith.constant 0 : index
    %c0_43 = arith.constant 0 : index
    %91 = memref.load %arg4[%c0_42, %c0_43] : memref<3x8xf32, #tpu.memory_space<smem>>
    %92 = vector.broadcast %91 : f32 to vector<2x8x128xf32>
    %93 = arith.mulf %31, %92 : vector<2x8x128xf32>
    %c0_44 = arith.constant 0 : index
    %94 = memref.load %arg5[%c0_44] : memref<8xf32, #tpu.memory_space<smem>>
    %95 = vector.broadcast %94 : f32 to vector<2x8x128xf32>
    %96 = arith.addf %93, %95 : vector<2x8x128xf32>
    %c1_45 = arith.constant 1 : index
    %c0_46 = arith.constant 0 : index
    %97 = memref.load %arg4[%c1_45, %c0_46] : memref<3x8xf32, #tpu.memory_space<smem>>
    %98 = vector.broadcast %97 : f32 to vector<2x8x128xf32>
    %99 = arith.mulf %46, %98 : vector<2x8x128xf32>
    %100 = arith.addf %96, %99 : vector<2x8x128xf32>
    %c2_47 = arith.constant 2 : index
    %c0_48 = arith.constant 0 : index
    %101 = memref.load %arg4[%c2_47, %c0_48] : memref<3x8xf32, #tpu.memory_space<smem>>
    %102 = vector.broadcast %101 : f32 to vector<2x8x128xf32>
    %103 = arith.mulf %61, %102 : vector<2x8x128xf32>
    %104 = arith.addf %100, %103 : vector<2x8x128xf32>
    %cst_49 = arith.constant 0.000000e+00 : f32
    %105 = vector.broadcast %cst_49 : f32 to vector<2x8x128xf32>
    %106 = arith.cmpf oge, %104, %105 : vector<2x8x128xf32>
    %cst_50 = arith.constant 2.000000e-01 : f32
    %107 = vector.broadcast %cst_50 : f32 to vector<2x8x128xf32>
    %108 = arith.mulf %107, %104 : vector<2x8x128xf32>
    %109 = arith.select %106, %104, %108 : vector<2x8x128xi1>, vector<2x8x128xf32>
    %c0_51 = arith.constant 0 : index
    %c1_52 = arith.constant 1 : index
    %110 = memref.load %arg4[%c0_51, %c1_52] : memref<3x8xf32, #tpu.memory_space<smem>>
    %111 = vector.broadcast %110 : f32 to vector<2x8x128xf32>
    %112 = arith.mulf %31, %111 : vector<2x8x128xf32>
    %c1_53 = arith.constant 1 : index
    %113 = memref.load %arg5[%c1_53] : memref<8xf32, #tpu.memory_space<smem>>
    %114 = vector.broadcast %113 : f32 to vector<2x8x128xf32>
    %115 = arith.addf %112, %114 : vector<2x8x128xf32>
    %c1_54 = arith.constant 1 : index
    %c1_55 = arith.constant 1 : index
    %116 = memref.load %arg4[%c1_54, %c1_55] : memref<3x8xf32, #tpu.memory_space<smem>>
    %117 = vector.broadcast %116 : f32 to vector<2x8x128xf32>
    %118 = arith.mulf %46, %117 : vector<2x8x128xf32>
    %119 = arith.addf %115, %118 : vector<2x8x128xf32>
    %c2_56 = arith.constant 2 : index
    %c1_57 = arith.constant 1 : index
    %120 = memref.load %arg4[%c2_56, %c1_57] : memref<3x8xf32, #tpu.memory_space<smem>>
    %121 = vector.broadcast %120 : f32 to vector<2x8x128xf32>
    %122 = arith.mulf %61, %121 : vector<2x8x128xf32>
    %123 = arith.addf %119, %122 : vector<2x8x128xf32>
    %cst_58 = arith.constant 0.000000e+00 : f32
    %124 = vector.broadcast %cst_58 : f32 to vector<2x8x128xf32>
    %125 = arith.cmpf oge, %123, %124 : vector<2x8x128xf32>
    %cst_59 = arith.constant 2.000000e-01 : f32
    %126 = vector.broadcast %cst_59 : f32 to vector<2x8x128xf32>
    %127 = arith.mulf %126, %123 : vector<2x8x128xf32>
    %128 = arith.select %125, %123, %127 : vector<2x8x128xi1>, vector<2x8x128xf32>
    %c0_60 = arith.constant 0 : index
    %c2_61 = arith.constant 2 : index
    %129 = memref.load %arg4[%c0_60, %c2_61] : memref<3x8xf32, #tpu.memory_space<smem>>
    %130 = vector.broadcast %129 : f32 to vector<2x8x128xf32>
    %131 = arith.mulf %31, %130 : vector<2x8x128xf32>
    %c2_62 = arith.constant 2 : index
    %132 = memref.load %arg5[%c2_62] : memref<8xf32, #tpu.memory_space<smem>>
    %133 = vector.broadcast %132 : f32 to vector<2x8x128xf32>
    %134 = arith.addf %131, %133 : vector<2x8x128xf32>
    %c1_63 = arith.constant 1 : index
    %c2_64 = arith.constant 2 : index
    %135 = memref.load %arg4[%c1_63, %c2_64] : memref<3x8xf32, #tpu.memory_space<smem>>
    %136 = vector.broadcast %135 : f32 to vector<2x8x128xf32>
    %137 = arith.mulf %46, %136 : vector<2x8x128xf32>
    %138 = arith.addf %134, %137 : vector<2x8x128xf32>
    %c2_65 = arith.constant 2 : index
    %c2_66 = arith.constant 2 : index
    %139 = memref.load %arg4[%c2_65, %c2_66] : memref<3x8xf32, #tpu.memory_space<smem>>
    %140 = vector.broadcast %139 : f32 to vector<2x8x128xf32>
    %141 = arith.mulf %61, %140 : vector<2x8x128xf32>
    %142 = arith.addf %138, %141 : vector<2x8x128xf32>
    %cst_67 = arith.constant 0.000000e+00 : f32
    %143 = vector.broadcast %cst_67 : f32 to vector<2x8x128xf32>
    %144 = arith.cmpf oge, %142, %143 : vector<2x8x128xf32>
    %cst_68 = arith.constant 2.000000e-01 : f32
    %145 = vector.broadcast %cst_68 : f32 to vector<2x8x128xf32>
    %146 = arith.mulf %145, %142 : vector<2x8x128xf32>
    %147 = arith.select %144, %142, %146 : vector<2x8x128xi1>, vector<2x8x128xf32>
    %c0_69 = arith.constant 0 : index
    %c3 = arith.constant 3 : index
    %148 = memref.load %arg4[%c0_69, %c3] : memref<3x8xf32, #tpu.memory_space<smem>>
    %149 = vector.broadcast %148 : f32 to vector<2x8x128xf32>
    %150 = arith.mulf %31, %149 : vector<2x8x128xf32>
    %c3_70 = arith.constant 3 : index
    %151 = memref.load %arg5[%c3_70] : memref<8xf32, #tpu.memory_space<smem>>
    %152 = vector.broadcast %151 : f32 to vector<2x8x128xf32>
    %153 = arith.addf %150, %152 : vector<2x8x128xf32>
    %c1_71 = arith.constant 1 : index
    %c3_72 = arith.constant 3 : index
    %154 = memref.load %arg4[%c1_71, %c3_72] : memref<3x8xf32, #tpu.memory_space<smem>>
    %155 = vector.broadcast %154 : f32 to vector<2x8x128xf32>
    %156 = arith.mulf %46, %155 : vector<2x8x128xf32>
    %157 = arith.addf %153, %156 : vector<2x8x128xf32>
    %c2_73 = arith.constant 2 : index
    %c3_74 = arith.constant 3 : index
    %158 = memref.load %arg4[%c2_73, %c3_74] : memref<3x8xf32, #tpu.memory_space<smem>>
    %159 = vector.broadcast %158 : f32 to vector<2x8x128xf32>
    %160 = arith.mulf %61, %159 : vector<2x8x128xf32>
    %161 = arith.addf %157, %160 : vector<2x8x128xf32>
    %cst_75 = arith.constant 0.000000e+00 : f32
    %162 = vector.broadcast %cst_75 : f32 to vector<2x8x128xf32>
    %163 = arith.cmpf oge, %161, %162 : vector<2x8x128xf32>
    %cst_76 = arith.constant 2.000000e-01 : f32
    %164 = vector.broadcast %cst_76 : f32 to vector<2x8x128xf32>
    %165 = arith.mulf %164, %161 : vector<2x8x128xf32>
    %166 = arith.select %163, %161, %165 : vector<2x8x128xi1>, vector<2x8x128xf32>
    %c0_77 = arith.constant 0 : index
    %c4 = arith.constant 4 : index
    %167 = memref.load %arg4[%c0_77, %c4] : memref<3x8xf32, #tpu.memory_space<smem>>
    %168 = vector.broadcast %167 : f32 to vector<2x8x128xf32>
    %169 = arith.mulf %31, %168 : vector<2x8x128xf32>
    %c4_78 = arith.constant 4 : index
    %170 = memref.load %arg5[%c4_78] : memref<8xf32, #tpu.memory_space<smem>>
    %171 = vector.broadcast %170 : f32 to vector<2x8x128xf32>
    %172 = arith.addf %169, %171 : vector<2x8x128xf32>
    %c1_79 = arith.constant 1 : index
    %c4_80 = arith.constant 4 : index
    %173 = memref.load %arg4[%c1_79, %c4_80] : memref<3x8xf32, #tpu.memory_space<smem>>
    %174 = vector.broadcast %173 : f32 to vector<2x8x128xf32>
    %175 = arith.mulf %46, %174 : vector<2x8x128xf32>
    %176 = arith.addf %172, %175 : vector<2x8x128xf32>
    %c2_81 = arith.constant 2 : index
    %c4_82 = arith.constant 4 : index
    %177 = memref.load %arg4[%c2_81, %c4_82] : memref<3x8xf32, #tpu.memory_space<smem>>
    %178 = vector.broadcast %177 : f32 to vector<2x8x128xf32>
    %179 = arith.mulf %61, %178 : vector<2x8x128xf32>
    %180 = arith.addf %176, %179 : vector<2x8x128xf32>
    %cst_83 = arith.constant 0.000000e+00 : f32
    %181 = vector.broadcast %cst_83 : f32 to vector<2x8x128xf32>
    %182 = arith.cmpf oge, %180, %181 : vector<2x8x128xf32>
    %cst_84 = arith.constant 2.000000e-01 : f32
    %183 = vector.broadcast %cst_84 : f32 to vector<2x8x128xf32>
    %184 = arith.mulf %183, %180 : vector<2x8x128xf32>
    %185 = arith.select %182, %180, %184 : vector<2x8x128xi1>, vector<2x8x128xf32>
    %c0_85 = arith.constant 0 : index
    %c5 = arith.constant 5 : index
    %186 = memref.load %arg4[%c0_85, %c5] : memref<3x8xf32, #tpu.memory_space<smem>>
    %187 = vector.broadcast %186 : f32 to vector<2x8x128xf32>
    %188 = arith.mulf %31, %187 : vector<2x8x128xf32>
    %c5_86 = arith.constant 5 : index
    %189 = memref.load %arg5[%c5_86] : memref<8xf32, #tpu.memory_space<smem>>
    %190 = vector.broadcast %189 : f32 to vector<2x8x128xf32>
    %191 = arith.addf %188, %190 : vector<2x8x128xf32>
    %c1_87 = arith.constant 1 : index
    %c5_88 = arith.constant 5 : index
    %192 = memref.load %arg4[%c1_87, %c5_88] : memref<3x8xf32, #tpu.memory_space<smem>>
    %193 = vector.broadcast %192 : f32 to vector<2x8x128xf32>
    %194 = arith.mulf %46, %193 : vector<2x8x128xf32>
    %195 = arith.addf %191, %194 : vector<2x8x128xf32>
    %c2_89 = arith.constant 2 : index
    %c5_90 = arith.constant 5 : index
    %196 = memref.load %arg4[%c2_89, %c5_90] : memref<3x8xf32, #tpu.memory_space<smem>>
    %197 = vector.broadcast %196 : f32 to vector<2x8x128xf32>
    %198 = arith.mulf %61, %197 : vector<2x8x128xf32>
    %199 = arith.addf %195, %198 : vector<2x8x128xf32>
    %cst_91 = arith.constant 0.000000e+00 : f32
    %200 = vector.broadcast %cst_91 : f32 to vector<2x8x128xf32>
    %201 = arith.cmpf oge, %199, %200 : vector<2x8x128xf32>
    %cst_92 = arith.constant 2.000000e-01 : f32
    %202 = vector.broadcast %cst_92 : f32 to vector<2x8x128xf32>
    %203 = arith.mulf %202, %199 : vector<2x8x128xf32>
    %204 = arith.select %201, %199, %203 : vector<2x8x128xi1>, vector<2x8x128xf32>
    %c0_93 = arith.constant 0 : index
    %c6 = arith.constant 6 : index
    %205 = memref.load %arg4[%c0_93, %c6] : memref<3x8xf32, #tpu.memory_space<smem>>
    %206 = vector.broadcast %205 : f32 to vector<2x8x128xf32>
    %207 = arith.mulf %31, %206 : vector<2x8x128xf32>
    %c6_94 = arith.constant 6 : index
    %208 = memref.load %arg5[%c6_94] : memref<8xf32, #tpu.memory_space<smem>>
    %209 = vector.broadcast %208 : f32 to vector<2x8x128xf32>
    %210 = arith.addf %207, %209 : vector<2x8x128xf32>
    %c1_95 = arith.constant 1 : index
    %c6_96 = arith.constant 6 : index
    %211 = memref.load %arg4[%c1_95, %c6_96] : memref<3x8xf32, #tpu.memory_space<smem>>
    %212 = vector.broadcast %211 : f32 to vector<2x8x128xf32>
    %213 = arith.mulf %46, %212 : vector<2x8x128xf32>
    %214 = arith.addf %210, %213 : vector<2x8x128xf32>
    %c2_97 = arith.constant 2 : index
    %c6_98 = arith.constant 6 : index
    %215 = memref.load %arg4[%c2_97, %c6_98] : memref<3x8xf32, #tpu.memory_space<smem>>
    %216 = vector.broadcast %215 : f32 to vector<2x8x128xf32>
    %217 = arith.mulf %61, %216 : vector<2x8x128xf32>
    %218 = arith.addf %214, %217 : vector<2x8x128xf32>
    %cst_99 = arith.constant 0.000000e+00 : f32
    %219 = vector.broadcast %cst_99 : f32 to vector<2x8x128xf32>
    %220 = arith.cmpf oge, %218, %219 : vector<2x8x128xf32>
    %cst_100 = arith.constant 2.000000e-01 : f32
    %221 = vector.broadcast %cst_100 : f32 to vector<2x8x128xf32>
    %222 = arith.mulf %221, %218 : vector<2x8x128xf32>
    %223 = arith.select %220, %218, %222 : vector<2x8x128xi1>, vector<2x8x128xf32>
    %c0_101 = arith.constant 0 : index
    %c7 = arith.constant 7 : index
    %224 = memref.load %arg4[%c0_101, %c7] : memref<3x8xf32, #tpu.memory_space<smem>>
    %225 = vector.broadcast %224 : f32 to vector<2x8x128xf32>
    %226 = arith.mulf %31, %225 : vector<2x8x128xf32>
    %c7_102 = arith.constant 7 : index
    %227 = memref.load %arg5[%c7_102] : memref<8xf32, #tpu.memory_space<smem>>
    %228 = vector.broadcast %227 : f32 to vector<2x8x128xf32>
    %229 = arith.addf %226, %228 : vector<2x8x128xf32>
    %c1_103 = arith.constant 1 : index
    %c7_104 = arith.constant 7 : index
    %230 = memref.load %arg4[%c1_103, %c7_104] : memref<3x8xf32, #tpu.memory_space<smem>>
    %231 = vector.broadcast %230 : f32 to vector<2x8x128xf32>
    %232 = arith.mulf %46, %231 : vector<2x8x128xf32>
    %233 = arith.addf %229, %232 : vector<2x8x128xf32>
    %c2_105 = arith.constant 2 : index
    %c7_106 = arith.constant 7 : index
    %234 = memref.load %arg4[%c2_105, %c7_106] : memref<3x8xf32, #tpu.memory_space<smem>>
    %235 = vector.broadcast %234 : f32 to vector<2x8x128xf32>
    %236 = arith.mulf %61, %235 : vector<2x8x128xf32>
    %237 = arith.addf %233, %236 : vector<2x8x128xf32>
    %cst_107 = arith.constant 0.000000e+00 : f32
    %238 = vector.broadcast %cst_107 : f32 to vector<2x8x128xf32>
    %239 = arith.cmpf oge, %237, %238 : vector<2x8x128xf32>
    %cst_108 = arith.constant 2.000000e-01 : f32
    %240 = vector.broadcast %cst_108 : f32 to vector<2x8x128xf32>
    %241 = arith.mulf %240, %237 : vector<2x8x128xf32>
    %242 = arith.select %239, %237, %241 : vector<2x8x128xi1>, vector<2x8x128xf32>
    %c0_109 = arith.constant 0 : index
    %c0_110 = arith.constant 0 : index
    %243 = memref.load %arg6[%c0_109, %c0_110] : memref<8x8xf32, #tpu.memory_space<smem>>
    %244 = vector.broadcast %243 : f32 to vector<2x8x128xf32>
    %245 = arith.mulf %109, %244 : vector<2x8x128xf32>
    %c0_111 = arith.constant 0 : index
    %246 = memref.load %arg7[%c0_111] : memref<8xf32, #tpu.memory_space<smem>>
    %247 = vector.broadcast %246 : f32 to vector<2x8x128xf32>
    %248 = arith.addf %245, %247 : vector<2x8x128xf32>
    %c1_112 = arith.constant 1 : index
    %c0_113 = arith.constant 0 : index
    %249 = memref.load %arg6[%c1_112, %c0_113] : memref<8x8xf32, #tpu.memory_space<smem>>
    %250 = vector.broadcast %249 : f32 to vector<2x8x128xf32>
    %251 = arith.mulf %128, %250 : vector<2x8x128xf32>
    %252 = arith.addf %248, %251 : vector<2x8x128xf32>
    %c2_114 = arith.constant 2 : index
    %c0_115 = arith.constant 0 : index
    %253 = memref.load %arg6[%c2_114, %c0_115] : memref<8x8xf32, #tpu.memory_space<smem>>
    %254 = vector.broadcast %253 : f32 to vector<2x8x128xf32>
    %255 = arith.mulf %147, %254 : vector<2x8x128xf32>
    %256 = arith.addf %252, %255 : vector<2x8x128xf32>
    %c3_116 = arith.constant 3 : index
    %c0_117 = arith.constant 0 : index
    %257 = memref.load %arg6[%c3_116, %c0_117] : memref<8x8xf32, #tpu.memory_space<smem>>
    %258 = vector.broadcast %257 : f32 to vector<2x8x128xf32>
    %259 = arith.mulf %166, %258 : vector<2x8x128xf32>
    %260 = arith.addf %256, %259 : vector<2x8x128xf32>
    %c4_118 = arith.constant 4 : index
    %c0_119 = arith.constant 0 : index
    %261 = memref.load %arg6[%c4_118, %c0_119] : memref<8x8xf32, #tpu.memory_space<smem>>
    %262 = vector.broadcast %261 : f32 to vector<2x8x128xf32>
    %263 = arith.mulf %185, %262 : vector<2x8x128xf32>
    %264 = arith.addf %260, %263 : vector<2x8x128xf32>
    %c5_120 = arith.constant 5 : index
    %c0_121 = arith.constant 0 : index
    %265 = memref.load %arg6[%c5_120, %c0_121] : memref<8x8xf32, #tpu.memory_space<smem>>
    %266 = vector.broadcast %265 : f32 to vector<2x8x128xf32>
    %267 = arith.mulf %204, %266 : vector<2x8x128xf32>
    %268 = arith.addf %264, %267 : vector<2x8x128xf32>
    %c6_122 = arith.constant 6 : index
    %c0_123 = arith.constant 0 : index
    %269 = memref.load %arg6[%c6_122, %c0_123] : memref<8x8xf32, #tpu.memory_space<smem>>
    %270 = vector.broadcast %269 : f32 to vector<2x8x128xf32>
    %271 = arith.mulf %223, %270 : vector<2x8x128xf32>
    %272 = arith.addf %268, %271 : vector<2x8x128xf32>
    %c7_124 = arith.constant 7 : index
    %c0_125 = arith.constant 0 : index
    %273 = memref.load %arg6[%c7_124, %c0_125] : memref<8x8xf32, #tpu.memory_space<smem>>
    %274 = vector.broadcast %273 : f32 to vector<2x8x128xf32>
    %275 = arith.mulf %242, %274 : vector<2x8x128xf32>
    %276 = arith.addf %272, %275 : vector<2x8x128xf32>
    %cst_126 = arith.constant 0.000000e+00 : f32
    %277 = vector.broadcast %cst_126 : f32 to vector<2x8x128xf32>
    %278 = arith.cmpf oge, %276, %277 : vector<2x8x128xf32>
    %cst_127 = arith.constant 2.000000e-01 : f32
    %279 = vector.broadcast %cst_127 : f32 to vector<2x8x128xf32>
    %280 = arith.mulf %279, %276 : vector<2x8x128xf32>
    %281 = arith.select %278, %276, %280 : vector<2x8x128xi1>, vector<2x8x128xf32>
    %c0_128 = arith.constant 0 : index
    %c1_129 = arith.constant 1 : index
    %282 = memref.load %arg6[%c0_128, %c1_129] : memref<8x8xf32, #tpu.memory_space<smem>>
    %283 = vector.broadcast %282 : f32 to vector<2x8x128xf32>
    %284 = arith.mulf %109, %283 : vector<2x8x128xf32>
    %c1_130 = arith.constant 1 : index
    %285 = memref.load %arg7[%c1_130] : memref<8xf32, #tpu.memory_space<smem>>
    %286 = vector.broadcast %285 : f32 to vector<2x8x128xf32>
    %287 = arith.addf %284, %286 : vector<2x8x128xf32>
    %c1_131 = arith.constant 1 : index
    %c1_132 = arith.constant 1 : index
    %288 = memref.load %arg6[%c1_131, %c1_132] : memref<8x8xf32, #tpu.memory_space<smem>>
    %289 = vector.broadcast %288 : f32 to vector<2x8x128xf32>
    %290 = arith.mulf %128, %289 : vector<2x8x128xf32>
    %291 = arith.addf %287, %290 : vector<2x8x128xf32>
    %c2_133 = arith.constant 2 : index
    %c1_134 = arith.constant 1 : index
    %292 = memref.load %arg6[%c2_133, %c1_134] : memref<8x8xf32, #tpu.memory_space<smem>>
    %293 = vector.broadcast %292 : f32 to vector<2x8x128xf32>
    %294 = arith.mulf %147, %293 : vector<2x8x128xf32>
    %295 = arith.addf %291, %294 : vector<2x8x128xf32>
    %c3_135 = arith.constant 3 : index
    %c1_136 = arith.constant 1 : index
    %296 = memref.load %arg6[%c3_135, %c1_136] : memref<8x8xf32, #tpu.memory_space<smem>>
    %297 = vector.broadcast %296 : f32 to vector<2x8x128xf32>
    %298 = arith.mulf %166, %297 : vector<2x8x128xf32>
    %299 = arith.addf %295, %298 : vector<2x8x128xf32>
    %c4_137 = arith.constant 4 : index
    %c1_138 = arith.constant 1 : index
    %300 = memref.load %arg6[%c4_137, %c1_138] : memref<8x8xf32, #tpu.memory_space<smem>>
    %301 = vector.broadcast %300 : f32 to vector<2x8x128xf32>
    %302 = arith.mulf %185, %301 : vector<2x8x128xf32>
    %303 = arith.addf %299, %302 : vector<2x8x128xf32>
    %c5_139 = arith.constant 5 : index
    %c1_140 = arith.constant 1 : index
    %304 = memref.load %arg6[%c5_139, %c1_140] : memref<8x8xf32, #tpu.memory_space<smem>>
    %305 = vector.broadcast %304 : f32 to vector<2x8x128xf32>
    %306 = arith.mulf %204, %305 : vector<2x8x128xf32>
    %307 = arith.addf %303, %306 : vector<2x8x128xf32>
    %c6_141 = arith.constant 6 : index
    %c1_142 = arith.constant 1 : index
    %308 = memref.load %arg6[%c6_141, %c1_142] : memref<8x8xf32, #tpu.memory_space<smem>>
    %309 = vector.broadcast %308 : f32 to vector<2x8x128xf32>
    %310 = arith.mulf %223, %309 : vector<2x8x128xf32>
    %311 = arith.addf %307, %310 : vector<2x8x128xf32>
    %c7_143 = arith.constant 7 : index
    %c1_144 = arith.constant 1 : index
    %312 = memref.load %arg6[%c7_143, %c1_144] : memref<8x8xf32, #tpu.memory_space<smem>>
    %313 = vector.broadcast %312 : f32 to vector<2x8x128xf32>
    %314 = arith.mulf %242, %313 : vector<2x8x128xf32>
    %315 = arith.addf %311, %314 : vector<2x8x128xf32>
    %cst_145 = arith.constant 0.000000e+00 : f32
    %316 = vector.broadcast %cst_145 : f32 to vector<2x8x128xf32>
    %317 = arith.cmpf oge, %315, %316 : vector<2x8x128xf32>
    %cst_146 = arith.constant 2.000000e-01 : f32
    %318 = vector.broadcast %cst_146 : f32 to vector<2x8x128xf32>
    %319 = arith.mulf %318, %315 : vector<2x8x128xf32>
    %320 = arith.select %317, %315, %319 : vector<2x8x128xi1>, vector<2x8x128xf32>
    %c0_147 = arith.constant 0 : index
    %c2_148 = arith.constant 2 : index
    %321 = memref.load %arg6[%c0_147, %c2_148] : memref<8x8xf32, #tpu.memory_space<smem>>
    %322 = vector.broadcast %321 : f32 to vector<2x8x128xf32>
    %323 = arith.mulf %109, %322 : vector<2x8x128xf32>
    %c2_149 = arith.constant 2 : index
    %324 = memref.load %arg7[%c2_149] : memref<8xf32, #tpu.memory_space<smem>>
    %325 = vector.broadcast %324 : f32 to vector<2x8x128xf32>
    %326 = arith.addf %323, %325 : vector<2x8x128xf32>
    %c1_150 = arith.constant 1 : index
    %c2_151 = arith.constant 2 : index
    %327 = memref.load %arg6[%c1_150, %c2_151] : memref<8x8xf32, #tpu.memory_space<smem>>
    %328 = vector.broadcast %327 : f32 to vector<2x8x128xf32>
    %329 = arith.mulf %128, %328 : vector<2x8x128xf32>
    %330 = arith.addf %326, %329 : vector<2x8x128xf32>
    %c2_152 = arith.constant 2 : index
    %c2_153 = arith.constant 2 : index
    %331 = memref.load %arg6[%c2_152, %c2_153] : memref<8x8xf32, #tpu.memory_space<smem>>
    %332 = vector.broadcast %331 : f32 to vector<2x8x128xf32>
    %333 = arith.mulf %147, %332 : vector<2x8x128xf32>
    %334 = arith.addf %330, %333 : vector<2x8x128xf32>
    %c3_154 = arith.constant 3 : index
    %c2_155 = arith.constant 2 : index
    %335 = memref.load %arg6[%c3_154, %c2_155] : memref<8x8xf32, #tpu.memory_space<smem>>
    %336 = vector.broadcast %335 : f32 to vector<2x8x128xf32>
    %337 = arith.mulf %166, %336 : vector<2x8x128xf32>
    %338 = arith.addf %334, %337 : vector<2x8x128xf32>
    %c4_156 = arith.constant 4 : index
    %c2_157 = arith.constant 2 : index
    %339 = memref.load %arg6[%c4_156, %c2_157] : memref<8x8xf32, #tpu.memory_space<smem>>
    %340 = vector.broadcast %339 : f32 to vector<2x8x128xf32>
    %341 = arith.mulf %185, %340 : vector<2x8x128xf32>
    %342 = arith.addf %338, %341 : vector<2x8x128xf32>
    %c5_158 = arith.constant 5 : index
    %c2_159 = arith.constant 2 : index
    %343 = memref.load %arg6[%c5_158, %c2_159] : memref<8x8xf32, #tpu.memory_space<smem>>
    %344 = vector.broadcast %343 : f32 to vector<2x8x128xf32>
    %345 = arith.mulf %204, %344 : vector<2x8x128xf32>
    %346 = arith.addf %342, %345 : vector<2x8x128xf32>
    %c6_160 = arith.constant 6 : index
    %c2_161 = arith.constant 2 : index
    %347 = memref.load %arg6[%c6_160, %c2_161] : memref<8x8xf32, #tpu.memory_space<smem>>
    %348 = vector.broadcast %347 : f32 to vector<2x8x128xf32>
    %349 = arith.mulf %223, %348 : vector<2x8x128xf32>
    %350 = arith.addf %346, %349 : vector<2x8x128xf32>
    %c7_162 = arith.constant 7 : index
    %c2_163 = arith.constant 2 : index
    %351 = memref.load %arg6[%c7_162, %c2_163] : memref<8x8xf32, #tpu.memory_space<smem>>
    %352 = vector.broadcast %351 : f32 to vector<2x8x128xf32>
    %353 = arith.mulf %242, %352 : vector<2x8x128xf32>
    %354 = arith.addf %350, %353 : vector<2x8x128xf32>
    %cst_164 = arith.constant 0.000000e+00 : f32
    %355 = vector.broadcast %cst_164 : f32 to vector<2x8x128xf32>
    %356 = arith.cmpf oge, %354, %355 : vector<2x8x128xf32>
    %cst_165 = arith.constant 2.000000e-01 : f32
    %357 = vector.broadcast %cst_165 : f32 to vector<2x8x128xf32>
    %358 = arith.mulf %357, %354 : vector<2x8x128xf32>
    %359 = arith.select %356, %354, %358 : vector<2x8x128xi1>, vector<2x8x128xf32>
    %c0_166 = arith.constant 0 : index
    %c3_167 = arith.constant 3 : index
    %360 = memref.load %arg6[%c0_166, %c3_167] : memref<8x8xf32, #tpu.memory_space<smem>>
    %361 = vector.broadcast %360 : f32 to vector<2x8x128xf32>
    %362 = arith.mulf %109, %361 : vector<2x8x128xf32>
    %c3_168 = arith.constant 3 : index
    %363 = memref.load %arg7[%c3_168] : memref<8xf32, #tpu.memory_space<smem>>
    %364 = vector.broadcast %363 : f32 to vector<2x8x128xf32>
    %365 = arith.addf %362, %364 : vector<2x8x128xf32>
    %c1_169 = arith.constant 1 : index
    %c3_170 = arith.constant 3 : index
    %366 = memref.load %arg6[%c1_169, %c3_170] : memref<8x8xf32, #tpu.memory_space<smem>>
    %367 = vector.broadcast %366 : f32 to vector<2x8x128xf32>
    %368 = arith.mulf %128, %367 : vector<2x8x128xf32>
    %369 = arith.addf %365, %368 : vector<2x8x128xf32>
    %c2_171 = arith.constant 2 : index
    %c3_172 = arith.constant 3 : index
    %370 = memref.load %arg6[%c2_171, %c3_172] : memref<8x8xf32, #tpu.memory_space<smem>>
    %371 = vector.broadcast %370 : f32 to vector<2x8x128xf32>
    %372 = arith.mulf %147, %371 : vector<2x8x128xf32>
    %373 = arith.addf %369, %372 : vector<2x8x128xf32>
    %c3_173 = arith.constant 3 : index
    %c3_174 = arith.constant 3 : index
    %374 = memref.load %arg6[%c3_173, %c3_174] : memref<8x8xf32, #tpu.memory_space<smem>>
    %375 = vector.broadcast %374 : f32 to vector<2x8x128xf32>
    %376 = arith.mulf %166, %375 : vector<2x8x128xf32>
    %377 = arith.addf %373, %376 : vector<2x8x128xf32>
    %c4_175 = arith.constant 4 : index
    %c3_176 = arith.constant 3 : index
    %378 = memref.load %arg6[%c4_175, %c3_176] : memref<8x8xf32, #tpu.memory_space<smem>>
    %379 = vector.broadcast %378 : f32 to vector<2x8x128xf32>
    %380 = arith.mulf %185, %379 : vector<2x8x128xf32>
    %381 = arith.addf %377, %380 : vector<2x8x128xf32>
    %c5_177 = arith.constant 5 : index
    %c3_178 = arith.constant 3 : index
    %382 = memref.load %arg6[%c5_177, %c3_178] : memref<8x8xf32, #tpu.memory_space<smem>>
    %383 = vector.broadcast %382 : f32 to vector<2x8x128xf32>
    %384 = arith.mulf %204, %383 : vector<2x8x128xf32>
    %385 = arith.addf %381, %384 : vector<2x8x128xf32>
    %c6_179 = arith.constant 6 : index
    %c3_180 = arith.constant 3 : index
    %386 = memref.load %arg6[%c6_179, %c3_180] : memref<8x8xf32, #tpu.memory_space<smem>>
    %387 = vector.broadcast %386 : f32 to vector<2x8x128xf32>
    %388 = arith.mulf %223, %387 : vector<2x8x128xf32>
    %389 = arith.addf %385, %388 : vector<2x8x128xf32>
    %c7_181 = arith.constant 7 : index
    %c3_182 = arith.constant 3 : index
    %390 = memref.load %arg6[%c7_181, %c3_182] : memref<8x8xf32, #tpu.memory_space<smem>>
    %391 = vector.broadcast %390 : f32 to vector<2x8x128xf32>
    %392 = arith.mulf %242, %391 : vector<2x8x128xf32>
    %393 = arith.addf %389, %392 : vector<2x8x128xf32>
    %cst_183 = arith.constant 0.000000e+00 : f32
    %394 = vector.broadcast %cst_183 : f32 to vector<2x8x128xf32>
    %395 = arith.cmpf oge, %393, %394 : vector<2x8x128xf32>
    %cst_184 = arith.constant 2.000000e-01 : f32
    %396 = vector.broadcast %cst_184 : f32 to vector<2x8x128xf32>
    %397 = arith.mulf %396, %393 : vector<2x8x128xf32>
    %398 = arith.select %395, %393, %397 : vector<2x8x128xi1>, vector<2x8x128xf32>
    %c0_185 = arith.constant 0 : index
    %c4_186 = arith.constant 4 : index
    %399 = memref.load %arg6[%c0_185, %c4_186] : memref<8x8xf32, #tpu.memory_space<smem>>
    %400 = vector.broadcast %399 : f32 to vector<2x8x128xf32>
    %401 = arith.mulf %109, %400 : vector<2x8x128xf32>
    %c4_187 = arith.constant 4 : index
    %402 = memref.load %arg7[%c4_187] : memref<8xf32, #tpu.memory_space<smem>>
    %403 = vector.broadcast %402 : f32 to vector<2x8x128xf32>
    %404 = arith.addf %401, %403 : vector<2x8x128xf32>
    %c1_188 = arith.constant 1 : index
    %c4_189 = arith.constant 4 : index
    %405 = memref.load %arg6[%c1_188, %c4_189] : memref<8x8xf32, #tpu.memory_space<smem>>
    %406 = vector.broadcast %405 : f32 to vector<2x8x128xf32>
    %407 = arith.mulf %128, %406 : vector<2x8x128xf32>
    %408 = arith.addf %404, %407 : vector<2x8x128xf32>
    %c2_190 = arith.constant 2 : index
    %c4_191 = arith.constant 4 : index
    %409 = memref.load %arg6[%c2_190, %c4_191] : memref<8x8xf32, #tpu.memory_space<smem>>
    %410 = vector.broadcast %409 : f32 to vector<2x8x128xf32>
    %411 = arith.mulf %147, %410 : vector<2x8x128xf32>
    %412 = arith.addf %408, %411 : vector<2x8x128xf32>
    %c3_192 = arith.constant 3 : index
    %c4_193 = arith.constant 4 : index
    %413 = memref.load %arg6[%c3_192, %c4_193] : memref<8x8xf32, #tpu.memory_space<smem>>
    %414 = vector.broadcast %413 : f32 to vector<2x8x128xf32>
    %415 = arith.mulf %166, %414 : vector<2x8x128xf32>
    %416 = arith.addf %412, %415 : vector<2x8x128xf32>
    %c4_194 = arith.constant 4 : index
    %c4_195 = arith.constant 4 : index
    %417 = memref.load %arg6[%c4_194, %c4_195] : memref<8x8xf32, #tpu.memory_space<smem>>
    %418 = vector.broadcast %417 : f32 to vector<2x8x128xf32>
    %419 = arith.mulf %185, %418 : vector<2x8x128xf32>
    %420 = arith.addf %416, %419 : vector<2x8x128xf32>
    %c5_196 = arith.constant 5 : index
    %c4_197 = arith.constant 4 : index
    %421 = memref.load %arg6[%c5_196, %c4_197] : memref<8x8xf32, #tpu.memory_space<smem>>
    %422 = vector.broadcast %421 : f32 to vector<2x8x128xf32>
    %423 = arith.mulf %204, %422 : vector<2x8x128xf32>
    %424 = arith.addf %420, %423 : vector<2x8x128xf32>
    %c6_198 = arith.constant 6 : index
    %c4_199 = arith.constant 4 : index
    %425 = memref.load %arg6[%c6_198, %c4_199] : memref<8x8xf32, #tpu.memory_space<smem>>
    %426 = vector.broadcast %425 : f32 to vector<2x8x128xf32>
    %427 = arith.mulf %223, %426 : vector<2x8x128xf32>
    %428 = arith.addf %424, %427 : vector<2x8x128xf32>
    %c7_200 = arith.constant 7 : index
    %c4_201 = arith.constant 4 : index
    %429 = memref.load %arg6[%c7_200, %c4_201] : memref<8x8xf32, #tpu.memory_space<smem>>
    %430 = vector.broadcast %429 : f32 to vector<2x8x128xf32>
    %431 = arith.mulf %242, %430 : vector<2x8x128xf32>
    %432 = arith.addf %428, %431 : vector<2x8x128xf32>
    %cst_202 = arith.constant 0.000000e+00 : f32
    %433 = vector.broadcast %cst_202 : f32 to vector<2x8x128xf32>
    %434 = arith.cmpf oge, %432, %433 : vector<2x8x128xf32>
    %cst_203 = arith.constant 2.000000e-01 : f32
    %435 = vector.broadcast %cst_203 : f32 to vector<2x8x128xf32>
    %436 = arith.mulf %435, %432 : vector<2x8x128xf32>
    %437 = arith.select %434, %432, %436 : vector<2x8x128xi1>, vector<2x8x128xf32>
    %c0_204 = arith.constant 0 : index
    %c5_205 = arith.constant 5 : index
    %438 = memref.load %arg6[%c0_204, %c5_205] : memref<8x8xf32, #tpu.memory_space<smem>>
    %439 = vector.broadcast %438 : f32 to vector<2x8x128xf32>
    %440 = arith.mulf %109, %439 : vector<2x8x128xf32>
    %c5_206 = arith.constant 5 : index
    %441 = memref.load %arg7[%c5_206] : memref<8xf32, #tpu.memory_space<smem>>
    %442 = vector.broadcast %441 : f32 to vector<2x8x128xf32>
    %443 = arith.addf %440, %442 : vector<2x8x128xf32>
    %c1_207 = arith.constant 1 : index
    %c5_208 = arith.constant 5 : index
    %444 = memref.load %arg6[%c1_207, %c5_208] : memref<8x8xf32, #tpu.memory_space<smem>>
    %445 = vector.broadcast %444 : f32 to vector<2x8x128xf32>
    %446 = arith.mulf %128, %445 : vector<2x8x128xf32>
    %447 = arith.addf %443, %446 : vector<2x8x128xf32>
    %c2_209 = arith.constant 2 : index
    %c5_210 = arith.constant 5 : index
    %448 = memref.load %arg6[%c2_209, %c5_210] : memref<8x8xf32, #tpu.memory_space<smem>>
    %449 = vector.broadcast %448 : f32 to vector<2x8x128xf32>
    %450 = arith.mulf %147, %449 : vector<2x8x128xf32>
    %451 = arith.addf %447, %450 : vector<2x8x128xf32>
    %c3_211 = arith.constant 3 : index
    %c5_212 = arith.constant 5 : index
    %452 = memref.load %arg6[%c3_211, %c5_212] : memref<8x8xf32, #tpu.memory_space<smem>>
    %453 = vector.broadcast %452 : f32 to vector<2x8x128xf32>
    %454 = arith.mulf %166, %453 : vector<2x8x128xf32>
    %455 = arith.addf %451, %454 : vector<2x8x128xf32>
    %c4_213 = arith.constant 4 : index
    %c5_214 = arith.constant 5 : index
    %456 = memref.load %arg6[%c4_213, %c5_214] : memref<8x8xf32, #tpu.memory_space<smem>>
    %457 = vector.broadcast %456 : f32 to vector<2x8x128xf32>
    %458 = arith.mulf %185, %457 : vector<2x8x128xf32>
    %459 = arith.addf %455, %458 : vector<2x8x128xf32>
    %c5_215 = arith.constant 5 : index
    %c5_216 = arith.constant 5 : index
    %460 = memref.load %arg6[%c5_215, %c5_216] : memref<8x8xf32, #tpu.memory_space<smem>>
    %461 = vector.broadcast %460 : f32 to vector<2x8x128xf32>
    %462 = arith.mulf %204, %461 : vector<2x8x128xf32>
    %463 = arith.addf %459, %462 : vector<2x8x128xf32>
    %c6_217 = arith.constant 6 : index
    %c5_218 = arith.constant 5 : index
    %464 = memref.load %arg6[%c6_217, %c5_218] : memref<8x8xf32, #tpu.memory_space<smem>>
    %465 = vector.broadcast %464 : f32 to vector<2x8x128xf32>
    %466 = arith.mulf %223, %465 : vector<2x8x128xf32>
    %467 = arith.addf %463, %466 : vector<2x8x128xf32>
    %c7_219 = arith.constant 7 : index
    %c5_220 = arith.constant 5 : index
    %468 = memref.load %arg6[%c7_219, %c5_220] : memref<8x8xf32, #tpu.memory_space<smem>>
    %469 = vector.broadcast %468 : f32 to vector<2x8x128xf32>
    %470 = arith.mulf %242, %469 : vector<2x8x128xf32>
    %471 = arith.addf %467, %470 : vector<2x8x128xf32>
    %cst_221 = arith.constant 0.000000e+00 : f32
    %472 = vector.broadcast %cst_221 : f32 to vector<2x8x128xf32>
    %473 = arith.cmpf oge, %471, %472 : vector<2x8x128xf32>
    %cst_222 = arith.constant 2.000000e-01 : f32
    %474 = vector.broadcast %cst_222 : f32 to vector<2x8x128xf32>
    %475 = arith.mulf %474, %471 : vector<2x8x128xf32>
    %476 = arith.select %473, %471, %475 : vector<2x8x128xi1>, vector<2x8x128xf32>
    %c0_223 = arith.constant 0 : index
    %c6_224 = arith.constant 6 : index
    %477 = memref.load %arg6[%c0_223, %c6_224] : memref<8x8xf32, #tpu.memory_space<smem>>
    %478 = vector.broadcast %477 : f32 to vector<2x8x128xf32>
    %479 = arith.mulf %109, %478 : vector<2x8x128xf32>
    %c6_225 = arith.constant 6 : index
    %480 = memref.load %arg7[%c6_225] : memref<8xf32, #tpu.memory_space<smem>>
    %481 = vector.broadcast %480 : f32 to vector<2x8x128xf32>
    %482 = arith.addf %479, %481 : vector<2x8x128xf32>
    %c1_226 = arith.constant 1 : index
    %c6_227 = arith.constant 6 : index
    %483 = memref.load %arg6[%c1_226, %c6_227] : memref<8x8xf32, #tpu.memory_space<smem>>
    %484 = vector.broadcast %483 : f32 to vector<2x8x128xf32>
    %485 = arith.mulf %128, %484 : vector<2x8x128xf32>
    %486 = arith.addf %482, %485 : vector<2x8x128xf32>
    %c2_228 = arith.constant 2 : index
    %c6_229 = arith.constant 6 : index
    %487 = memref.load %arg6[%c2_228, %c6_229] : memref<8x8xf32, #tpu.memory_space<smem>>
    %488 = vector.broadcast %487 : f32 to vector<2x8x128xf32>
    %489 = arith.mulf %147, %488 : vector<2x8x128xf32>
    %490 = arith.addf %486, %489 : vector<2x8x128xf32>
    %c3_230 = arith.constant 3 : index
    %c6_231 = arith.constant 6 : index
    %491 = memref.load %arg6[%c3_230, %c6_231] : memref<8x8xf32, #tpu.memory_space<smem>>
    %492 = vector.broadcast %491 : f32 to vector<2x8x128xf32>
    %493 = arith.mulf %166, %492 : vector<2x8x128xf32>
    %494 = arith.addf %490, %493 : vector<2x8x128xf32>
    %c4_232 = arith.constant 4 : index
    %c6_233 = arith.constant 6 : index
    %495 = memref.load %arg6[%c4_232, %c6_233] : memref<8x8xf32, #tpu.memory_space<smem>>
    %496 = vector.broadcast %495 : f32 to vector<2x8x128xf32>
    %497 = arith.mulf %185, %496 : vector<2x8x128xf32>
    %498 = arith.addf %494, %497 : vector<2x8x128xf32>
    %c5_234 = arith.constant 5 : index
    %c6_235 = arith.constant 6 : index
    %499 = memref.load %arg6[%c5_234, %c6_235] : memref<8x8xf32, #tpu.memory_space<smem>>
    %500 = vector.broadcast %499 : f32 to vector<2x8x128xf32>
    %501 = arith.mulf %204, %500 : vector<2x8x128xf32>
    %502 = arith.addf %498, %501 : vector<2x8x128xf32>
    %c6_236 = arith.constant 6 : index
    %c6_237 = arith.constant 6 : index
    %503 = memref.load %arg6[%c6_236, %c6_237] : memref<8x8xf32, #tpu.memory_space<smem>>
    %504 = vector.broadcast %503 : f32 to vector<2x8x128xf32>
    %505 = arith.mulf %223, %504 : vector<2x8x128xf32>
    %506 = arith.addf %502, %505 : vector<2x8x128xf32>
    %c7_238 = arith.constant 7 : index
    %c6_239 = arith.constant 6 : index
    %507 = memref.load %arg6[%c7_238, %c6_239] : memref<8x8xf32, #tpu.memory_space<smem>>
    %508 = vector.broadcast %507 : f32 to vector<2x8x128xf32>
    %509 = arith.mulf %242, %508 : vector<2x8x128xf32>
    %510 = arith.addf %506, %509 : vector<2x8x128xf32>
    %cst_240 = arith.constant 0.000000e+00 : f32
    %511 = vector.broadcast %cst_240 : f32 to vector<2x8x128xf32>
    %512 = arith.cmpf oge, %510, %511 : vector<2x8x128xf32>
    %cst_241 = arith.constant 2.000000e-01 : f32
    %513 = vector.broadcast %cst_241 : f32 to vector<2x8x128xf32>
    %514 = arith.mulf %513, %510 : vector<2x8x128xf32>
    %515 = arith.select %512, %510, %514 : vector<2x8x128xi1>, vector<2x8x128xf32>
    %c0_242 = arith.constant 0 : index
    %c7_243 = arith.constant 7 : index
    %516 = memref.load %arg6[%c0_242, %c7_243] : memref<8x8xf32, #tpu.memory_space<smem>>
    %517 = vector.broadcast %516 : f32 to vector<2x8x128xf32>
    %518 = arith.mulf %109, %517 : vector<2x8x128xf32>
    %c7_244 = arith.constant 7 : index
    %519 = memref.load %arg7[%c7_244] : memref<8xf32, #tpu.memory_space<smem>>
    %520 = vector.broadcast %519 : f32 to vector<2x8x128xf32>
    %521 = arith.addf %518, %520 : vector<2x8x128xf32>
    %c1_245 = arith.constant 1 : index
    %c7_246 = arith.constant 7 : index
    %522 = memref.load %arg6[%c1_245, %c7_246] : memref<8x8xf32, #tpu.memory_space<smem>>
    %523 = vector.broadcast %522 : f32 to vector<2x8x128xf32>
    %524 = arith.mulf %128, %523 : vector<2x8x128xf32>
    %525 = arith.addf %521, %524 : vector<2x8x128xf32>
    %c2_247 = arith.constant 2 : index
    %c7_248 = arith.constant 7 : index
    %526 = memref.load %arg6[%c2_247, %c7_248] : memref<8x8xf32, #tpu.memory_space<smem>>
    %527 = vector.broadcast %526 : f32 to vector<2x8x128xf32>
    %528 = arith.mulf %147, %527 : vector<2x8x128xf32>
    %529 = arith.addf %525, %528 : vector<2x8x128xf32>
    %c3_249 = arith.constant 3 : index
    %c7_250 = arith.constant 7 : index
    %530 = memref.load %arg6[%c3_249, %c7_250] : memref<8x8xf32, #tpu.memory_space<smem>>
    %531 = vector.broadcast %530 : f32 to vector<2x8x128xf32>
    %532 = arith.mulf %166, %531 : vector<2x8x128xf32>
    %533 = arith.addf %529, %532 : vector<2x8x128xf32>
    %c4_251 = arith.constant 4 : index
    %c7_252 = arith.constant 7 : index
    %534 = memref.load %arg6[%c4_251, %c7_252] : memref<8x8xf32, #tpu.memory_space<smem>>
    %535 = vector.broadcast %534 : f32 to vector<2x8x128xf32>
    %536 = arith.mulf %185, %535 : vector<2x8x128xf32>
    %537 = arith.addf %533, %536 : vector<2x8x128xf32>
    %c5_253 = arith.constant 5 : index
    %c7_254 = arith.constant 7 : index
    %538 = memref.load %arg6[%c5_253, %c7_254] : memref<8x8xf32, #tpu.memory_space<smem>>
    %539 = vector.broadcast %538 : f32 to vector<2x8x128xf32>
    %540 = arith.mulf %204, %539 : vector<2x8x128xf32>
    %541 = arith.addf %537, %540 : vector<2x8x128xf32>
    %c6_255 = arith.constant 6 : index
    %c7_256 = arith.constant 7 : index
    %542 = memref.load %arg6[%c6_255, %c7_256] : memref<8x8xf32, #tpu.memory_space<smem>>
    %543 = vector.broadcast %542 : f32 to vector<2x8x128xf32>
    %544 = arith.mulf %223, %543 : vector<2x8x128xf32>
    %545 = arith.addf %541, %544 : vector<2x8x128xf32>
    %c7_257 = arith.constant 7 : index
    %c7_258 = arith.constant 7 : index
    %546 = memref.load %arg6[%c7_257, %c7_258] : memref<8x8xf32, #tpu.memory_space<smem>>
    %547 = vector.broadcast %546 : f32 to vector<2x8x128xf32>
    %548 = arith.mulf %242, %547 : vector<2x8x128xf32>
    %549 = arith.addf %545, %548 : vector<2x8x128xf32>
    %cst_259 = arith.constant 0.000000e+00 : f32
    %550 = vector.broadcast %cst_259 : f32 to vector<2x8x128xf32>
    %551 = arith.cmpf oge, %549, %550 : vector<2x8x128xf32>
    %cst_260 = arith.constant 2.000000e-01 : f32
    %552 = vector.broadcast %cst_260 : f32 to vector<2x8x128xf32>
    %553 = arith.mulf %552, %549 : vector<2x8x128xf32>
    %554 = arith.select %551, %549, %553 : vector<2x8x128xi1>, vector<2x8x128xf32>
    %c0_261 = arith.constant 0 : index
    %c0_262 = arith.constant 0 : index
    %555 = memref.load %arg8[%c0_261, %c0_262] : memref<8x1xf32, #tpu.memory_space<smem>>
    %556 = vector.broadcast %555 : f32 to vector<2x8x128xf32>
    %557 = arith.mulf %281, %556 : vector<2x8x128xf32>
    %c0_263 = arith.constant 0 : index
    %558 = memref.load %arg9[%c0_263] : memref<1xf32, #tpu.memory_space<smem>>
    %559 = vector.broadcast %558 : f32 to vector<2x8x128xf32>
    %560 = arith.addf %557, %559 : vector<2x8x128xf32>
    %c1_264 = arith.constant 1 : index
    %c0_265 = arith.constant 0 : index
    %561 = memref.load %arg8[%c1_264, %c0_265] : memref<8x1xf32, #tpu.memory_space<smem>>
    %562 = vector.broadcast %561 : f32 to vector<2x8x128xf32>
    %563 = arith.mulf %320, %562 : vector<2x8x128xf32>
    %564 = arith.addf %560, %563 : vector<2x8x128xf32>
    %c2_266 = arith.constant 2 : index
    %c0_267 = arith.constant 0 : index
    %565 = memref.load %arg8[%c2_266, %c0_267] : memref<8x1xf32, #tpu.memory_space<smem>>
    %566 = vector.broadcast %565 : f32 to vector<2x8x128xf32>
    %567 = arith.mulf %359, %566 : vector<2x8x128xf32>
    %568 = arith.addf %564, %567 : vector<2x8x128xf32>
    %c3_268 = arith.constant 3 : index
    %c0_269 = arith.constant 0 : index
    %569 = memref.load %arg8[%c3_268, %c0_269] : memref<8x1xf32, #tpu.memory_space<smem>>
    %570 = vector.broadcast %569 : f32 to vector<2x8x128xf32>
    %571 = arith.mulf %398, %570 : vector<2x8x128xf32>
    %572 = arith.addf %568, %571 : vector<2x8x128xf32>
    %c4_270 = arith.constant 4 : index
    %c0_271 = arith.constant 0 : index
    %573 = memref.load %arg8[%c4_270, %c0_271] : memref<8x1xf32, #tpu.memory_space<smem>>
    %574 = vector.broadcast %573 : f32 to vector<2x8x128xf32>
    %575 = arith.mulf %437, %574 : vector<2x8x128xf32>
    %576 = arith.addf %572, %575 : vector<2x8x128xf32>
    %c5_272 = arith.constant 5 : index
    %c0_273 = arith.constant 0 : index
    %577 = memref.load %arg8[%c5_272, %c0_273] : memref<8x1xf32, #tpu.memory_space<smem>>
    %578 = vector.broadcast %577 : f32 to vector<2x8x128xf32>
    %579 = arith.mulf %476, %578 : vector<2x8x128xf32>
    %580 = arith.addf %576, %579 : vector<2x8x128xf32>
    %c6_274 = arith.constant 6 : index
    %c0_275 = arith.constant 0 : index
    %581 = memref.load %arg8[%c6_274, %c0_275] : memref<8x1xf32, #tpu.memory_space<smem>>
    %582 = vector.broadcast %581 : f32 to vector<2x8x128xf32>
    %583 = arith.mulf %515, %582 : vector<2x8x128xf32>
    %584 = arith.addf %580, %583 : vector<2x8x128xf32>
    %c7_276 = arith.constant 7 : index
    %c0_277 = arith.constant 0 : index
    %585 = memref.load %arg8[%c7_276, %c0_277] : memref<8x1xf32, #tpu.memory_space<smem>>
    %586 = vector.broadcast %585 : f32 to vector<2x8x128xf32>
    %587 = arith.mulf %554, %586 : vector<2x8x128xf32>
    %588 = arith.addf %584, %587 : vector<2x8x128xf32>
    %c0_278 = arith.constant 0 : index
    %c0_279 = arith.constant 0 : index
    %589 = memref.load %arg4[%c0_278, %c0_279] : memref<3x8xf32, #tpu.memory_space<smem>>
    %590 = vector.broadcast %589 : f32 to vector<2x8x128xf32>
    %591 = arith.mulf %12, %590 : vector<2x8x128xf32>
    %c0_280 = arith.constant 0 : index
    %592 = memref.load %arg5[%c0_280] : memref<8xf32, #tpu.memory_space<smem>>
    %593 = vector.broadcast %592 : f32 to vector<2x8x128xf32>
    %594 = arith.addf %591, %593 : vector<2x8x128xf32>
    %c1_281 = arith.constant 1 : index
    %c0_282 = arith.constant 0 : index
    %595 = memref.load %arg4[%c1_281, %c0_282] : memref<3x8xf32, #tpu.memory_space<smem>>
    %596 = vector.broadcast %595 : f32 to vector<2x8x128xf32>
    %597 = arith.mulf %14, %596 : vector<2x8x128xf32>
    %598 = arith.addf %594, %597 : vector<2x8x128xf32>
    %c2_283 = arith.constant 2 : index
    %c0_284 = arith.constant 0 : index
    %599 = memref.load %arg4[%c2_283, %c0_284] : memref<3x8xf32, #tpu.memory_space<smem>>
    %600 = vector.broadcast %599 : f32 to vector<2x8x128xf32>
    %601 = arith.mulf %16, %600 : vector<2x8x128xf32>
    %602 = arith.addf %598, %601 : vector<2x8x128xf32>
    %cst_285 = arith.constant 0.000000e+00 : f32
    %603 = vector.broadcast %cst_285 : f32 to vector<2x8x128xf32>
    %604 = arith.cmpf oge, %602, %603 : vector<2x8x128xf32>
    %cst_286 = arith.constant 2.000000e-01 : f32
    %605 = vector.broadcast %cst_286 : f32 to vector<2x8x128xf32>
    %606 = arith.mulf %605, %602 : vector<2x8x128xf32>
    %607 = arith.select %604, %602, %606 : vector<2x8x128xi1>, vector<2x8x128xf32>
    %c0_287 = arith.constant 0 : index
    %c1_288 = arith.constant 1 : index
    %608 = memref.load %arg4[%c0_287, %c1_288] : memref<3x8xf32, #tpu.memory_space<smem>>
    %609 = vector.broadcast %608 : f32 to vector<2x8x128xf32>
    %610 = arith.mulf %12, %609 : vector<2x8x128xf32>
    %c1_289 = arith.constant 1 : index
    %611 = memref.load %arg5[%c1_289] : memref<8xf32, #tpu.memory_space<smem>>
    %612 = vector.broadcast %611 : f32 to vector<2x8x128xf32>
    %613 = arith.addf %610, %612 : vector<2x8x128xf32>
    %c1_290 = arith.constant 1 : index
    %c1_291 = arith.constant 1 : index
    %614 = memref.load %arg4[%c1_290, %c1_291] : memref<3x8xf32, #tpu.memory_space<smem>>
    %615 = vector.broadcast %614 : f32 to vector<2x8x128xf32>
    %616 = arith.mulf %14, %615 : vector<2x8x128xf32>
    %617 = arith.addf %613, %616 : vector<2x8x128xf32>
    %c2_292 = arith.constant 2 : index
    %c1_293 = arith.constant 1 : index
    %618 = memref.load %arg4[%c2_292, %c1_293] : memref<3x8xf32, #tpu.memory_space<smem>>
    %619 = vector.broadcast %618 : f32 to vector<2x8x128xf32>
    %620 = arith.mulf %16, %619 : vector<2x8x128xf32>
    %621 = arith.addf %617, %620 : vector<2x8x128xf32>
    %cst_294 = arith.constant 0.000000e+00 : f32
    %622 = vector.broadcast %cst_294 : f32 to vector<2x8x128xf32>
    %623 = arith.cmpf oge, %621, %622 : vector<2x8x128xf32>
    %cst_295 = arith.constant 2.000000e-01 : f32
    %624 = vector.broadcast %cst_295 : f32 to vector<2x8x128xf32>
    %625 = arith.mulf %624, %621 : vector<2x8x128xf32>
    %626 = arith.select %623, %621, %625 : vector<2x8x128xi1>, vector<2x8x128xf32>
    %c0_296 = arith.constant 0 : index
    %c2_297 = arith.constant 2 : index
    %627 = memref.load %arg4[%c0_296, %c2_297] : memref<3x8xf32, #tpu.memory_space<smem>>
    %628 = vector.broadcast %627 : f32 to vector<2x8x128xf32>
    %629 = arith.mulf %12, %628 : vector<2x8x128xf32>
    %c2_298 = arith.constant 2 : index
    %630 = memref.load %arg5[%c2_298] : memref<8xf32, #tpu.memory_space<smem>>
    %631 = vector.broadcast %630 : f32 to vector<2x8x128xf32>
    %632 = arith.addf %629, %631 : vector<2x8x128xf32>
    %c1_299 = arith.constant 1 : index
    %c2_300 = arith.constant 2 : index
    %633 = memref.load %arg4[%c1_299, %c2_300] : memref<3x8xf32, #tpu.memory_space<smem>>
    %634 = vector.broadcast %633 : f32 to vector<2x8x128xf32>
    %635 = arith.mulf %14, %634 : vector<2x8x128xf32>
    %636 = arith.addf %632, %635 : vector<2x8x128xf32>
    %c2_301 = arith.constant 2 : index
    %c2_302 = arith.constant 2 : index
    %637 = memref.load %arg4[%c2_301, %c2_302] : memref<3x8xf32, #tpu.memory_space<smem>>
    %638 = vector.broadcast %637 : f32 to vector<2x8x128xf32>
    %639 = arith.mulf %16, %638 : vector<2x8x128xf32>
    %640 = arith.addf %636, %639 : vector<2x8x128xf32>
    %cst_303 = arith.constant 0.000000e+00 : f32
    %641 = vector.broadcast %cst_303 : f32 to vector<2x8x128xf32>
    %642 = arith.cmpf oge, %640, %641 : vector<2x8x128xf32>
    %cst_304 = arith.constant 2.000000e-01 : f32
    %643 = vector.broadcast %cst_304 : f32 to vector<2x8x128xf32>
    %644 = arith.mulf %643, %640 : vector<2x8x128xf32>
    %645 = arith.select %642, %640, %644 : vector<2x8x128xi1>, vector<2x8x128xf32>
    %c0_305 = arith.constant 0 : index
    %c3_306 = arith.constant 3 : index
    %646 = memref.load %arg4[%c0_305, %c3_306] : memref<3x8xf32, #tpu.memory_space<smem>>
    %647 = vector.broadcast %646 : f32 to vector<2x8x128xf32>
    %648 = arith.mulf %12, %647 : vector<2x8x128xf32>
    %c3_307 = arith.constant 3 : index
    %649 = memref.load %arg5[%c3_307] : memref<8xf32, #tpu.memory_space<smem>>
    %650 = vector.broadcast %649 : f32 to vector<2x8x128xf32>
    %651 = arith.addf %648, %650 : vector<2x8x128xf32>
    %c1_308 = arith.constant 1 : index
    %c3_309 = arith.constant 3 : index
    %652 = memref.load %arg4[%c1_308, %c3_309] : memref<3x8xf32, #tpu.memory_space<smem>>
    %653 = vector.broadcast %652 : f32 to vector<2x8x128xf32>
    %654 = arith.mulf %14, %653 : vector<2x8x128xf32>
    %655 = arith.addf %651, %654 : vector<2x8x128xf32>
    %c2_310 = arith.constant 2 : index
    %c3_311 = arith.constant 3 : index
    %656 = memref.load %arg4[%c2_310, %c3_311] : memref<3x8xf32, #tpu.memory_space<smem>>
    %657 = vector.broadcast %656 : f32 to vector<2x8x128xf32>
    %658 = arith.mulf %16, %657 : vector<2x8x128xf32>
    %659 = arith.addf %655, %658 : vector<2x8x128xf32>
    %cst_312 = arith.constant 0.000000e+00 : f32
    %660 = vector.broadcast %cst_312 : f32 to vector<2x8x128xf32>
    %661 = arith.cmpf oge, %659, %660 : vector<2x8x128xf32>
    %cst_313 = arith.constant 2.000000e-01 : f32
    %662 = vector.broadcast %cst_313 : f32 to vector<2x8x128xf32>
    %663 = arith.mulf %662, %659 : vector<2x8x128xf32>
    %664 = arith.select %661, %659, %663 : vector<2x8x128xi1>, vector<2x8x128xf32>
    %c0_314 = arith.constant 0 : index
    %c4_315 = arith.constant 4 : index
    %665 = memref.load %arg4[%c0_314, %c4_315] : memref<3x8xf32, #tpu.memory_space<smem>>
    %666 = vector.broadcast %665 : f32 to vector<2x8x128xf32>
    %667 = arith.mulf %12, %666 : vector<2x8x128xf32>
    %c4_316 = arith.constant 4 : index
    %668 = memref.load %arg5[%c4_316] : memref<8xf32, #tpu.memory_space<smem>>
    %669 = vector.broadcast %668 : f32 to vector<2x8x128xf32>
    %670 = arith.addf %667, %669 : vector<2x8x128xf32>
    %c1_317 = arith.constant 1 : index
    %c4_318 = arith.constant 4 : index
    %671 = memref.load %arg4[%c1_317, %c4_318] : memref<3x8xf32, #tpu.memory_space<smem>>
    %672 = vector.broadcast %671 : f32 to vector<2x8x128xf32>
    %673 = arith.mulf %14, %672 : vector<2x8x128xf32>
    %674 = arith.addf %670, %673 : vector<2x8x128xf32>
    %c2_319 = arith.constant 2 : index
    %c4_320 = arith.constant 4 : index
    %675 = memref.load %arg4[%c2_319, %c4_320] : memref<3x8xf32, #tpu.memory_space<smem>>
    %676 = vector.broadcast %675 : f32 to vector<2x8x128xf32>
    %677 = arith.mulf %16, %676 : vector<2x8x128xf32>
    %678 = arith.addf %674, %677 : vector<2x8x128xf32>
    %cst_321 = arith.constant 0.000000e+00 : f32
    %679 = vector.broadcast %cst_321 : f32 to vector<2x8x128xf32>
    %680 = arith.cmpf oge, %678, %679 : vector<2x8x128xf32>
    %cst_322 = arith.constant 2.000000e-01 : f32
    %681 = vector.broadcast %cst_322 : f32 to vector<2x8x128xf32>
    %682 = arith.mulf %681, %678 : vector<2x8x128xf32>
    %683 = arith.select %680, %678, %682 : vector<2x8x128xi1>, vector<2x8x128xf32>
    %c0_323 = arith.constant 0 : index
    %c5_324 = arith.constant 5 : index
    %684 = memref.load %arg4[%c0_323, %c5_324] : memref<3x8xf32, #tpu.memory_space<smem>>
    %685 = vector.broadcast %684 : f32 to vector<2x8x128xf32>
    %686 = arith.mulf %12, %685 : vector<2x8x128xf32>
    %c5_325 = arith.constant 5 : index
    %687 = memref.load %arg5[%c5_325] : memref<8xf32, #tpu.memory_space<smem>>
    %688 = vector.broadcast %687 : f32 to vector<2x8x128xf32>
    %689 = arith.addf %686, %688 : vector<2x8x128xf32>
    %c1_326 = arith.constant 1 : index
    %c5_327 = arith.constant 5 : index
    %690 = memref.load %arg4[%c1_326, %c5_327] : memref<3x8xf32, #tpu.memory_space<smem>>
    %691 = vector.broadcast %690 : f32 to vector<2x8x128xf32>
    %692 = arith.mulf %14, %691 : vector<2x8x128xf32>
    %693 = arith.addf %689, %692 : vector<2x8x128xf32>
    %c2_328 = arith.constant 2 : index
    %c5_329 = arith.constant 5 : index
    %694 = memref.load %arg4[%c2_328, %c5_329] : memref<3x8xf32, #tpu.memory_space<smem>>
    %695 = vector.broadcast %694 : f32 to vector<2x8x128xf32>
    %696 = arith.mulf %16, %695 : vector<2x8x128xf32>
    %697 = arith.addf %693, %696 : vector<2x8x128xf32>
    %cst_330 = arith.constant 0.000000e+00 : f32
    %698 = vector.broadcast %cst_330 : f32 to vector<2x8x128xf32>
    %699 = arith.cmpf oge, %697, %698 : vector<2x8x128xf32>
    %cst_331 = arith.constant 2.000000e-01 : f32
    %700 = vector.broadcast %cst_331 : f32 to vector<2x8x128xf32>
    %701 = arith.mulf %700, %697 : vector<2x8x128xf32>
    %702 = arith.select %699, %697, %701 : vector<2x8x128xi1>, vector<2x8x128xf32>
    %c0_332 = arith.constant 0 : index
    %c6_333 = arith.constant 6 : index
    %703 = memref.load %arg4[%c0_332, %c6_333] : memref<3x8xf32, #tpu.memory_space<smem>>
    %704 = vector.broadcast %703 : f32 to vector<2x8x128xf32>
    %705 = arith.mulf %12, %704 : vector<2x8x128xf32>
    %c6_334 = arith.constant 6 : index
    %706 = memref.load %arg5[%c6_334] : memref<8xf32, #tpu.memory_space<smem>>
    %707 = vector.broadcast %706 : f32 to vector<2x8x128xf32>
    %708 = arith.addf %705, %707 : vector<2x8x128xf32>
    %c1_335 = arith.constant 1 : index
    %c6_336 = arith.constant 6 : index
    %709 = memref.load %arg4[%c1_335, %c6_336] : memref<3x8xf32, #tpu.memory_space<smem>>
    %710 = vector.broadcast %709 : f32 to vector<2x8x128xf32>
    %711 = arith.mulf %14, %710 : vector<2x8x128xf32>
    %712 = arith.addf %708, %711 : vector<2x8x128xf32>
    %c2_337 = arith.constant 2 : index
    %c6_338 = arith.constant 6 : index
    %713 = memref.load %arg4[%c2_337, %c6_338] : memref<3x8xf32, #tpu.memory_space<smem>>
    %714 = vector.broadcast %713 : f32 to vector<2x8x128xf32>
    %715 = arith.mulf %16, %714 : vector<2x8x128xf32>
    %716 = arith.addf %712, %715 : vector<2x8x128xf32>
    %cst_339 = arith.constant 0.000000e+00 : f32
    %717 = vector.broadcast %cst_339 : f32 to vector<2x8x128xf32>
    %718 = arith.cmpf oge, %716, %717 : vector<2x8x128xf32>
    %cst_340 = arith.constant 2.000000e-01 : f32
    %719 = vector.broadcast %cst_340 : f32 to vector<2x8x128xf32>
    %720 = arith.mulf %719, %716 : vector<2x8x128xf32>
    %721 = arith.select %718, %716, %720 : vector<2x8x128xi1>, vector<2x8x128xf32>
    %c0_341 = arith.constant 0 : index
    %c7_342 = arith.constant 7 : index
    %722 = memref.load %arg4[%c0_341, %c7_342] : memref<3x8xf32, #tpu.memory_space<smem>>
    %723 = vector.broadcast %722 : f32 to vector<2x8x128xf32>
    %724 = arith.mulf %12, %723 : vector<2x8x128xf32>
    %c7_343 = arith.constant 7 : index
    %725 = memref.load %arg5[%c7_343] : memref<8xf32, #tpu.memory_space<smem>>
    %726 = vector.broadcast %725 : f32 to vector<2x8x128xf32>
    %727 = arith.addf %724, %726 : vector<2x8x128xf32>
    %c1_344 = arith.constant 1 : index
    %c7_345 = arith.constant 7 : index
    %728 = memref.load %arg4[%c1_344, %c7_345] : memref<3x8xf32, #tpu.memory_space<smem>>
    %729 = vector.broadcast %728 : f32 to vector<2x8x128xf32>
    %730 = arith.mulf %14, %729 : vector<2x8x128xf32>
    %731 = arith.addf %727, %730 : vector<2x8x128xf32>
    %c2_346 = arith.constant 2 : index
    %c7_347 = arith.constant 7 : index
    %732 = memref.load %arg4[%c2_346, %c7_347] : memref<3x8xf32, #tpu.memory_space<smem>>
    %733 = vector.broadcast %732 : f32 to vector<2x8x128xf32>
    %734 = arith.mulf %16, %733 : vector<2x8x128xf32>
    %735 = arith.addf %731, %734 : vector<2x8x128xf32>
    %cst_348 = arith.constant 0.000000e+00 : f32
    %736 = vector.broadcast %cst_348 : f32 to vector<2x8x128xf32>
    %737 = arith.cmpf oge, %735, %736 : vector<2x8x128xf32>
    %cst_349 = arith.constant 2.000000e-01 : f32
    %738 = vector.broadcast %cst_349 : f32 to vector<2x8x128xf32>
    %739 = arith.mulf %738, %735 : vector<2x8x128xf32>
    %740 = arith.select %737, %735, %739 : vector<2x8x128xi1>, vector<2x8x128xf32>
    %c0_350 = arith.constant 0 : index
    %c0_351 = arith.constant 0 : index
    %741 = memref.load %arg6[%c0_350, %c0_351] : memref<8x8xf32, #tpu.memory_space<smem>>
    %742 = vector.broadcast %741 : f32 to vector<2x8x128xf32>
    %743 = arith.mulf %607, %742 : vector<2x8x128xf32>
    %c0_352 = arith.constant 0 : index
    %744 = memref.load %arg7[%c0_352] : memref<8xf32, #tpu.memory_space<smem>>
    %745 = vector.broadcast %744 : f32 to vector<2x8x128xf32>
    %746 = arith.addf %743, %745 : vector<2x8x128xf32>
    %c1_353 = arith.constant 1 : index
    %c0_354 = arith.constant 0 : index
    %747 = memref.load %arg6[%c1_353, %c0_354] : memref<8x8xf32, #tpu.memory_space<smem>>
    %748 = vector.broadcast %747 : f32 to vector<2x8x128xf32>
    %749 = arith.mulf %626, %748 : vector<2x8x128xf32>
    %750 = arith.addf %746, %749 : vector<2x8x128xf32>
    %c2_355 = arith.constant 2 : index
    %c0_356 = arith.constant 0 : index
    %751 = memref.load %arg6[%c2_355, %c0_356] : memref<8x8xf32, #tpu.memory_space<smem>>
    %752 = vector.broadcast %751 : f32 to vector<2x8x128xf32>
    %753 = arith.mulf %645, %752 : vector<2x8x128xf32>
    %754 = arith.addf %750, %753 : vector<2x8x128xf32>
    %c3_357 = arith.constant 3 : index
    %c0_358 = arith.constant 0 : index
    %755 = memref.load %arg6[%c3_357, %c0_358] : memref<8x8xf32, #tpu.memory_space<smem>>
    %756 = vector.broadcast %755 : f32 to vector<2x8x128xf32>
    %757 = arith.mulf %664, %756 : vector<2x8x128xf32>
    %758 = arith.addf %754, %757 : vector<2x8x128xf32>
    %c4_359 = arith.constant 4 : index
    %c0_360 = arith.constant 0 : index
    %759 = memref.load %arg6[%c4_359, %c0_360] : memref<8x8xf32, #tpu.memory_space<smem>>
    %760 = vector.broadcast %759 : f32 to vector<2x8x128xf32>
    %761 = arith.mulf %683, %760 : vector<2x8x128xf32>
    %762 = arith.addf %758, %761 : vector<2x8x128xf32>
    %c5_361 = arith.constant 5 : index
    %c0_362 = arith.constant 0 : index
    %763 = memref.load %arg6[%c5_361, %c0_362] : memref<8x8xf32, #tpu.memory_space<smem>>
    %764 = vector.broadcast %763 : f32 to vector<2x8x128xf32>
    %765 = arith.mulf %702, %764 : vector<2x8x128xf32>
    %766 = arith.addf %762, %765 : vector<2x8x128xf32>
    %c6_363 = arith.constant 6 : index
    %c0_364 = arith.constant 0 : index
    %767 = memref.load %arg6[%c6_363, %c0_364] : memref<8x8xf32, #tpu.memory_space<smem>>
    %768 = vector.broadcast %767 : f32 to vector<2x8x128xf32>
    %769 = arith.mulf %721, %768 : vector<2x8x128xf32>
    %770 = arith.addf %766, %769 : vector<2x8x128xf32>
    %c7_365 = arith.constant 7 : index
    %c0_366 = arith.constant 0 : index
    %771 = memref.load %arg6[%c7_365, %c0_366] : memref<8x8xf32, #tpu.memory_space<smem>>
    %772 = vector.broadcast %771 : f32 to vector<2x8x128xf32>
    %773 = arith.mulf %740, %772 : vector<2x8x128xf32>
    %774 = arith.addf %770, %773 : vector<2x8x128xf32>
    %cst_367 = arith.constant 0.000000e+00 : f32
    %775 = vector.broadcast %cst_367 : f32 to vector<2x8x128xf32>
    %776 = arith.cmpf oge, %774, %775 : vector<2x8x128xf32>
    %cst_368 = arith.constant 2.000000e-01 : f32
    %777 = vector.broadcast %cst_368 : f32 to vector<2x8x128xf32>
    %778 = arith.mulf %777, %774 : vector<2x8x128xf32>
    %779 = arith.select %776, %774, %778 : vector<2x8x128xi1>, vector<2x8x128xf32>
    %c0_369 = arith.constant 0 : index
    %c1_370 = arith.constant 1 : index
    %780 = memref.load %arg6[%c0_369, %c1_370] : memref<8x8xf32, #tpu.memory_space<smem>>
    %781 = vector.broadcast %780 : f32 to vector<2x8x128xf32>
    %782 = arith.mulf %607, %781 : vector<2x8x128xf32>
    %c1_371 = arith.constant 1 : index
    %783 = memref.load %arg7[%c1_371] : memref<8xf32, #tpu.memory_space<smem>>
    %784 = vector.broadcast %783 : f32 to vector<2x8x128xf32>
    %785 = arith.addf %782, %784 : vector<2x8x128xf32>
    %c1_372 = arith.constant 1 : index
    %c1_373 = arith.constant 1 : index
    %786 = memref.load %arg6[%c1_372, %c1_373] : memref<8x8xf32, #tpu.memory_space<smem>>
    %787 = vector.broadcast %786 : f32 to vector<2x8x128xf32>
    %788 = arith.mulf %626, %787 : vector<2x8x128xf32>
    %789 = arith.addf %785, %788 : vector<2x8x128xf32>
    %c2_374 = arith.constant 2 : index
    %c1_375 = arith.constant 1 : index
    %790 = memref.load %arg6[%c2_374, %c1_375] : memref<8x8xf32, #tpu.memory_space<smem>>
    %791 = vector.broadcast %790 : f32 to vector<2x8x128xf32>
    %792 = arith.mulf %645, %791 : vector<2x8x128xf32>
    %793 = arith.addf %789, %792 : vector<2x8x128xf32>
    %c3_376 = arith.constant 3 : index
    %c1_377 = arith.constant 1 : index
    %794 = memref.load %arg6[%c3_376, %c1_377] : memref<8x8xf32, #tpu.memory_space<smem>>
    %795 = vector.broadcast %794 : f32 to vector<2x8x128xf32>
    %796 = arith.mulf %664, %795 : vector<2x8x128xf32>
    %797 = arith.addf %793, %796 : vector<2x8x128xf32>
    %c4_378 = arith.constant 4 : index
    %c1_379 = arith.constant 1 : index
    %798 = memref.load %arg6[%c4_378, %c1_379] : memref<8x8xf32, #tpu.memory_space<smem>>
    %799 = vector.broadcast %798 : f32 to vector<2x8x128xf32>
    %800 = arith.mulf %683, %799 : vector<2x8x128xf32>
    %801 = arith.addf %797, %800 : vector<2x8x128xf32>
    %c5_380 = arith.constant 5 : index
    %c1_381 = arith.constant 1 : index
    %802 = memref.load %arg6[%c5_380, %c1_381] : memref<8x8xf32, #tpu.memory_space<smem>>
    %803 = vector.broadcast %802 : f32 to vector<2x8x128xf32>
    %804 = arith.mulf %702, %803 : vector<2x8x128xf32>
    %805 = arith.addf %801, %804 : vector<2x8x128xf32>
    %c6_382 = arith.constant 6 : index
    %c1_383 = arith.constant 1 : index
    %806 = memref.load %arg6[%c6_382, %c1_383] : memref<8x8xf32, #tpu.memory_space<smem>>
    %807 = vector.broadcast %806 : f32 to vector<2x8x128xf32>
    %808 = arith.mulf %721, %807 : vector<2x8x128xf32>
    %809 = arith.addf %805, %808 : vector<2x8x128xf32>
    %c7_384 = arith.constant 7 : index
    %c1_385 = arith.constant 1 : index
    %810 = memref.load %arg6[%c7_384, %c1_385] : memref<8x8xf32, #tpu.memory_space<smem>>
    %811 = vector.broadcast %810 : f32 to vector<2x8x128xf32>
    %812 = arith.mulf %740, %811 : vector<2x8x128xf32>
    %813 = arith.addf %809, %812 : vector<2x8x128xf32>
    %cst_386 = arith.constant 0.000000e+00 : f32
    %814 = vector.broadcast %cst_386 : f32 to vector<2x8x128xf32>
    %815 = arith.cmpf oge, %813, %814 : vector<2x8x128xf32>
    %cst_387 = arith.constant 2.000000e-01 : f32
    %816 = vector.broadcast %cst_387 : f32 to vector<2x8x128xf32>
    %817 = arith.mulf %816, %813 : vector<2x8x128xf32>
    %818 = arith.select %815, %813, %817 : vector<2x8x128xi1>, vector<2x8x128xf32>
    %c0_388 = arith.constant 0 : index
    %c2_389 = arith.constant 2 : index
    %819 = memref.load %arg6[%c0_388, %c2_389] : memref<8x8xf32, #tpu.memory_space<smem>>
    %820 = vector.broadcast %819 : f32 to vector<2x8x128xf32>
    %821 = arith.mulf %607, %820 : vector<2x8x128xf32>
    %c2_390 = arith.constant 2 : index
    %822 = memref.load %arg7[%c2_390] : memref<8xf32, #tpu.memory_space<smem>>
    %823 = vector.broadcast %822 : f32 to vector<2x8x128xf32>
    %824 = arith.addf %821, %823 : vector<2x8x128xf32>
    %c1_391 = arith.constant 1 : index
    %c2_392 = arith.constant 2 : index
    %825 = memref.load %arg6[%c1_391, %c2_392] : memref<8x8xf32, #tpu.memory_space<smem>>
    %826 = vector.broadcast %825 : f32 to vector<2x8x128xf32>
    %827 = arith.mulf %626, %826 : vector<2x8x128xf32>
    %828 = arith.addf %824, %827 : vector<2x8x128xf32>
    %c2_393 = arith.constant 2 : index
    %c2_394 = arith.constant 2 : index
    %829 = memref.load %arg6[%c2_393, %c2_394] : memref<8x8xf32, #tpu.memory_space<smem>>
    %830 = vector.broadcast %829 : f32 to vector<2x8x128xf32>
    %831 = arith.mulf %645, %830 : vector<2x8x128xf32>
    %832 = arith.addf %828, %831 : vector<2x8x128xf32>
    %c3_395 = arith.constant 3 : index
    %c2_396 = arith.constant 2 : index
    %833 = memref.load %arg6[%c3_395, %c2_396] : memref<8x8xf32, #tpu.memory_space<smem>>
    %834 = vector.broadcast %833 : f32 to vector<2x8x128xf32>
    %835 = arith.mulf %664, %834 : vector<2x8x128xf32>
    %836 = arith.addf %832, %835 : vector<2x8x128xf32>
    %c4_397 = arith.constant 4 : index
    %c2_398 = arith.constant 2 : index
    %837 = memref.load %arg6[%c4_397, %c2_398] : memref<8x8xf32, #tpu.memory_space<smem>>
    %838 = vector.broadcast %837 : f32 to vector<2x8x128xf32>
    %839 = arith.mulf %683, %838 : vector<2x8x128xf32>
    %840 = arith.addf %836, %839 : vector<2x8x128xf32>
    %c5_399 = arith.constant 5 : index
    %c2_400 = arith.constant 2 : index
    %841 = memref.load %arg6[%c5_399, %c2_400] : memref<8x8xf32, #tpu.memory_space<smem>>
    %842 = vector.broadcast %841 : f32 to vector<2x8x128xf32>
    %843 = arith.mulf %702, %842 : vector<2x8x128xf32>
    %844 = arith.addf %840, %843 : vector<2x8x128xf32>
    %c6_401 = arith.constant 6 : index
    %c2_402 = arith.constant 2 : index
    %845 = memref.load %arg6[%c6_401, %c2_402] : memref<8x8xf32, #tpu.memory_space<smem>>
    %846 = vector.broadcast %845 : f32 to vector<2x8x128xf32>
    %847 = arith.mulf %721, %846 : vector<2x8x128xf32>
    %848 = arith.addf %844, %847 : vector<2x8x128xf32>
    %c7_403 = arith.constant 7 : index
    %c2_404 = arith.constant 2 : index
    %849 = memref.load %arg6[%c7_403, %c2_404] : memref<8x8xf32, #tpu.memory_space<smem>>
    %850 = vector.broadcast %849 : f32 to vector<2x8x128xf32>
    %851 = arith.mulf %740, %850 : vector<2x8x128xf32>
    %852 = arith.addf %848, %851 : vector<2x8x128xf32>
    %cst_405 = arith.constant 0.000000e+00 : f32
    %853 = vector.broadcast %cst_405 : f32 to vector<2x8x128xf32>
    %854 = arith.cmpf oge, %852, %853 : vector<2x8x128xf32>
    %cst_406 = arith.constant 2.000000e-01 : f32
    %855 = vector.broadcast %cst_406 : f32 to vector<2x8x128xf32>
    %856 = arith.mulf %855, %852 : vector<2x8x128xf32>
    %857 = arith.select %854, %852, %856 : vector<2x8x128xi1>, vector<2x8x128xf32>
    %c0_407 = arith.constant 0 : index
    %c3_408 = arith.constant 3 : index
    %858 = memref.load %arg6[%c0_407, %c3_408] : memref<8x8xf32, #tpu.memory_space<smem>>
    %859 = vector.broadcast %858 : f32 to vector<2x8x128xf32>
    %860 = arith.mulf %607, %859 : vector<2x8x128xf32>
    %c3_409 = arith.constant 3 : index
    %861 = memref.load %arg7[%c3_409] : memref<8xf32, #tpu.memory_space<smem>>
    %862 = vector.broadcast %861 : f32 to vector<2x8x128xf32>
    %863 = arith.addf %860, %862 : vector<2x8x128xf32>
    %c1_410 = arith.constant 1 : index
    %c3_411 = arith.constant 3 : index
    %864 = memref.load %arg6[%c1_410, %c3_411] : memref<8x8xf32, #tpu.memory_space<smem>>
    %865 = vector.broadcast %864 : f32 to vector<2x8x128xf32>
    %866 = arith.mulf %626, %865 : vector<2x8x128xf32>
    %867 = arith.addf %863, %866 : vector<2x8x128xf32>
    %c2_412 = arith.constant 2 : index
    %c3_413 = arith.constant 3 : index
    %868 = memref.load %arg6[%c2_412, %c3_413] : memref<8x8xf32, #tpu.memory_space<smem>>
    %869 = vector.broadcast %868 : f32 to vector<2x8x128xf32>
    %870 = arith.mulf %645, %869 : vector<2x8x128xf32>
    %871 = arith.addf %867, %870 : vector<2x8x128xf32>
    %c3_414 = arith.constant 3 : index
    %c3_415 = arith.constant 3 : index
    %872 = memref.load %arg6[%c3_414, %c3_415] : memref<8x8xf32, #tpu.memory_space<smem>>
    %873 = vector.broadcast %872 : f32 to vector<2x8x128xf32>
    %874 = arith.mulf %664, %873 : vector<2x8x128xf32>
    %875 = arith.addf %871, %874 : vector<2x8x128xf32>
    %c4_416 = arith.constant 4 : index
    %c3_417 = arith.constant 3 : index
    %876 = memref.load %arg6[%c4_416, %c3_417] : memref<8x8xf32, #tpu.memory_space<smem>>
    %877 = vector.broadcast %876 : f32 to vector<2x8x128xf32>
    %878 = arith.mulf %683, %877 : vector<2x8x128xf32>
    %879 = arith.addf %875, %878 : vector<2x8x128xf32>
    %c5_418 = arith.constant 5 : index
    %c3_419 = arith.constant 3 : index
    %880 = memref.load %arg6[%c5_418, %c3_419] : memref<8x8xf32, #tpu.memory_space<smem>>
    %881 = vector.broadcast %880 : f32 to vector<2x8x128xf32>
    %882 = arith.mulf %702, %881 : vector<2x8x128xf32>
    %883 = arith.addf %879, %882 : vector<2x8x128xf32>
    %c6_420 = arith.constant 6 : index
    %c3_421 = arith.constant 3 : index
    %884 = memref.load %arg6[%c6_420, %c3_421] : memref<8x8xf32, #tpu.memory_space<smem>>
    %885 = vector.broadcast %884 : f32 to vector<2x8x128xf32>
    %886 = arith.mulf %721, %885 : vector<2x8x128xf32>
    %887 = arith.addf %883, %886 : vector<2x8x128xf32>
    %c7_422 = arith.constant 7 : index
    %c3_423 = arith.constant 3 : index
    %888 = memref.load %arg6[%c7_422, %c3_423] : memref<8x8xf32, #tpu.memory_space<smem>>
    %889 = vector.broadcast %888 : f32 to vector<2x8x128xf32>
    %890 = arith.mulf %740, %889 : vector<2x8x128xf32>
    %891 = arith.addf %887, %890 : vector<2x8x128xf32>
    %cst_424 = arith.constant 0.000000e+00 : f32
    %892 = vector.broadcast %cst_424 : f32 to vector<2x8x128xf32>
    %893 = arith.cmpf oge, %891, %892 : vector<2x8x128xf32>
    %cst_425 = arith.constant 2.000000e-01 : f32
    %894 = vector.broadcast %cst_425 : f32 to vector<2x8x128xf32>
    %895 = arith.mulf %894, %891 : vector<2x8x128xf32>
    %896 = arith.select %893, %891, %895 : vector<2x8x128xi1>, vector<2x8x128xf32>
    %c0_426 = arith.constant 0 : index
    %c4_427 = arith.constant 4 : index
    %897 = memref.load %arg6[%c0_426, %c4_427] : memref<8x8xf32, #tpu.memory_space<smem>>
    %898 = vector.broadcast %897 : f32 to vector<2x8x128xf32>
    %899 = arith.mulf %607, %898 : vector<2x8x128xf32>
    %c4_428 = arith.constant 4 : index
    %900 = memref.load %arg7[%c4_428] : memref<8xf32, #tpu.memory_space<smem>>
    %901 = vector.broadcast %900 : f32 to vector<2x8x128xf32>
    %902 = arith.addf %899, %901 : vector<2x8x128xf32>
    %c1_429 = arith.constant 1 : index
    %c4_430 = arith.constant 4 : index
    %903 = memref.load %arg6[%c1_429, %c4_430] : memref<8x8xf32, #tpu.memory_space<smem>>
    %904 = vector.broadcast %903 : f32 to vector<2x8x128xf32>
    %905 = arith.mulf %626, %904 : vector<2x8x128xf32>
    %906 = arith.addf %902, %905 : vector<2x8x128xf32>
    %c2_431 = arith.constant 2 : index
    %c4_432 = arith.constant 4 : index
    %907 = memref.load %arg6[%c2_431, %c4_432] : memref<8x8xf32, #tpu.memory_space<smem>>
    %908 = vector.broadcast %907 : f32 to vector<2x8x128xf32>
    %909 = arith.mulf %645, %908 : vector<2x8x128xf32>
    %910 = arith.addf %906, %909 : vector<2x8x128xf32>
    %c3_433 = arith.constant 3 : index
    %c4_434 = arith.constant 4 : index
    %911 = memref.load %arg6[%c3_433, %c4_434] : memref<8x8xf32, #tpu.memory_space<smem>>
    %912 = vector.broadcast %911 : f32 to vector<2x8x128xf32>
    %913 = arith.mulf %664, %912 : vector<2x8x128xf32>
    %914 = arith.addf %910, %913 : vector<2x8x128xf32>
    %c4_435 = arith.constant 4 : index
    %c4_436 = arith.constant 4 : index
    %915 = memref.load %arg6[%c4_435, %c4_436] : memref<8x8xf32, #tpu.memory_space<smem>>
    %916 = vector.broadcast %915 : f32 to vector<2x8x128xf32>
    %917 = arith.mulf %683, %916 : vector<2x8x128xf32>
    %918 = arith.addf %914, %917 : vector<2x8x128xf32>
    %c5_437 = arith.constant 5 : index
    %c4_438 = arith.constant 4 : index
    %919 = memref.load %arg6[%c5_437, %c4_438] : memref<8x8xf32, #tpu.memory_space<smem>>
    %920 = vector.broadcast %919 : f32 to vector<2x8x128xf32>
    %921 = arith.mulf %702, %920 : vector<2x8x128xf32>
    %922 = arith.addf %918, %921 : vector<2x8x128xf32>
    %c6_439 = arith.constant 6 : index
    %c4_440 = arith.constant 4 : index
    %923 = memref.load %arg6[%c6_439, %c4_440] : memref<8x8xf32, #tpu.memory_space<smem>>
    %924 = vector.broadcast %923 : f32 to vector<2x8x128xf32>
    %925 = arith.mulf %721, %924 : vector<2x8x128xf32>
    %926 = arith.addf %922, %925 : vector<2x8x128xf32>
    %c7_441 = arith.constant 7 : index
    %c4_442 = arith.constant 4 : index
    %927 = memref.load %arg6[%c7_441, %c4_442] : memref<8x8xf32, #tpu.memory_space<smem>>
    %928 = vector.broadcast %927 : f32 to vector<2x8x128xf32>
    %929 = arith.mulf %740, %928 : vector<2x8x128xf32>
    %930 = arith.addf %926, %929 : vector<2x8x128xf32>
    %cst_443 = arith.constant 0.000000e+00 : f32
    %931 = vector.broadcast %cst_443 : f32 to vector<2x8x128xf32>
    %932 = arith.cmpf oge, %930, %931 : vector<2x8x128xf32>
    %cst_444 = arith.constant 2.000000e-01 : f32
    %933 = vector.broadcast %cst_444 : f32 to vector<2x8x128xf32>
    %934 = arith.mulf %933, %930 : vector<2x8x128xf32>
    %935 = arith.select %932, %930, %934 : vector<2x8x128xi1>, vector<2x8x128xf32>
    %c0_445 = arith.constant 0 : index
    %c5_446 = arith.constant 5 : index
    %936 = memref.load %arg6[%c0_445, %c5_446] : memref<8x8xf32, #tpu.memory_space<smem>>
    %937 = vector.broadcast %936 : f32 to vector<2x8x128xf32>
    %938 = arith.mulf %607, %937 : vector<2x8x128xf32>
    %c5_447 = arith.constant 5 : index
    %939 = memref.load %arg7[%c5_447] : memref<8xf32, #tpu.memory_space<smem>>
    %940 = vector.broadcast %939 : f32 to vector<2x8x128xf32>
    %941 = arith.addf %938, %940 : vector<2x8x128xf32>
    %c1_448 = arith.constant 1 : index
    %c5_449 = arith.constant 5 : index
    %942 = memref.load %arg6[%c1_448, %c5_449] : memref<8x8xf32, #tpu.memory_space<smem>>
    %943 = vector.broadcast %942 : f32 to vector<2x8x128xf32>
    %944 = arith.mulf %626, %943 : vector<2x8x128xf32>
    %945 = arith.addf %941, %944 : vector<2x8x128xf32>
    %c2_450 = arith.constant 2 : index
    %c5_451 = arith.constant 5 : index
    %946 = memref.load %arg6[%c2_450, %c5_451] : memref<8x8xf32, #tpu.memory_space<smem>>
    %947 = vector.broadcast %946 : f32 to vector<2x8x128xf32>
    %948 = arith.mulf %645, %947 : vector<2x8x128xf32>
    %949 = arith.addf %945, %948 : vector<2x8x128xf32>
    %c3_452 = arith.constant 3 : index
    %c5_453 = arith.constant 5 : index
    %950 = memref.load %arg6[%c3_452, %c5_453] : memref<8x8xf32, #tpu.memory_space<smem>>
    %951 = vector.broadcast %950 : f32 to vector<2x8x128xf32>
    %952 = arith.mulf %664, %951 : vector<2x8x128xf32>
    %953 = arith.addf %949, %952 : vector<2x8x128xf32>
    %c4_454 = arith.constant 4 : index
    %c5_455 = arith.constant 5 : index
    %954 = memref.load %arg6[%c4_454, %c5_455] : memref<8x8xf32, #tpu.memory_space<smem>>
    %955 = vector.broadcast %954 : f32 to vector<2x8x128xf32>
    %956 = arith.mulf %683, %955 : vector<2x8x128xf32>
    %957 = arith.addf %953, %956 : vector<2x8x128xf32>
    %c5_456 = arith.constant 5 : index
    %c5_457 = arith.constant 5 : index
    %958 = memref.load %arg6[%c5_456, %c5_457] : memref<8x8xf32, #tpu.memory_space<smem>>
    %959 = vector.broadcast %958 : f32 to vector<2x8x128xf32>
    %960 = arith.mulf %702, %959 : vector<2x8x128xf32>
    %961 = arith.addf %957, %960 : vector<2x8x128xf32>
    %c6_458 = arith.constant 6 : index
    %c5_459 = arith.constant 5 : index
    %962 = memref.load %arg6[%c6_458, %c5_459] : memref<8x8xf32, #tpu.memory_space<smem>>
    %963 = vector.broadcast %962 : f32 to vector<2x8x128xf32>
    %964 = arith.mulf %721, %963 : vector<2x8x128xf32>
    %965 = arith.addf %961, %964 : vector<2x8x128xf32>
    %c7_460 = arith.constant 7 : index
    %c5_461 = arith.constant 5 : index
    %966 = memref.load %arg6[%c7_460, %c5_461] : memref<8x8xf32, #tpu.memory_space<smem>>
    %967 = vector.broadcast %966 : f32 to vector<2x8x128xf32>
    %968 = arith.mulf %740, %967 : vector<2x8x128xf32>
    %969 = arith.addf %965, %968 : vector<2x8x128xf32>
    %cst_462 = arith.constant 0.000000e+00 : f32
    %970 = vector.broadcast %cst_462 : f32 to vector<2x8x128xf32>
    %971 = arith.cmpf oge, %969, %970 : vector<2x8x128xf32>
    %cst_463 = arith.constant 2.000000e-01 : f32
    %972 = vector.broadcast %cst_463 : f32 to vector<2x8x128xf32>
    %973 = arith.mulf %972, %969 : vector<2x8x128xf32>
    %974 = arith.select %971, %969, %973 : vector<2x8x128xi1>, vector<2x8x128xf32>
    %c0_464 = arith.constant 0 : index
    %c6_465 = arith.constant 6 : index
    %975 = memref.load %arg6[%c0_464, %c6_465] : memref<8x8xf32, #tpu.memory_space<smem>>
    %976 = vector.broadcast %975 : f32 to vector<2x8x128xf32>
    %977 = arith.mulf %607, %976 : vector<2x8x128xf32>
    %c6_466 = arith.constant 6 : index
    %978 = memref.load %arg7[%c6_466] : memref<8xf32, #tpu.memory_space<smem>>
    %979 = vector.broadcast %978 : f32 to vector<2x8x128xf32>
    %980 = arith.addf %977, %979 : vector<2x8x128xf32>
    %c1_467 = arith.constant 1 : index
    %c6_468 = arith.constant 6 : index
    %981 = memref.load %arg6[%c1_467, %c6_468] : memref<8x8xf32, #tpu.memory_space<smem>>
    %982 = vector.broadcast %981 : f32 to vector<2x8x128xf32>
    %983 = arith.mulf %626, %982 : vector<2x8x128xf32>
    %984 = arith.addf %980, %983 : vector<2x8x128xf32>
    %c2_469 = arith.constant 2 : index
    %c6_470 = arith.constant 6 : index
    %985 = memref.load %arg6[%c2_469, %c6_470] : memref<8x8xf32, #tpu.memory_space<smem>>
    %986 = vector.broadcast %985 : f32 to vector<2x8x128xf32>
    %987 = arith.mulf %645, %986 : vector<2x8x128xf32>
    %988 = arith.addf %984, %987 : vector<2x8x128xf32>
    %c3_471 = arith.constant 3 : index
    %c6_472 = arith.constant 6 : index
    %989 = memref.load %arg6[%c3_471, %c6_472] : memref<8x8xf32, #tpu.memory_space<smem>>
    %990 = vector.broadcast %989 : f32 to vector<2x8x128xf32>
    %991 = arith.mulf %664, %990 : vector<2x8x128xf32>
    %992 = arith.addf %988, %991 : vector<2x8x128xf32>
    %c4_473 = arith.constant 4 : index
    %c6_474 = arith.constant 6 : index
    %993 = memref.load %arg6[%c4_473, %c6_474] : memref<8x8xf32, #tpu.memory_space<smem>>
    %994 = vector.broadcast %993 : f32 to vector<2x8x128xf32>
    %995 = arith.mulf %683, %994 : vector<2x8x128xf32>
    %996 = arith.addf %992, %995 : vector<2x8x128xf32>
    %c5_475 = arith.constant 5 : index
    %c6_476 = arith.constant 6 : index
    %997 = memref.load %arg6[%c5_475, %c6_476] : memref<8x8xf32, #tpu.memory_space<smem>>
    %998 = vector.broadcast %997 : f32 to vector<2x8x128xf32>
    %999 = arith.mulf %702, %998 : vector<2x8x128xf32>
    %1000 = arith.addf %996, %999 : vector<2x8x128xf32>
    %c6_477 = arith.constant 6 : index
    %c6_478 = arith.constant 6 : index
    %1001 = memref.load %arg6[%c6_477, %c6_478] : memref<8x8xf32, #tpu.memory_space<smem>>
    %1002 = vector.broadcast %1001 : f32 to vector<2x8x128xf32>
    %1003 = arith.mulf %721, %1002 : vector<2x8x128xf32>
    %1004 = arith.addf %1000, %1003 : vector<2x8x128xf32>
    %c7_479 = arith.constant 7 : index
    %c6_480 = arith.constant 6 : index
    %1005 = memref.load %arg6[%c7_479, %c6_480] : memref<8x8xf32, #tpu.memory_space<smem>>
    %1006 = vector.broadcast %1005 : f32 to vector<2x8x128xf32>
    %1007 = arith.mulf %740, %1006 : vector<2x8x128xf32>
    %1008 = arith.addf %1004, %1007 : vector<2x8x128xf32>
    %cst_481 = arith.constant 0.000000e+00 : f32
    %1009 = vector.broadcast %cst_481 : f32 to vector<2x8x128xf32>
    %1010 = arith.cmpf oge, %1008, %1009 : vector<2x8x128xf32>
    %cst_482 = arith.constant 2.000000e-01 : f32
    %1011 = vector.broadcast %cst_482 : f32 to vector<2x8x128xf32>
    %1012 = arith.mulf %1011, %1008 : vector<2x8x128xf32>
    %1013 = arith.select %1010, %1008, %1012 : vector<2x8x128xi1>, vector<2x8x128xf32>
    %c0_483 = arith.constant 0 : index
    %c7_484 = arith.constant 7 : index
    %1014 = memref.load %arg6[%c0_483, %c7_484] : memref<8x8xf32, #tpu.memory_space<smem>>
    %1015 = vector.broadcast %1014 : f32 to vector<2x8x128xf32>
    %1016 = arith.mulf %607, %1015 : vector<2x8x128xf32>
    %c7_485 = arith.constant 7 : index
    %1017 = memref.load %arg7[%c7_485] : memref<8xf32, #tpu.memory_space<smem>>
    %1018 = vector.broadcast %1017 : f32 to vector<2x8x128xf32>
    %1019 = arith.addf %1016, %1018 : vector<2x8x128xf32>
    %c1_486 = arith.constant 1 : index
    %c7_487 = arith.constant 7 : index
    %1020 = memref.load %arg6[%c1_486, %c7_487] : memref<8x8xf32, #tpu.memory_space<smem>>
    %1021 = vector.broadcast %1020 : f32 to vector<2x8x128xf32>
    %1022 = arith.mulf %626, %1021 : vector<2x8x128xf32>
    %1023 = arith.addf %1019, %1022 : vector<2x8x128xf32>
    %c2_488 = arith.constant 2 : index
    %c7_489 = arith.constant 7 : index
    %1024 = memref.load %arg6[%c2_488, %c7_489] : memref<8x8xf32, #tpu.memory_space<smem>>
    %1025 = vector.broadcast %1024 : f32 to vector<2x8x128xf32>
    %1026 = arith.mulf %645, %1025 : vector<2x8x128xf32>
    %1027 = arith.addf %1023, %1026 : vector<2x8x128xf32>
    %c3_490 = arith.constant 3 : index
    %c7_491 = arith.constant 7 : index
    %1028 = memref.load %arg6[%c3_490, %c7_491] : memref<8x8xf32, #tpu.memory_space<smem>>
    %1029 = vector.broadcast %1028 : f32 to vector<2x8x128xf32>
    %1030 = arith.mulf %664, %1029 : vector<2x8x128xf32>
    %1031 = arith.addf %1027, %1030 : vector<2x8x128xf32>
    %c4_492 = arith.constant 4 : index
    %c7_493 = arith.constant 7 : index
    %1032 = memref.load %arg6[%c4_492, %c7_493] : memref<8x8xf32, #tpu.memory_space<smem>>
    %1033 = vector.broadcast %1032 : f32 to vector<2x8x128xf32>
    %1034 = arith.mulf %683, %1033 : vector<2x8x128xf32>
    %1035 = arith.addf %1031, %1034 : vector<2x8x128xf32>
    %c5_494 = arith.constant 5 : index
    %c7_495 = arith.constant 7 : index
    %1036 = memref.load %arg6[%c5_494, %c7_495] : memref<8x8xf32, #tpu.memory_space<smem>>
    %1037 = vector.broadcast %1036 : f32 to vector<2x8x128xf32>
    %1038 = arith.mulf %702, %1037 : vector<2x8x128xf32>
    %1039 = arith.addf %1035, %1038 : vector<2x8x128xf32>
    %c6_496 = arith.constant 6 : index
    %c7_497 = arith.constant 7 : index
    %1040 = memref.load %arg6[%c6_496, %c7_497] : memref<8x8xf32, #tpu.memory_space<smem>>
    %1041 = vector.broadcast %1040 : f32 to vector<2x8x128xf32>
    %1042 = arith.mulf %721, %1041 : vector<2x8x128xf32>
    %1043 = arith.addf %1039, %1042 : vector<2x8x128xf32>
    %c7_498 = arith.constant 7 : index
    %c7_499 = arith.constant 7 : index
    %1044 = memref.load %arg6[%c7_498, %c7_499] : memref<8x8xf32, #tpu.memory_space<smem>>
    %1045 = vector.broadcast %1044 : f32 to vector<2x8x128xf32>
    %1046 = arith.mulf %740, %1045 : vector<2x8x128xf32>
    %1047 = arith.addf %1043, %1046 : vector<2x8x128xf32>
    %cst_500 = arith.constant 0.000000e+00 : f32
    %1048 = vector.broadcast %cst_500 : f32 to vector<2x8x128xf32>
    %1049 = arith.cmpf oge, %1047, %1048 : vector<2x8x128xf32>
    %cst_501 = arith.constant 2.000000e-01 : f32
    %1050 = vector.broadcast %cst_501 : f32 to vector<2x8x128xf32>
    %1051 = arith.mulf %1050, %1047 : vector<2x8x128xf32>
    %1052 = arith.select %1049, %1047, %1051 : vector<2x8x128xi1>, vector<2x8x128xf32>
    %c0_502 = arith.constant 0 : index
    %c0_503 = arith.constant 0 : index
    %1053 = memref.load %arg8[%c0_502, %c0_503] : memref<8x1xf32, #tpu.memory_space<smem>>
    %1054 = vector.broadcast %1053 : f32 to vector<2x8x128xf32>
    %1055 = arith.mulf %779, %1054 : vector<2x8x128xf32>
    %c0_504 = arith.constant 0 : index
    %1056 = memref.load %arg9[%c0_504] : memref<1xf32, #tpu.memory_space<smem>>
    %1057 = vector.broadcast %1056 : f32 to vector<2x8x128xf32>
    %1058 = arith.addf %1055, %1057 : vector<2x8x128xf32>
    %c1_505 = arith.constant 1 : index
    %c0_506 = arith.constant 0 : index
    %1059 = memref.load %arg8[%c1_505, %c0_506] : memref<8x1xf32, #tpu.memory_space<smem>>
    %1060 = vector.broadcast %1059 : f32 to vector<2x8x128xf32>
    %1061 = arith.mulf %818, %1060 : vector<2x8x128xf32>
    %1062 = arith.addf %1058, %1061 : vector<2x8x128xf32>
    %c2_507 = arith.constant 2 : index
    %c0_508 = arith.constant 0 : index
    %1063 = memref.load %arg8[%c2_507, %c0_508] : memref<8x1xf32, #tpu.memory_space<smem>>
    %1064 = vector.broadcast %1063 : f32 to vector<2x8x128xf32>
    %1065 = arith.mulf %857, %1064 : vector<2x8x128xf32>
    %1066 = arith.addf %1062, %1065 : vector<2x8x128xf32>
    %c3_509 = arith.constant 3 : index
    %c0_510 = arith.constant 0 : index
    %1067 = memref.load %arg8[%c3_509, %c0_510] : memref<8x1xf32, #tpu.memory_space<smem>>
    %1068 = vector.broadcast %1067 : f32 to vector<2x8x128xf32>
    %1069 = arith.mulf %896, %1068 : vector<2x8x128xf32>
    %1070 = arith.addf %1066, %1069 : vector<2x8x128xf32>
    %c4_511 = arith.constant 4 : index
    %c0_512 = arith.constant 0 : index
    %1071 = memref.load %arg8[%c4_511, %c0_512] : memref<8x1xf32, #tpu.memory_space<smem>>
    %1072 = vector.broadcast %1071 : f32 to vector<2x8x128xf32>
    %1073 = arith.mulf %935, %1072 : vector<2x8x128xf32>
    %1074 = arith.addf %1070, %1073 : vector<2x8x128xf32>
    %c5_513 = arith.constant 5 : index
    %c0_514 = arith.constant 0 : index
    %1075 = memref.load %arg8[%c5_513, %c0_514] : memref<8x1xf32, #tpu.memory_space<smem>>
    %1076 = vector.broadcast %1075 : f32 to vector<2x8x128xf32>
    %1077 = arith.mulf %974, %1076 : vector<2x8x128xf32>
    %1078 = arith.addf %1074, %1077 : vector<2x8x128xf32>
    %c6_515 = arith.constant 6 : index
    %c0_516 = arith.constant 0 : index
    %1079 = memref.load %arg8[%c6_515, %c0_516] : memref<8x1xf32, #tpu.memory_space<smem>>
    %1080 = vector.broadcast %1079 : f32 to vector<2x8x128xf32>
    %1081 = arith.mulf %1013, %1080 : vector<2x8x128xf32>
    %1082 = arith.addf %1078, %1081 : vector<2x8x128xf32>
    %c7_517 = arith.constant 7 : index
    %c0_518 = arith.constant 0 : index
    %1083 = memref.load %arg8[%c7_517, %c0_518] : memref<8x1xf32, #tpu.memory_space<smem>>
    %1084 = vector.broadcast %1083 : f32 to vector<2x8x128xf32>
    %1085 = arith.mulf %1052, %1084 : vector<2x8x128xf32>
    %1086 = arith.addf %1082, %1085 : vector<2x8x128xf32>
    %cst_519 = arith.constant 1.000000e+00 : f32
    %1087 = vector.broadcast %cst_519 : f32 to vector<2x8x128xf32>
    %1088 = arith.subf %588, %1087 : vector<2x8x128xf32>
    %cst_520 = arith.constant 1.000000e+00 : f32
    %1089 = vector.broadcast %cst_520 : f32 to vector<2x8x128xf32>
    %1090 = arith.subf %588, %1089 : vector<2x8x128xf32>
    %1091 = arith.mulf %1088, %1090 : vector<2x8x128xf32>
    %cst_521 = arith.constant dense<0.000000e+00> : vector<8x128xf32>
    %1092 = vector.multi_reduction <add>, %1091, %cst_521 [0] : vector<2x8x128xf32> to vector<8x128xf32>
    %c0_522 = arith.constant 0 : index
    %c0_523 = arith.constant 0 : index
    %c0_524 = arith.constant 0 : index
    %c0_525 = arith.constant 0 : index
    %1093 = vector.load %arg13[%c0_522, %c0_523, %c0_524, %c0_525] : memref<1x6x8x128xf32, #tpu.memory_space<vmem>>, vector<1x1x8x128xf32>
    %1094 = vector.shape_cast %1092 : vector<8x128xf32> to vector<1x1x8x128xf32>
    %1095 = arith.addf %1093, %1094 : vector<1x1x8x128xf32>
    %c0_526 = arith.constant 0 : index
    %c0_527 = arith.constant 0 : index
    %c0_528 = arith.constant 0 : index
    %c0_529 = arith.constant 0 : index
    %1096 = vector.load %arg13[%c0_526, %c0_527, %c0_528, %c0_529] : memref<1x6x8x128xf32, #tpu.memory_space<vmem>>, vector<1x1x8x128xf32>
    tpu.vector_store %arg13[%c0_526, %c0_527, %c0_528, %c0_529], %1095 {strides = array<i32>} : memref<1x6x8x128xf32, #tpu.memory_space<vmem>>, vector<1x1x8x128xf32>,
    %1097 = arith.mulf %588, %588 : vector<2x8x128xf32>
    %cst_530 = arith.constant dense<0.000000e+00> : vector<8x128xf32>
    %1098 = vector.multi_reduction <add>, %1097, %cst_530 [0] : vector<2x8x128xf32> to vector<8x128xf32>
    %c0_531 = arith.constant 0 : index
    %c1_532 = arith.constant 1 : index
    %c0_533 = arith.constant 0 : index
    %c0_534 = arith.constant 0 : index
    %1099 = vector.load %arg13[%c0_531, %c1_532, %c0_533, %c0_534] : memref<1x6x8x128xf32, #tpu.memory_space<vmem>>, vector<1x1x8x128xf32>
    %1100 = vector.shape_cast %1098 : vector<8x128xf32> to vector<1x1x8x128xf32>
    %1101 = arith.addf %1099, %1100 : vector<1x1x8x128xf32>
    %c0_535 = arith.constant 0 : index
    %c1_536 = arith.constant 1 : index
    %c0_537 = arith.constant 0 : index
    %c0_538 = arith.constant 0 : index
    %1102 = vector.load %arg13[%c0_535, %c1_536, %c0_537, %c0_538] : memref<1x6x8x128xf32, #tpu.memory_space<vmem>>, vector<1x1x8x128xf32>
    tpu.vector_store %arg13[%c0_535, %c1_536, %c0_537, %c0_538], %1101 {strides = array<i32>} : memref<1x6x8x128xf32, #tpu.memory_space<vmem>>, vector<1x1x8x128xf32>,
    %cst_539 = arith.constant 1.000000e+00 : f32
    %1103 = vector.broadcast %cst_539 : f32 to vector<2x8x128xf32>
    %1104 = arith.subf %1086, %1103 : vector<2x8x128xf32>
    %cst_540 = arith.constant 1.000000e+00 : f32
    %1105 = vector.broadcast %cst_540 : f32 to vector<2x8x128xf32>
    %1106 = arith.subf %1086, %1105 : vector<2x8x128xf32>
    %1107 = arith.mulf %1104, %1106 : vector<2x8x128xf32>
    %cst_541 = arith.constant dense<0.000000e+00> : vector<8x128xf32>
    %1108 = vector.multi_reduction <add>, %1107, %cst_541 [0] : vector<2x8x128xf32> to vector<8x128xf32>
    %c0_542 = arith.constant 0 : index
    %c2_543 = arith.constant 2 : index
    %c0_544 = arith.constant 0 : index
    %c0_545 = arith.constant 0 : index
    %1109 = vector.load %arg13[%c0_542, %c2_543, %c0_544, %c0_545] : memref<1x6x8x128xf32, #tpu.memory_space<vmem>>, vector<1x1x8x128xf32>
    %1110 = vector.shape_cast %1108 : vector<8x128xf32> to vector<1x1x8x128xf32>
    %1111 = arith.addf %1109, %1110 : vector<1x1x8x128xf32>
    %c0_546 = arith.constant 0 : index
    %c2_547 = arith.constant 2 : index
    %c0_548 = arith.constant 0 : index
    %c0_549 = arith.constant 0 : index
    %1112 = vector.load %arg13[%c0_546, %c2_547, %c0_548, %c0_549] : memref<1x6x8x128xf32, #tpu.memory_space<vmem>>, vector<1x1x8x128xf32>
    tpu.vector_store %arg13[%c0_546, %c2_547, %c0_548, %c0_549], %1111 {strides = array<i32>} : memref<1x6x8x128xf32, #tpu.memory_space<vmem>>, vector<1x1x8x128xf32>,
    %1113 = arith.subf %109, %607 : vector<2x8x128xf32>
    %1114 = math.absf %1113 : vector<2x8x128xf32>
    %cst_550 = arith.constant 0.000000e+00 : f32
    %1115 = vector.broadcast %cst_550 : f32 to vector<2x8x128xf32>
    %1116 = arith.addf %1115, %1114 : vector<2x8x128xf32>
    %1117 = arith.subf %128, %626 : vector<2x8x128xf32>
    %1118 = math.absf %1117 : vector<2x8x128xf32>
    %1119 = arith.addf %1116, %1118 : vector<2x8x128xf32>
    %1120 = arith.subf %147, %645 : vector<2x8x128xf32>
    %1121 = math.absf %1120 : vector<2x8x128xf32>
    %1122 = arith.addf %1119, %1121 : vector<2x8x128xf32>
    %1123 = arith.subf %166, %664 : vector<2x8x128xf32>
    %1124 = math.absf %1123 : vector<2x8x128xf32>
    %1125 = arith.addf %1122, %1124 : vector<2x8x128xf32>
    %1126 = arith.subf %185, %683 : vector<2x8x128xf32>
    %1127 = math.absf %1126 : vector<2x8x128xf32>
    %1128 = arith.addf %1125, %1127 : vector<2x8x128xf32>
    %1129 = arith.subf %204, %702 : vector<2x8x128xf32>
    %1130 = math.absf %1129 : vector<2x8x128xf32>
    %1131 = arith.addf %1128, %1130 : vector<2x8x128xf32>
    %1132 = arith.subf %223, %721 : vector<2x8x128xf32>
    %1133 = math.absf %1132 : vector<2x8x128xf32>
    %1134 = arith.addf %1131, %1133 : vector<2x8x128xf32>
    %1135 = arith.subf %242, %740 : vector<2x8x128xf32>
    %1136 = math.absf %1135 : vector<2x8x128xf32>
    %1137 = arith.addf %1134, %1136 : vector<2x8x128xf32>
    %cst_551 = arith.constant dense<0.000000e+00> : vector<8x128xf32>
    %1138 = vector.multi_reduction <add>, %1137, %cst_551 [0] : vector<2x8x128xf32> to vector<8x128xf32>
    %c0_552 = arith.constant 0 : index
    %c3_553 = arith.constant 3 : index
    %c0_554 = arith.constant 0 : index
    %c0_555 = arith.constant 0 : index
    %1139 = vector.load %arg13[%c0_552, %c3_553, %c0_554, %c0_555] : memref<1x6x8x128xf32, #tpu.memory_space<vmem>>, vector<1x1x8x128xf32>
    %1140 = vector.shape_cast %1138 : vector<8x128xf32> to vector<1x1x8x128xf32>
    %1141 = arith.addf %1139, %1140 : vector<1x1x8x128xf32>
    %c0_556 = arith.constant 0 : index
    %c3_557 = arith.constant 3 : index
    %c0_558 = arith.constant 0 : index
    %c0_559 = arith.constant 0 : index
    %1142 = vector.load %arg13[%c0_556, %c3_557, %c0_558, %c0_559] : memref<1x6x8x128xf32, #tpu.memory_space<vmem>>, vector<1x1x8x128xf32>
    tpu.vector_store %arg13[%c0_556, %c3_557, %c0_558, %c0_559], %1141 {strides = array<i32>} : memref<1x6x8x128xf32, #tpu.memory_space<vmem>>, vector<1x1x8x128xf32>,
    %1143 = arith.subf %281, %779 : vector<2x8x128xf32>
    %1144 = math.absf %1143 : vector<2x8x128xf32>
    %cst_560 = arith.constant 0.000000e+00 : f32
    %1145 = vector.broadcast %cst_560 : f32 to vector<2x8x128xf32>
    %1146 = arith.addf %1145, %1144 : vector<2x8x128xf32>
    %1147 = arith.subf %320, %818 : vector<2x8x128xf32>
    %1148 = math.absf %1147 : vector<2x8x128xf32>
    %1149 = arith.addf %1146, %1148 : vector<2x8x128xf32>
    %1150 = arith.subf %359, %857 : vector<2x8x128xf32>
    %1151 = math.absf %1150 : vector<2x8x128xf32>
    %1152 = arith.addf %1149, %1151 : vector<2x8x128xf32>
    %1153 = arith.subf %398, %896 : vector<2x8x128xf32>
    %1154 = math.absf %1153 : vector<2x8x128xf32>
    %1155 = arith.addf %1152, %1154 : vector<2x8x128xf32>
    %1156 = arith.subf %437, %935 : vector<2x8x128xf32>
    %1157 = math.absf %1156 : vector<2x8x128xf32>
    %1158 = arith.addf %1155, %1157 : vector<2x8x128xf32>
    %1159 = arith.subf %476, %974 : vector<2x8x128xf32>
    %1160 = math.absf %1159 : vector<2x8x128xf32>
    %1161 = arith.addf %1158, %1160 : vector<2x8x128xf32>
    %1162 = arith.subf %515, %1013 : vector<2x8x128xf32>
    %1163 = math.absf %1162 : vector<2x8x128xf32>
    %1164 = arith.addf %1161, %1163 : vector<2x8x128xf32>
    %1165 = arith.subf %554, %1052 : vector<2x8x128xf32>
    %1166 = math.absf %1165 : vector<2x8x128xf32>
    %1167 = arith.addf %1164, %1166 : vector<2x8x128xf32>
    %cst_561 = arith.constant dense<0.000000e+00> : vector<8x128xf32>
    %1168 = vector.multi_reduction <add>, %1167, %cst_561 [0] : vector<2x8x128xf32> to vector<8x128xf32>
    %c0_562 = arith.constant 0 : index
    %c4_563 = arith.constant 4 : index
    %c0_564 = arith.constant 0 : index
    %c0_565 = arith.constant 0 : index
    %1169 = vector.load %arg13[%c0_562, %c4_563, %c0_564, %c0_565] : memref<1x6x8x128xf32, #tpu.memory_space<vmem>>, vector<1x1x8x128xf32>
    %1170 = vector.shape_cast %1168 : vector<8x128xf32> to vector<1x1x8x128xf32>
    %1171 = arith.addf %1169, %1170 : vector<1x1x8x128xf32>
    %c0_566 = arith.constant 0 : index
    %c4_567 = arith.constant 4 : index
    %c0_568 = arith.constant 0 : index
    %c0_569 = arith.constant 0 : index
    %1172 = vector.load %arg13[%c0_566, %c4_567, %c0_568, %c0_569] : memref<1x6x8x128xf32, #tpu.memory_space<vmem>>, vector<1x1x8x128xf32>
    tpu.vector_store %arg13[%c0_566, %c4_567, %c0_568, %c0_569], %1171 {strides = array<i32>} : memref<1x6x8x128xf32, #tpu.memory_space<vmem>>, vector<1x1x8x128xf32>,
    %1173 = arith.subf %31, %12 : vector<2x8x128xf32>
    %1174 = math.absf %1173 : vector<2x8x128xf32>
    %cst_570 = arith.constant 0.000000e+00 : f32
    %1175 = vector.broadcast %cst_570 : f32 to vector<2x8x128xf32>
    %1176 = arith.addf %1175, %1174 : vector<2x8x128xf32>
    %1177 = arith.subf %46, %14 : vector<2x8x128xf32>
    %1178 = math.absf %1177 : vector<2x8x128xf32>
    %1179 = arith.addf %1176, %1178 : vector<2x8x128xf32>
    %1180 = arith.subf %61, %16 : vector<2x8x128xf32>
    %1181 = math.absf %1180 : vector<2x8x128xf32>
    %1182 = arith.addf %1179, %1181 : vector<2x8x128xf32>
    %cst_571 = arith.constant dense<0.000000e+00> : vector<8x128xf32>
    %1183 = vector.multi_reduction <add>, %1182, %cst_571 [0] : vector<2x8x128xf32> to vector<8x128xf32>
    %c0_572 = arith.constant 0 : index
    %c5_573 = arith.constant 5 : index
    %c0_574 = arith.constant 0 : index
    %c0_575 = arith.constant 0 : index
    %1184 = vector.load %arg13[%c0_572, %c5_573, %c0_574, %c0_575] : memref<1x6x8x128xf32, #tpu.memory_space<vmem>>, vector<1x1x8x128xf32>
    %1185 = vector.shape_cast %1183 : vector<8x128xf32> to vector<1x1x8x128xf32>
    %1186 = arith.addf %1184, %1185 : vector<1x1x8x128xf32>
    %c0_576 = arith.constant 0 : index
    %c5_577 = arith.constant 5 : index
    %c0_578 = arith.constant 0 : index
    %c0_579 = arith.constant 0 : index
    %1187 = vector.load %arg13[%c0_576, %c5_577, %c0_578, %c0_579] : memref<1x6x8x128xf32, #tpu.memory_space<vmem>>, vector<1x1x8x128xf32>
    tpu.vector_store %arg13[%c0_576, %c5_577, %c0_578, %c0_579], %1186 {strides = array<i32>} : memref<1x6x8x128xf32, #tpu.memory_space<vmem>>, vector<1x1x8x128xf32>,
    return
  }
  func.func @transform_0(%arg0: i32, %arg1: i32) -> (i32, i32) {
    %c0_i32 = arith.constant 0 : i32
    %c0_i32_0 = arith.constant 0 : i32
    %c0_i32_1 = arith.constant 0 : i32
    return %c0_i32, %c0_i32_0 : i32, i32
  }
  func.func @transform_1(%arg0: i32, %arg1: i32) -> i32 {
    %c0_i32 = arith.constant 0 : i32
    %c0_i32_0 = arith.constant 0 : i32
    return %c0_i32 : i32
  }
  func.func @transform_2(%arg0: i32, %arg1: i32) -> (i32, i32) {
    %c0_i32 = arith.constant 0 : i32
    %c0_i32_0 = arith.constant 0 : i32
    %c0_i32_1 = arith.constant 0 : i32
    return %c0_i32, %c0_i32_0 : i32, i32
  }
  func.func @transform_3(%arg0: i32, %arg1: i32) -> i32 {
    %c0_i32 = arith.constant 0 : i32
    %c0_i32_0 = arith.constant 0 : i32
    return %c0_i32 : i32
  }
  func.func @transform_4(%arg0: i32, %arg1: i32) -> (i32, i32) {
    %c0_i32 = arith.constant 0 : i32
    %c0_i32_0 = arith.constant 0 : i32
    %c0_i32_1 = arith.constant 0 : i32
    return %c0_i32, %c0_i32_0 : i32, i32
  }
  func.func @transform_5(%arg0: i32, %arg1: i32) -> i32 {
    %c0_i32 = arith.constant 0 : i32
    %c0_i32_0 = arith.constant 0 : i32
    return %c0_i32 : i32
  }
  func.func @transform_6(%arg0: i32, %arg1: i32) -> (i32, i32) {
    %c0_i32 = arith.constant 0 : i32
    %c0_i32_0 = arith.constant 0 : i32
    %c0_i32_1 = arith.constant 0 : i32
    return %c0_i32, %c0_i32_0 : i32, i32
  }
  func.func @transform_7(%arg0: i32, %arg1: i32) -> i32 {
    %c0_i32 = arith.constant 0 : i32
    %c0_i32_0 = arith.constant 0 : i32
    return %c0_i32 : i32
  }
  func.func @transform_8(%arg0: i32, %arg1: i32) -> (i32, i32, i32, i32) {
    %c2_i32 = arith.constant 2 : i32
    %0 = arith.muli %arg0, %c2_i32 : i32
    %1 = arith.addi %0, %arg1 : i32
    %c0_i32 = arith.constant 0 : i32
    %c0_i32_0 = arith.constant 0 : i32
    %c0_i32_1 = arith.constant 0 : i32
    %c0_i32_2 = arith.constant 0 : i32
    return %c0_i32, %c0_i32_0, %1, %c0_i32_1 : i32, i32, i32, i32
  }
  func.func @transform_9(%arg0: i32, %arg1: i32) -> (i32, i32, i32, i32) {
    %c2_i32 = arith.constant 2 : i32
    %0 = arith.muli %arg0, %c2_i32 : i32
    %1 = arith.addi %0, %arg1 : i32
    %c0_i32 = arith.constant 0 : i32
    %c0_i32_0 = arith.constant 0 : i32
    %c0_i32_1 = arith.constant 0 : i32
    %c0_i32_2 = arith.constant 0 : i32
    return %c0_i32, %c0_i32_0, %1, %c0_i32_1 : i32, i32, i32, i32
  }
  func.func @transform_10(%arg0: i32, %arg1: i32) -> (i32, i32, i32, i32) {
    %c2_i32 = arith.constant 2 : i32
    %0 = arith.muli %arg0, %c2_i32 : i32
    %1 = arith.addi %0, %arg1 : i32
    %c0_i32 = arith.constant 0 : i32
    %c0_i32_0 = arith.constant 0 : i32
    %c0_i32_1 = arith.constant 0 : i32
    %c0_i32_2 = arith.constant 0 : i32
    return %c0_i32, %c0_i32_0, %1, %c0_i32_1 : i32, i32, i32, i32
  }
  func.func @transform_11(%arg0: i32, %arg1: i32) -> (i32, i32, i32, i32) {
    %c0_i32 = arith.constant 0 : i32
    %c0_i32_0 = arith.constant 0 : i32
    %c0_i32_1 = arith.constant 0 : i32
    %c0_i32_2 = arith.constant 0 : i32
    return %arg0, %c0_i32, %c0_i32_0, %c0_i32_1 : i32, i32, i32, i32
  }
}

</mosaic_0001>

<llo_original>
// kernel: tpu_custom_call.1
$region0: #{tpu_custom_call.1}
  #allocation0 [shape = 'u32[]', space=smem, size = 0x4, offset = 0x4, fixed_abs, tag = 'smem constant byte address 0x4 - core index']
  #allocation1 [shape = 'u32[72,128]{1,0:T(1,128)}', space=vmem, size = 0x9000, scoped, tag = 'internal scratch']
  #allocation2 [shape = 'f32[1]{0:T(128)S(6)}', space=smem, size = 0x200, scoped, tag = 'scoped memory for tpu_custom_call.1']
  %s0 = inlined_call_operand.hbm [shape: f32[3,3], index: 0, kind: input, shape index: {}]
  %s1 = inlined_call_operand.vmem [shape: f32[3], index: 1, kind: input, shape index: {}]
  %s2 = inlined_call_operand.hbm [shape: f32[3,8], index: 2, kind: input, shape index: {}]
  %s3 = inlined_call_operand.vmem [shape: f32[8], index: 3, kind: input, shape index: {}]
  %s4 = inlined_call_operand.vmem [shape: f32[8,8], index: 4, kind: input, shape index: {}]
  %s5 = inlined_call_operand.vmem [shape: f32[8], index: 5, kind: input, shape index: {}]
  %s6 = inlined_call_operand.vmem [shape: f32[8,1], index: 6, kind: input, shape index: {}]
  %s7 = inlined_call_operand.<no memory space> [shape: f32[1], index: 7, kind: input, shape index: {}]
  %s8 = inlined_call_operand.hbm [shape: f32[2,3,32,128], index: 8, kind: input, shape index: {}]
  %s9 = inlined_call_operand.hbm [shape: f32[2,3,32,128], index: 9, kind: input, shape index: {}]
  %s10 = inlined_call_operand.hbm [shape: f32[2,3,32,128], index: 10, kind: output, shape index: {0}]
  %s11 = inlined_call_operand.hbm [shape: f32[2,6,8,128], index: 11, kind: output, shape index: {1}]
  %12 = xla_tuple %s10, %s11
  %s13 = sld [smem:[#allocation0]]
  $region121: #{tpu_custom_call.1} parent=0
    _
  %s15 = ssub.s32 1, %s13
  %s16 = scalar_select 0, %s15, %s13
  %17 = sst [smem:[#allocation2]] %s7
  $region1: #{tpu_custom_call.1} parent=0
    #allocation3 [shape = 'u8[2048]{0}', space=smem, size = 0x800, scoped, tag = 'input window, operand 0, single buffered']
    #allocation4 [shape = 's32[2]{0}', space=sflag, size = 0x8, scoped, tag = 'scoped memory for tpu_custom_call.1']
    #allocation5 [shape = 's32[2]{0}', space=sflag, size = 0x8, scoped, tag = 'scoped memory for tpu_custom_call.1']
    #allocation6 [shape = 's32[2]{0}', space=sflag, size = 0x8, scoped, tag = 'scoped memory for tpu_custom_call.1']
    #allocation7 [shape = 's32[2]{0}', space=sflag, size = 0x8, scoped, tag = 'scoped memory for tpu_custom_call.1']
    #allocation8 [shape = 'u8[512]{0}', space=smem, size = 0x200, scoped, tag = 'input window, operand 1, single buffered']
    #allocation9 [shape = 'u8[2048]{0}', space=smem, size = 0x800, scoped, tag = 'input window, operand 2, single buffered']
    #allocation10 [shape = 's32[1]{0}', space=sflag, size = 0x4, scoped, tag = 'scoped memory for tpu_custom_call.1']
    #allocation11 [shape = 'u8[512]{0}', space=smem, size = 0x200, scoped, tag = 'input window, operand 3, single buffered']
    #allocation12 [shape = 's32[1]{0}', space=sflag, size = 0x4, scoped, tag = 'scoped memory for tpu_custom_call.1']
    #allocation13 [shape = 'u8[4096]{0}', space=smem, size = 0x1000, scoped, tag = 'input window, operand 4, single buffered']
    #allocation14 [shape = 'u8[512]{0}', space=smem, size = 0x200, scoped, tag = 'input window, operand 5, single buffered']
    #allocation15 [shape = 's32[1]{0}', space=sflag, size = 0x4, scoped, tag = 'scoped memory for tpu_custom_call.1']
    #allocation16 [shape = 'u8[4096]{0}', space=smem, size = 0x1000, scoped, tag = 'input window, operand 6, single buffered']
    #allocation17 [shape = 'u8[49152]{0}', space=vmem, size = 0xc000, scoped, tag = 'input window, operand 8']
    #allocation18 [shape = 'u8[49152]{0}', space=vmem, size = 0xc000, scoped, tag = 'input window, operand 9']
    #allocation19 [shape = 's32[2]{0}', space=sflag, size = 0x8, scoped, tag = 'scoped memory for tpu_custom_call.1']
    #allocation20 [shape = 'u8[49152]{0}', space=vmem, size = 0xc000, scoped, tag = 'output window, operand 0']
    #allocation21 [shape = 'u8[49152]{0}', space=vmem, size = 0xc000, scoped, tag = 'output window, operand 1']
    #allocation22 [shape = 's32[2]{0}', space=sflag, size = 0x8, scoped, tag = 'scoped memory for tpu_custom_call.1']
    %18 = vsyncpa [#allocation6], 0
    %19 = vsyncpa [#allocation7], 0
    %20 = vsyncpa [#allocation10], 0
    %21 = vsyncpa [#allocation12], 0
    %22 = vsyncpa [#allocation15], 0
    %23 = vsyncpa [#allocation4], 0
    %s24 = scalar_lea.sflag [#allocation4], 1
    %25 = vsyncpa %s24, 0
    %26 = vsyncpa [#allocation19], 0
    %s27 = scalar_lea.sflag [#allocation19], 1
    %28 = vsyncpa %s27, 0
    %29 = vsyncpa [#allocation5], 0
    %s30 = scalar_lea.sflag [#allocation5], 1
    %31 = vsyncpa %s30, 0
    %32 = vsyncpa [#allocation22], 0
    %s33 = scalar_lea.sflag [#allocation22], 1
    %34 = vsyncpa %s33, 0
    loop: start=0, step=1, limit=6
    $region2: #{tpu_custom_call.1} parent=1 // loop_pre_header
      _
    $region3: #{tpu_custom_call.1} parent=1 // loop_header
      %s36 = sphi 0, %s40
      %p37 = scmp.ge.s32.totalorder %s36, 6
      %s43 = sphi 0, %s55
      %s44 = sphi 0, %s51
      %s45 = sphi 0, %s43
      %s46 = sphi 0, %s44
      %s47 = sphi 0, %s45
      %s48 = sphi 0, %s46
      %s56 = sphi 0, %s56
      %s58 = sphi 0, %s56
      %s59 = sphi 0, %s58
      %s73 = sphi 0, %s59
      %s77 = sphi 0, %s77
      %s79 = sphi 0, %s77
      %s80 = sphi 0, %s79
      %s94 = sphi 0, %s80
      %s98 = sphi 0, %s98
      %s100 = sphi 0, %s98
      %s101 = sphi 0, %s100
      %s115 = sphi 0, %s101
      %s119 = sphi 0, %s119
      %s121 = sphi 0, %s119
      %s122 = sphi 0, %s121
      %s136 = sphi 0, %s122
      %s140 = sphi 0, %s140
      %s142 = sphi 0, %s140
      %s143 = sphi 0, %s142
      %s157 = sphi 0, %s143
      %s161 = sphi 0, %s161
      %s163 = sphi 0, %s161
      %s164 = sphi 0, %s163
      %s178 = sphi 0, %s164
      %s182 = sphi 0, %s182
      %s184 = sphi 0, %s182
      %s185 = sphi 0, %s184
      %s199 = sphi 0, %s185
      %s203 = sphi 0, %s203
      %s205 = sphi 0, %s203
      %s206 = sphi 0, %s205
      %s220 = sphi 0, %s206
      %s230 = sphi 0, %s232
      %s233 = sphi 0, %s230
      %s234 = sphi 0, %s233
      %s250 = sphi 0, %s234
      %s260 = sphi 0, %s262
      %s263 = sphi 0, %s260
      %s264 = sphi 0, %s263
      %s280 = sphi 0, %s264
      %s290 = sphi 0, %s292
      %s293 = sphi 0, %s290
      %s294 = sphi 0, %s293
      %s310 = sphi 0, %s294
      %s316 = sphi 0, %s318
      %s319 = sphi 0, %s316
      %s320 = sphi 0, %s319
      %s336 = sphi 0, %s320
    $region4: #{tpu_custom_call.1} parent=1 // loop_header_branch
      %39 = sbr.rel (%p37) target = $region8
    $region5: #{tpu_custom_call.1} parent=1 // loop_body
      %s41 = ssub.s32 %s36, 1
      %s42 = ssub.s32 %s36, 2
      %s49 = sadd.s32 1, %s44
      %p50 = scmp.ge.s32.totalorder %s49, 2
      %s51 = scalar_select %p50, 0, %s49
      %s52 = sadd.s32 1, %s43
      %s53 = scalar_select %p50, %s52, %s43
      %p54 = scmp.ge.s32.totalorder %s53, 2
      %s55 = scalar_select %p54, 0, %s53
      %s57 = sadd.s32 %s56, 1
      %p60 = scmp.eq.s32.totalorder %s36, 3
      %p61 = scmp.ne.s32.totalorder %s56, %s58
      %p62 = scmp.eq.s32.totalorder %s36, 0
      %p63 = por %p61, %p62
      %p64 = scmp.ne.s32.totalorder %s56, %s58
      %p65 = scmp.eq.s32.totalorder %s41, 3
      %p66 = por %p64, %p65
      %p67 = scmp.ne.s32.totalorder %s58, %s59
      %p68 = scmp.eq.s32.totalorder %s41, 0
      %p69 = por %p67, %p68
      %p70 = scmp.ne.s32.totalorder %s58, %s59
      %p71 = scmp.eq.s32.totalorder %s42, 3
      %p72 = por %p70, %p71
      %p74 = scmp.ne.s32.totalorder %s59, %s73
      %p75 = scmp.eq.s32.totalorder %s42, 0
      %p76 = por %p74, %p75
      %s78 = sadd.s32 %s77, 1
      %p81 = scmp.eq.s32.totalorder %s36, 3
      %p82 = scmp.ne.s32.totalorder %s77, %s79
      %p83 = scmp.eq.s32.totalorder %s36, 0
      %p84 = por %p82, %p83
      %p85 = scmp.ne.s32.totalorder %s77, %s79
      %p86 = scmp.eq.s32.totalorder %s41, 3
      %p87 = por %p85, %p86
      %p88 = scmp.ne.s32.totalorder %s79, %s80
      %p89 = scmp.eq.s32.totalorder %s41, 0
      %p90 = por %p88, %p89
      %p91 = scmp.ne.s32.totalorder %s79, %s80
      %p92 = scmp.eq.s32.totalorder %s42, 3
      %p93 = por %p91, %p92
      %p95 = scmp.ne.s32.totalorder %s80, %s94
      %p96 = scmp.eq.s32.totalorder %s42, 0
      %p97 = por %p95, %p96
      %s99 = sadd.s32 %s98, 1
      %p102 = scmp.eq.s32.totalorder %s36, 3
      %p103 = scmp.ne.s32.totalorder %s98, %s100
      %p104 = scmp.eq.s32.totalorder %s36, 0
      %p105 = por %p103, %p104
      %p106 = scmp.ne.s32.totalorder %s98, %s100
      %p107 = scmp.eq.s32.totalorder %s41, 3
      %p108 = por %p106, %p107
      %p109 = scmp.ne.s32.totalorder %s100, %s101
      %p110 = scmp.eq.s32.totalorder %s41, 0
      %p111 = por %p109, %p110
      %p112 = scmp.ne.s32.totalorder %s100, %s101
      %p113 = scmp.eq.s32.totalorder %s42, 3
      %p114 = por %p112, %p113
      %p116 = scmp.ne.s32.totalorder %s101, %s115
      %p117 = scmp.eq.s32.totalorder %s42, 0
      %p118 = por %p116, %p117
      %s120 = sadd.s32 %s119, 1
      %p123 = scmp.eq.s32.totalorder %s36, 3
      %p124 = scmp.ne.s32.totalorder %s119, %s121
      %p125 = scmp.eq.s32.totalorder %s36, 0
      %p126 = por %p124, %p125
      %p127 = scmp.ne.s32.totalorder %s119, %s121
      %p128 = scmp.eq.s32.totalorder %s41, 3
      %p129 = por %p127, %p128
      %p130 = scmp.ne.s32.totalorder %s121, %s122
      %p131 = scmp.eq.s32.totalorder %s41, 0
      %p132 = por %p130, %p131
      %p133 = scmp.ne.s32.totalorder %s121, %s122
      %p134 = scmp.eq.s32.totalorder %s42, 3
      %p135 = por %p133, %p134
      %p137 = scmp.ne.s32.totalorder %s122, %s136
      %p138 = scmp.eq.s32.totalorder %s42, 0
      %p139 = por %p137, %p138
      %s141 = sadd.s32 %s140, 1
      %p144 = scmp.eq.s32.totalorder %s36, 3
      %p145 = scmp.ne.s32.totalorder %s140, %s142
      %p146 = scmp.eq.s32.totalorder %s36, 0
      %p147 = por %p145, %p146
      %p148 = scmp.ne.s32.totalorder %s140, %s142
      %p149 = scmp.eq.s32.totalorder %s41, 3
      %p150 = por %p148, %p149
      %p151 = scmp.ne.s32.totalorder %s142, %s143
      %p152 = scmp.eq.s32.totalorder %s41, 0
      %p153 = por %p151, %p152
      %p154 = scmp.ne.s32.totalorder %s142, %s143
      %p155 = scmp.eq.s32.totalorder %s42, 3
      %p156 = por %p154, %p155
      %p158 = scmp.ne.s32.totalorder %s143, %s157
      %p159 = scmp.eq.s32.totalorder %s42, 0
      %p160 = por %p158, %p159
      %s162 = sadd.s32 %s161, 1
      %p165 = scmp.eq.s32.totalorder %s36, 3
      %p166 = scmp.ne.s32.totalorder %s161, %s163
      %p167 = scmp.eq.s32.totalorder %s36, 0
      %p168 = por %p166, %p167
      %p169 = scmp.ne.s32.totalorder %s161, %s163
      %p170 = scmp.eq.s32.totalorder %s41, 3
      %p171 = por %p169, %p170
      %p172 = scmp.ne.s32.totalorder %s163, %s164
      %p173 = scmp.eq.s32.totalorder %s41, 0
      %p174 = por %p172, %p173
      %p175 = scmp.ne.s32.totalorder %s163, %s164
      %p176 = scmp.eq.s32.totalorder %s42, 3
      %p177 = por %p175, %p176
      %p179 = scmp.ne.s32.totalorder %s164, %s178
      %p180 = scmp.eq.s32.totalorder %s42, 0
      %p181 = por %p179, %p180
      %s183 = sadd.s32 %s182, 1
      %p186 = scmp.eq.s32.totalorder %s36, 3
      %p187 = scmp.ne.s32.totalorder %s182, %s184
      %p188 = scmp.eq.s32.totalorder %s36, 0
      %p189 = por %p187, %p188
      %p190 = scmp.ne.s32.totalorder %s182, %s184
      %p191 = scmp.eq.s32.totalorder %s41, 3
      %p192 = por %p190, %p191
      %p193 = scmp.ne.s32.totalorder %s184, %s185
      %p194 = scmp.eq.s32.totalorder %s41, 0
      %p195 = por %p193, %p194
      %p196 = scmp.ne.s32.totalorder %s184, %s185
      %p197 = scmp.eq.s32.totalorder %s42, 3
      %p198 = por %p196, %p197
      %p200 = scmp.ne.s32.totalorder %s185, %s199
      %p201 = scmp.eq.s32.totalorder %s42, 0
      %p202 = por %p200, %p201
      %s204 = sadd.s32 %s203, 1
      %p207 = scmp.eq.s32.totalorder %s36, 3
      %p208 = scmp.ne.s32.totalorder %s203, %s205
      %p209 = scmp.eq.s32.totalorder %s36, 0
      %p210 = por %p208, %p209
      %p211 = scmp.ne.s32.totalorder %s203, %s205
      %p212 = scmp.eq.s32.totalorder %s41, 3
      %p213 = por %p211, %p212
      %p214 = scmp.ne.s32.totalorder %s205, %s206
      %p215 = scmp.eq.s32.totalorder %s41, 0
      %p216 = por %p214, %p215
      %p217 = scmp.ne.s32.totalorder %s205, %s206
      %p218 = scmp.eq.s32.totalorder %s42, 3
      %p219 = por %p217, %p218
      %p221 = scmp.ne.s32.totalorder %s206, %s220
      %p222 = scmp.eq.s32.totalorder %s42, 0
      %p223 = por %p221, %p222
      %s224 = smul.u32 %s43, 2
      %s225 = sadd.s32 %s224, %s44
      %s226 = smul.u32 %s55, 2
      %s227 = sadd.s32 %s226, %s51
      %s228 = ssub.s32 %s225, %s227
      %p229 = scmp.eq.s32.totalorder %s228, 0
      %s231 = sadd.s32 %s230, 1
      %s232 = scalar_select %p229, %s230, %s231
      %p235 = pneg %p229
      %p236 = scmp.eq.s32.totalorder %s36, 3
      %p237 = por %p235, %p236
      %p238 = scmp.ne.s32.totalorder %s230, %s233
      %p239 = scmp.eq.s32.totalorder %s36, 0
      %p240 = por %p238, %p239
      %p241 = scmp.ne.s32.totalorder %s230, %s233
      %p242 = scmp.eq.s32.totalorder %s41, 3
      %p243 = por %p241, %p242
      %p244 = scmp.ne.s32.totalorder %s233, %s234
      %p245 = scmp.eq.s32.totalorder %s41, 0
      %p246 = por %p244, %p245
      %p247 = scmp.ne.s32.totalorder %s233, %s234
      %p248 = scmp.eq.s32.totalorder %s42, 3
      %p249 = por %p247, %p248
      %p251 = scmp.ne.s32.totalorder %s234, %s250
      %p252 = scmp.eq.s32.totalorder %s42, 0
      %p253 = por %p251, %p252
      %s254 = smul.u32 %s43, 2
      %s255 = sadd.s32 %s254, %s44
      %s256 = smul.u32 %s55, 2
      %s257 = sadd.s32 %s256, %s51
      %s258 = ssub.s32 %s255, %s257
      %p259 = scmp.eq.s32.totalorder %s258, 0
      %s261 = sadd.s32 %s260, 1
      %s262 = scalar_select %p259, %s260, %s261
      %p265 = pneg %p259
      %p266 = scmp.eq.s32.totalorder %s36, 3
      %p267 = por %p265, %p266
      %p268 = scmp.ne.s32.totalorder %s260, %s263
      %p269 = scmp.eq.s32.totalorder %s36, 0
      %p270 = por %p268, %p269
      %p271 = scmp.ne.s32.totalorder %s260, %s263
      %p272 = scmp.eq.s32.totalorder %s41, 3
      %p273 = por %p271, %p272
      %p274 = scmp.ne.s32.totalorder %s263, %s264
      %p275 = scmp.eq.s32.totalorder %s41, 0
      %p276 = por %p274, %p275
      %p277 = scmp.ne.s32.totalorder %s263, %s264
      %p278 = scmp.eq.s32.totalorder %s42, 3
      %p279 = por %p277, %p278
      %p281 = scmp.ne.s32.totalorder %s264, %s280
      %p282 = scmp.eq.s32.totalorder %s42, 0
      %p283 = por %p281, %p282
      %s284 = smul.u32 %s43, 2
      %s285 = sadd.s32 %s284, %s44
      %s286 = smul.u32 %s55, 2
      %s287 = sadd.s32 %s286, %s51
      %s288 = ssub.s32 %s285, %s287
      %p289 = scmp.eq.s32.totalorder %s288, 0
      %s291 = sadd.s32 %s290, 1
      %s292 = scalar_select %p289, %s290, %s291
      %p295 = pneg %p289
      %p296 = scmp.eq.s32.totalorder %s36, 3
      %p297 = por %p295, %p296
      %p298 = scmp.ne.s32.totalorder %s290, %s293
      %p299 = scmp.eq.s32.totalorder %s36, 0
      %p300 = por %p298, %p299
      %p301 = scmp.ne.s32.totalorder %s290, %s293
      %p302 = scmp.eq.s32.totalorder %s41, 3
      %p303 = por %p301, %p302
      %p304 = scmp.ne.s32.totalorder %s293, %s294
      %p305 = scmp.eq.s32.totalorder %s41, 0
      %p306 = por %p304, %p305
      %p307 = scmp.ne.s32.totalorder %s293, %s294
      %p308 = scmp.eq.s32.totalorder %s42, 3
      %p309 = por %p307, %p308
      %p311 = scmp.ne.s32.totalorder %s294, %s310
      %p312 = scmp.eq.s32.totalorder %s42, 0
      %p313 = por %p311, %p312
      %s314 = ssub.s32 %s43, %s55
      %p315 = scmp.eq.s32.totalorder %s314, 0
      %s317 = sadd.s32 %s316, 1
      %s318 = scalar_select %p315, %s316, %s317
      %p321 = pneg %p315
      %p322 = scmp.eq.s32.totalorder %s36, 3
      %p323 = por %p321, %p322
      %p324 = scmp.ne.s32.totalorder %s316, %s319
      %p325 = scmp.eq.s32.totalorder %s36, 0
      %p326 = por %p324, %p325
      %p327 = scmp.ne.s32.totalorder %s316, %s319
      %p328 = scmp.eq.s32.totalorder %s41, 3
      %p329 = por %p327, %p328
      %p330 = scmp.ne.s32.totalorder %s319, %s320
      %p331 = scmp.eq.s32.totalorder %s41, 0
      %p332 = por %p330, %p331
      %p333 = scmp.ne.s32.totalorder %s319, %s320
      %p334 = scmp.eq.s32.totalorder %s42, 3
      %p335 = por %p333, %p334
      %p337 = scmp.ne.s32.totalorder %s320, %s336
      %p338 = scmp.eq.s32.totalorder %s42, 0
      %p339 = por %p337, %p338
      %p340 = scmp.le.s32.totalorder 1, %s36
      %p341 = scmp.lt.s32.totalorder %s36, 5
      %p342 = pnand %p340, %p341
      %p343 = pneg %p342
      // Predicated region
      $region9: #{tpu_custom_call.1} parent=5 // pred_check
        _
      $region10: #{tpu_custom_call.1} parent=5 // pred_check_branch
        %345 = sbr.rel (%p342) target = $region12
      $region11: #{tpu_custom_call.1} parent=5 // pred_region
        %s346 = ssub.s32 %s36, 1
        // Predicated region
        $region13: #{tpu_custom_call.1} parent=11 // pred_check
          %p347 = pneg %p69
        $region14: #{tpu_custom_call.1} parent=11 // pred_check_branch
          %349 = sbr.rel (%p347) target = $region16
        $region15: #{tpu_custom_call.1} parent=11 // pred_region
          %351 = vsyncadd [#allocation6], 0
          %s353 = sshll.u32 %s0, 4
          %s354 = int_to_ptr.hbm [resolvable:$true] %s353
          %356 = dma.hbm_to_smem %s354, 64, [#allocation3], [#allocation6]
        $region16: #{tpu_custom_call.1} parent=11 // pred_fallthru
          _
        // Predicated region
        $region17: #{tpu_custom_call.1} parent=11 // pred_check
          %p357 = pneg %p90
        $region18: #{tpu_custom_call.1} parent=11 // pred_check_branch
          %359 = sbr.rel (%p357) target = $region20
        $region19: #{tpu_custom_call.1} parent=11 // pred_region
          %361 = vsyncadd [#allocation7], 0
          %s363 = sshll.u32 %s1, 4
          %s364 = int_to_ptr.vmem [resolvable:$true] %s363
          %366 = dma.vmem_to_smem %s364, 16, [#allocation8], [#allocation7]
        $region20: #{tpu_custom_call.1} parent=11 // pred_fallthru
          _
        // Predicated region
        $region21: #{tpu_custom_call.1} parent=11 // pred_check
          %p367 = pneg %p111
        $region22: #{tpu_custom_call.1} parent=11 // pred_check_branch
          %369 = sbr.rel (%p367) target = $region24
        $region23: #{tpu_custom_call.1} parent=11 // pred_region
          %371 = vsyncadd [#allocation10], 0
          %s373 = sshll.u32 %s2, 4
          %s374 = int_to_ptr.hbm [resolvable:$true] %s373
          %376 = dma.hbm_to_smem %s374, 64, [#allocation9], [#allocation10]
        $region24: #{tpu_custom_call.1} parent=11 // pred_fallthru
          _
        // Predicated region
        $region25: #{tpu_custom_call.1} parent=11 // pred_check
          %p377 = pneg %p132
        $region26: #{tpu_custom_call.1} parent=11 // pred_check_branch
          %379 = sbr.rel (%p377) target = $region28
        $region27: #{tpu_custom_call.1} parent=11 // pred_region
          %381 = vsyncadd [#allocation12], 0
          %s383 = sshll.u32 %s3, 4
          %s384 = int_to_ptr.vmem [resolvable:$true] %s383
          %386 = dma.vmem_to_smem %s384, 16, [#allocation11], [#allocation12]
        $region28: #{tpu_custom_call.1} parent=11 // pred_fallthru
          _
        // Predicated region
        $region29: #{tpu_custom_call.1} parent=11 // pred_check
          %p387 = pneg %p153
        $region30: #{tpu_custom_call.1} parent=11 // pred_check_branch
          %389 = sbr.rel (%p387) target = $region32
        $region31: #{tpu_custom_call.1} parent=11 // pred_region
          %391 = vsyncadd [#allocation12], 0
          %s393 = sshll.u32 %s4, 4
          %s394 = int_to_ptr.vmem [resolvable:$true] %s393
          %396 = dma.vmem_to_smem %s394, 128, [#allocation13], [#allocation12]
        $region32: #{tpu_custom_call.1} parent=11 // pred_fallthru
          _
        // Predicated region
        $region33: #{tpu_custom_call.1} parent=11 // pred_check
          %p397 = pneg %p174
        $region34: #{tpu_custom_call.1} parent=11 // pred_check_branch
          %399 = sbr.rel (%p397) target = $region36
        $region35: #{tpu_custom_call.1} parent=11 // pred_region
          %401 = vsyncadd [#allocation15], 0
          %s403 = sshll.u32 %s5, 4
          %s404 = int_to_ptr.vmem [resolvable:$true] %s403
          %406 = dma.vmem_to_smem %s404, 16, [#allocation14], [#allocation15]
        $region36: #{tpu_custom_call.1} parent=11 // pred_fallthru
          _
        // Predicated region
        $region37: #{tpu_custom_call.1} parent=11 // pred_check
          %p407 = pneg %p195
        $region38: #{tpu_custom_call.1} parent=11 // pred_check_branch
          %409 = sbr.rel (%p407) target = $region40
        $region39: #{tpu_custom_call.1} parent=11 // pred_region
          %411 = vsyncadd [#allocation15], 0
          %s413 = sshll.u32 %s6, 4
          %s414 = int_to_ptr.vmem [resolvable:$true] %s413
          %416 = dma.vmem_to_smem %s414, 128, [#allocation16], [#allocation15]
        $region40: #{tpu_custom_call.1} parent=11 // pred_fallthru
          _
        // Predicated region
        $region41: #{tpu_custom_call.1} parent=11 // pred_check
          %p417 = pneg %p216
        $region42: #{tpu_custom_call.1} parent=11 // pred_check_branch
          %419 = sbr.rel (%p417) target = $region44
        $region43: #{tpu_custom_call.1} parent=11 // pred_region
          _
        $region44: #{tpu_custom_call.1} parent=11 // pred_fallthru
          _
      $region12: #{tpu_custom_call.1} parent=5 // pred_fallthru
        _
      %p420 = scmp.lt.s32.totalorder %s36, 4
      // Predicated region
      $region45: #{tpu_custom_call.1} parent=5 // pred_check
        %p421 = pneg %p420
      $region46: #{tpu_custom_call.1} parent=5 // pred_check_branch
        %423 = sbr.rel (%p421) target = $region48
      $region47: #{tpu_custom_call.1} parent=5 // pred_region
        // Predicated region
        $region49: #{tpu_custom_call.1} parent=47 // pred_check
          %p424 = pneg %p240
        $region50: #{tpu_custom_call.1} parent=47 // pred_check_branch
          %426 = sbr.rel (%p424) target = $region52
        $region51: #{tpu_custom_call.1} parent=47 // pred_region
          %s427 = sand.u32 %s230, 1
          %s428 = scalar_lea.sflag [#allocation4], %s427
          %s429 = sand.u32 %s230, 1
          %s430 = smul.addr %s429, 48
          %s431 = scalar_lea.vmem [#allocation17], %s430
          %s432 = smul.u32 %s43, 2
          %s433 = sadd.s32 %s432, %s44
          %435 = vsyncadd %s428, 0
          %s436 = smul.addr %s433, 8
          %s437 = scalar_lea.hbm %s8, %s436
          %s438 = sshll.u32 %s437, 4
          %s439 = int_to_ptr.hbm [resolvable:$true] %s438
          %s440 = sshll.u32 %s431, 4
          %s441 = int_to_ptr.vmem [resolvable:$true] %s440
          %446 = dma.hbm_to_vmem [thread:$0]  %s439, 768, %s441, %s428, 512, 128, 8
        $region52: #{tpu_custom_call.1} parent=47 // pred_fallthru
          _
        // Predicated region
        $region53: #{tpu_custom_call.1} parent=47 // pred_check
          %p447 = pneg %p270
        $region54: #{tpu_custom_call.1} parent=47 // pred_check_branch
          %449 = sbr.rel (%p447) target = $region56
        $region55: #{tpu_custom_call.1} parent=47 // pred_region
          %s450 = sand.u32 %s260, 1
          %s451 = scalar_lea.sflag [#allocation19], %s450
          %s452 = sand.u32 %s260, 1
          %s453 = smul.addr %s452, 48
          %s454 = scalar_lea.vmem [#allocation18], %s453
          %s455 = smul.u32 %s43, 2
          %s456 = sadd.s32 %s455, %s44
          %458 = vsyncadd %s451, 0
          %s459 = smul.addr %s456, 8
          %s460 = scalar_lea.hbm %s9, %s459
          %s461 = sshll.u32 %s460, 4
          %s462 = int_to_ptr.hbm [resolvable:$true] %s461
          %s463 = sshll.u32 %s454, 4
          %s464 = int_to_ptr.vmem [resolvable:$true] %s463
          %469 = dma.hbm_to_vmem [thread:$0]  %s462, 768, %s464, %s451, 512, 128, 8
        $region56: #{tpu_custom_call.1} parent=47 // pred_fallthru
          _
      $region48: #{tpu_custom_call.1} parent=5 // pred_fallthru
        _
      %p470 = scmp.le.s32.totalorder 1, %s36
      %p471 = scmp.lt.s32.totalorder %s36, 5
      %p472 = pnand %p470, %p471
      %p473 = pneg %p472
      // Predicated region
      $region57: #{tpu_custom_call.1} parent=5 // pred_check
        _
      $region58: #{tpu_custom_call.1} parent=5 // pred_check_branch
        %475 = sbr.rel (%p472) target = $region60
      $region59: #{tpu_custom_call.1} parent=5 // pred_region
        %s476 = ssub.s32 %s36, 1
        // Predicated region
        $region61: #{tpu_custom_call.1} parent=59 // pred_check
          %p477 = pneg %p69
        $region62: #{tpu_custom_call.1} parent=59 // pred_check_branch
          %479 = sbr.rel (%p477) target = $region64
        $region63: #{tpu_custom_call.1} parent=59 // pred_region
          %481 = dma.done [#allocation6], 64
        $region64: #{tpu_custom_call.1} parent=59 // pred_fallthru
          _
        // Predicated region
        $region65: #{tpu_custom_call.1} parent=59 // pred_check
          %p482 = pneg %p90
        $region66: #{tpu_custom_call.1} parent=59 // pred_check_branch
          %484 = sbr.rel (%p482) target = $region68
        $region67: #{tpu_custom_call.1} parent=59 // pred_region
          %486 = dma.done [#allocation7], 16
        $region68: #{tpu_custom_call.1} parent=59 // pred_fallthru
          _
        // Predicated region
        $region69: #{tpu_custom_call.1} parent=59 // pred_check
          %p487 = pneg %p111
        $region70: #{tpu_custom_call.1} parent=59 // pred_check_branch
          %489 = sbr.rel (%p487) target = $region72
        $region71: #{tpu_custom_call.1} parent=59 // pred_region
          %491 = dma.done [#allocation10], 64
        $region72: #{tpu_custom_call.1} parent=59 // pred_fallthru
          _
        // Predicated region
        $region73: #{tpu_custom_call.1} parent=59 // pred_check
          %p492 = pneg %p132
        $region74: #{tpu_custom_call.1} parent=59 // pred_check_branch
          %494 = sbr.rel (%p492) target = $region76
        $region75: #{tpu_custom_call.1} parent=59 // pred_region
          %496 = dma.done [#allocation12], 16
        $region76: #{tpu_custom_call.1} parent=59 // pred_fallthru
          _
        // Predicated region
        $region77: #{tpu_custom_call.1} parent=59 // pred_check
          %p497 = pneg %p153
        $region78: #{tpu_custom_call.1} parent=59 // pred_check_branch
          %499 = sbr.rel (%p497) target = $region80
        $region79: #{tpu_custom_call.1} parent=59 // pred_region
          %501 = dma.done [#allocation12], 128
        $region80: #{tpu_custom_call.1} parent=59 // pred_fallthru
          _
        // Predicated region
        $region81: #{tpu_custom_call.1} parent=59 // pred_check
          %p502 = pneg %p174
        $region82: #{tpu_custom_call.1} parent=59 // pred_check_branch
          %504 = sbr.rel (%p502) target = $region84
        $region83: #{tpu_custom_call.1} parent=59 // pred_region
          %506 = dma.done [#allocation15], 16
        $region84: #{tpu_custom_call.1} parent=59 // pred_fallthru
          _
        // Predicated region
        $region85: #{tpu_custom_call.1} parent=59 // pred_check
          %p507 = pneg %p195
        $region86: #{tpu_custom_call.1} parent=59 // pred_check_branch
          %509 = sbr.rel (%p507) target = $region88
        $region87: #{tpu_custom_call.1} parent=59 // pred_region
          %511 = dma.done [#allocation15], 128
        $region88: #{tpu_custom_call.1} parent=59 // pred_fallthru
          _
        %s512 = sand.u32 %s233, 1
        %s513 = scalar_lea.sflag [#allocation4], %s512
        %s514 = sand.u32 %s233, 1
        %s515 = smul.addr %s514, 48
        %s516 = scalar_lea.vmem [#allocation17], %s515
        // Predicated region
        $region89: #{tpu_custom_call.1} parent=59 // pred_check
          %p517 = pneg %p246
        $region90: #{tpu_custom_call.1} parent=59 // pred_check_branch
          %519 = sbr.rel (%p517) target = $region92
        $region91: #{tpu_custom_call.1} parent=59 // pred_region
          %521 = dma.done %s513, 768
        $region92: #{tpu_custom_call.1} parent=59 // pred_fallthru
          _
        %s522 = sand.u32 %s263, 1
        %s523 = scalar_lea.sflag [#allocation19], %s522
        %s524 = sand.u32 %s263, 1
        %s525 = smul.addr %s524, 48
        %s526 = scalar_lea.vmem [#allocation18], %s525
        // Predicated region
        $region93: #{tpu_custom_call.1} parent=59 // pred_check
          %p527 = pneg %p276
        $region94: #{tpu_custom_call.1} parent=59 // pred_check_branch
          %529 = sbr.rel (%p527) target = $region96
        $region95: #{tpu_custom_call.1} parent=59 // pred_region
          %531 = dma.done %s523, 768
        $region96: #{tpu_custom_call.1} parent=59 // pred_fallthru
          _
        %532 = sfence
        %p533 = pneg %p69
        %p534 = pneg %p66
        %p535 = pneg %p90
        %p536 = pneg %p87
        %p537 = pneg %p111
        %p538 = pneg %p108
        %p539 = pneg %p132
        %p540 = pneg %p129
        %p541 = pneg %p153
        %p542 = pneg %p150
        %p543 = pneg %p174
        %p544 = pneg %p171
        %p545 = pneg %p195
        %p546 = pneg %p192
        %p547 = pneg %p216
        %p548 = pneg %p213
        %s549 = sand.u32 %s233, 1
        %s550 = scalar_lea.sflag [#allocation4], %s549
        %s551 = sand.u32 %s233, 1
        %s552 = smul.addr %s551, 48
        %s553 = scalar_lea.vmem [#allocation17], %s552
        %p554 = pneg %p246
        %p555 = pneg %p243
        %s556 = sand.u32 %s263, 1
        %s557 = scalar_lea.sflag [#allocation19], %s556
        %s558 = sand.u32 %s263, 1
        %s559 = smul.addr %s558, 48
        %s560 = scalar_lea.vmem [#allocation18], %s559
        %p561 = pneg %p276
        %p562 = pneg %p273
        %p563 = pneg %p306
        %p564 = pneg %p303
        %s565 = sand.u32 %s293, 1
        %s566 = scalar_lea.sflag [#allocation5], %s565
        %s567 = sand.u32 %s293, 1
        %s568 = smul.addr %s567, 48
        %s569 = scalar_lea.vmem [#allocation20], %s568
        %p570 = pneg %p332
        %p571 = pneg %p329
        %s572 = sand.u32 %s319, 1
        %s573 = scalar_lea.sflag [#allocation22], %s572
        %s574 = sand.u32 %s319, 1
        %s575 = smul.addr %s574, 48
        %s576 = scalar_lea.vmem [#allocation21], %s575
        %s577 = smul.u32 %s45, 2
        %s578 = sadd.s32 %s577, %s46
        %s579 = smul.u32 %s45, 2
        %s580 = sadd.s32 %s579, %s46
        %s581 = smul.u32 %s45, 2
        %s582 = sadd.s32 %s581, %s46
        %p583 = scmp.eq.s32.totalorder %s46, 0
        // Predicated region
        $region97: #{tpu_custom_call.1} parent=59 // pred_check
          %p584 = pneg %p583
        $region98: #{tpu_custom_call.1} parent=59 // pred_check_branch
          %586 = sbr.rel (%p584) target = $region100
        $region99: #{tpu_custom_call.1} parent=59 // pred_region
          %587 = vst [vmem:[%s576] sm:$0xff] 0.0
          %588 = vst [vmem:[%s576 + $0x8] sm:$0xff] 0.0
          %589 = vst [vmem:[%s576 + $0x10] sm:$0xff] 0.0
          %590 = vst [vmem:[%s576 + $0x18] sm:$0xff] 0.0
          %591 = vst [vmem:[%s576 + $0x20] sm:$0xff] 0.0
          %592 = vst [vmem:[%s576 + $0x28] sm:$0xff] 0.0
        $region100: #{tpu_custom_call.1} parent=59 // pred_fallthru
          _
        %v593 = vld [vmem:[%s516] sm:$0xff]
        %v594 = vld [vmem:[%s516 + $0x8] sm:$0xff]
        %v595 = vld [vmem:[%s516 + $0x10] sm:$0xff]
        %v596 = vld [vmem:[%s516 + $0x18] sm:$0xff]
        %v597 = vld [vmem:[%s516 + $0x20] sm:$0xff]
        %v598 = vld [vmem:[%s516 + $0x28] sm:$0xff]
        %v599 = vld [vmem:[%s526] sm:$0xff]
        %v600 = vld [vmem:[%s526 + $0x8] sm:$0xff]
        %v601 = vld [vmem:[%s526 + $0x10] sm:$0xff]
        %v602 = vld [vmem:[%s526 + $0x18] sm:$0xff]
        %v603 = vld [vmem:[%s526 + $0x20] sm:$0xff]
        %v604 = vld [vmem:[%s526 + $0x28] sm:$0xff]
        %s605 = sld [smem:[#allocation3]]
        %v606 = vstv %s605
        %v607 = vmul.f32 %v593, %v606
        %v608 = vmul.f32 %v596, %v606
        %s609 = sld [smem:[#allocation8]]
        %v610 = vstv %s609
        %v611 = vadd.f32 %v607, %v610
        %v612 = vadd.f32 %v608, %v610
        %s613 = sld [smem:[#allocation3 + $0x80]]
        %v614 = vstv %s613
        %v615 = vmul.f32 %v594, %v614
        %v616 = vmul.f32 %v597, %v614
        %v617 = vadd.f32 %v611, %v615
        %v618 = vadd.f32 %v612, %v616
        %s619 = sld [smem:[#allocation3 + $0x100]]
        %v620 = vstv %s619
        %v621 = vmul.f32 %v595, %v620
        %v622 = vmul.f32 %v598, %v620
        %v623 = vadd.f32 %v617, %v621
        %v624 = vadd.f32 %v618, %v622
        %v625 = vtanh.pop %v623
        %v626 = vtanh.pop %v624
        %s627 = sld [smem:[#allocation3 + $0x1]]
        %v628 = vstv %s627
        %v629 = vmul.f32 %v593, %v628
        %v630 = vmul.f32 %v596, %v628
        %s631 = sld [smem:[#allocation8 + $0x1]]
        %v632 = vstv %s631
        %v633 = vadd.f32 %v629, %v632
        %v634 = vadd.f32 %v630, %v632
        %s635 = sld [smem:[#allocation3 + $0x81]]
        %v636 = vstv %s635
        %v637 = vmul.f32 %v594, %v636
        %v638 = vmul.f32 %v597, %v636
        %v639 = vadd.f32 %v633, %v637
        %v640 = vadd.f32 %v634, %v638
        %s641 = sld [smem:[#allocation3 + $0x101]]
        %v642 = vstv %s641
        %v643 = vmul.f32 %v595, %v642
        %v644 = vmul.f32 %v598, %v642
        %v645 = vadd.f32 %v639, %v643
        %v646 = vadd.f32 %v640, %v644
        %v647 = vtanh.pop %v645
        %v648 = vtanh.pop %v646
        %s649 = sld [smem:[#allocation3 + $0x2]]
        %v650 = vstv %s649
        %v651 = vmul.f32 %v593, %v650
        %v652 = vmul.f32 %v596, %v650
        %s653 = sld [smem:[#allocation8 + $0x2]]
        %v654 = vstv %s653
        %v655 = vadd.f32 %v651, %v654
        %v656 = vadd.f32 %v652, %v654
        %s657 = sld [smem:[#allocation3 + $0x82]]
        %v658 = vstv %s657
        %v659 = vmul.f32 %v594, %v658
        %v660 = vmul.f32 %v597, %v658
        %v661 = vadd.f32 %v655, %v659
        %v662 = vadd.f32 %v656, %v660
        %s663 = sld [smem:[#allocation3 + $0x102]]
        %v664 = vstv %s663
        %v665 = vmul.f32 %v595, %v664
        %v666 = vmul.f32 %v598, %v664
        %v667 = vadd.f32 %v661, %v665
        %v668 = vadd.f32 %v662, %v666
        %v669 = vtanh.pop %v667
        %v670 = vtanh.pop %v668
        %v671 = vadd.f32 %v625, 1.0
        %v672 = vadd.f32 %v626, 1.0
        %v673 = vmul.f32 %v671, 0.5
        %v674 = vmul.f32 %v672, 0.5
        %v675 = vmax.f32 %v673, 0.0
        %v676 = vmax.f32 %v674, 0.0
        %v677 = vmin.f32 %v675, 1.0
        %v678 = vmin.f32 %v676, 1.0
        %v679 = vadd.f32 %v647, 1.0
        %v680 = vadd.f32 %v648, 1.0
        %v681 = vmul.f32 %v679, 0.5
        %v682 = vmul.f32 %v680, 0.5
        %v683 = vmax.f32 %v681, 0.0
        %v684 = vmax.f32 %v682, 0.0
        %v685 = vmin.f32 %v683, 1.0
        %v686 = vmin.f32 %v684, 1.0
        %v687 = vadd.f32 %v669, 1.0
        %v688 = vadd.f32 %v670, 1.0
        %v689 = vmul.f32 %v687, 0.5
        %v690 = vmul.f32 %v688, 0.5
        %v691 = vmax.f32 %v689, 0.0
        %v692 = vmax.f32 %v690, 0.0
        %v693 = vmin.f32 %v691, 1.0
        %v694 = vmin.f32 %v692, 1.0
        %695 = vst [vmem:[%s569] sm:$0xff] %v677
        %696 = vst [vmem:[%s569 + $0x8] sm:$0xff] %v685
        %697 = vst [vmem:[%s569 + $0x10] sm:$0xff] %v693
        %698 = vst [vmem:[%s569 + $0x18] sm:$0xff] %v678
        %699 = vst [vmem:[%s569 + $0x20] sm:$0xff] %v686
        %700 = vst [vmem:[%s569 + $0x28] sm:$0xff] %v694
        %s701 = sld [smem:[#allocation9]]
        %v702 = vstv %s701
        %v703 = vmul.f32 %v625, %v702
        %v704 = vmul.f32 %v626, %v702
        %s705 = sld [smem:[#allocation11]]
        %v706 = vstv %s705
        %v707 = vadd.f32 %v703, %v706
        %v708 = vadd.f32 %v704, %v706
        %s709 = sld [smem:[#allocation9 + $0x80]]
        %v710 = vstv %s709
        %v711 = vmul.f32 %v647, %v710
        %v712 = vmul.f32 %v648, %v710
        %v713 = vadd.f32 %v707, %v711
        %v714 = vadd.f32 %v708, %v712
        %s715 = sld [smem:[#allocation9 + $0x100]]
        %v716 = vstv %s715
        %v717 = vmul.f32 %v669, %v716
        %v718 = vmul.f32 %v670, %v716
        %v719 = vadd.f32 %v713, %v717
        %v720 = vadd.f32 %v714, %v718
        %vm721 = vcmp.ge.f32.partialorder %v719, 0.0
        %vm722 = vcmp.ge.f32.partialorder %v720, 0.0
        %v723 = vmul.f32 %v719, 0.2
        %v724 = vmul.f32 %v720, 0.2
        %v725 = vsel %vm721, %v719, %v723
        %v726 = vsel %vm722, %v720, %v724
        %s727 = sld [smem:[#allocation9 + $0x1]]
        %v728 = vstv %s727
        %v729 = vmul.f32 %v625, %v728
        %v730 = vmul.f32 %v626, %v728
        %s731 = sld [smem:[#allocation11 + $0x1]]
        %v732 = vstv %s731
        %v733 = vadd.f32 %v729, %v732
        %v734 = vadd.f32 %v730, %v732
        %s735 = sld [smem:[#allocation9 + $0x81]]
        %v736 = vstv %s735
        %v737 = vmul.f32 %v647, %v736
        %v738 = vmul.f32 %v648, %v736
        %v739 = vadd.f32 %v733, %v737
        %v740 = vadd.f32 %v734, %v738
        %s741 = sld [smem:[#allocation9 + $0x101]]
        %v742 = vstv %s741
        %v743 = vmul.f32 %v669, %v742
        %v744 = vmul.f32 %v670, %v742
        %v745 = vadd.f32 %v739, %v743
        %v746 = vadd.f32 %v740, %v744
        %vm747 = vcmp.ge.f32.partialorder %v745, 0.0
        %vm748 = vcmp.ge.f32.partialorder %v746, 0.0
        %v749 = vmul.f32 %v745, 0.2
        %v750 = vmul.f32 %v746, 0.2
        %v751 = vsel %vm747, %v745, %v749
        %v752 = vsel %vm748, %v746, %v750
        %s753 = sld [smem:[#allocation9 + $0x2]]
        %v754 = vstv %s753
        %v755 = vmul.f32 %v625, %v754
        %v756 = vmul.f32 %v626, %v754
        %s757 = sld [smem:[#allocation11 + $0x2]]
        %v758 = vstv %s757
        %v759 = vadd.f32 %v755, %v758
        %v760 = vadd.f32 %v756, %v758
        %s761 = sld [smem:[#allocation9 + $0x82]]
        %v762 = vstv %s761
        %v763 = vmul.f32 %v647, %v762
        %v764 = vmul.f32 %v648, %v762
        %v765 = vadd.f32 %v759, %v763
        %v766 = vadd.f32 %v760, %v764
        %s767 = sld [smem:[#allocation9 + $0x102]]
        %v768 = vstv %s767
        %v769 = vmul.f32 %v669, %v768
        %v770 = vmul.f32 %v670, %v768
        %v771 = vadd.f32 %v765, %v769
        %v772 = vadd.f32 %v766, %v770
        %vm773 = vcmp.ge.f32.partialorder %v771, 0.0
        %vm774 = vcmp.ge.f32.partialorder %v772, 0.0
        %v775 = vmul.f32 %v771, 0.2
        %v776 = vmul.f32 %v772, 0.2
        %v777 = vsel %vm773, %v771, %v775
        %v778 = vsel %vm774, %v772, %v776
        %s779 = sld [smem:[#allocation9 + $0x3]]
        %v780 = vstv %s779
        %v781 = vmul.f32 %v625, %v780
        %v782 = vmul.f32 %v626, %v780
        %s783 = sld [smem:[#allocation11 + $0x3]]
        %v784 = vstv %s783
        %v785 = vadd.f32 %v781, %v784
        %v786 = vadd.f32 %v782, %v784
        %s787 = sld [smem:[#allocation9 + $0x83]]
        %v788 = vstv %s787
        %v789 = vmul.f32 %v647, %v788
        %v790 = vmul.f32 %v648, %v788
        %v791 = vadd.f32 %v785, %v789
        %v792 = vadd.f32 %v786, %v790
        %s793 = sld [smem:[#allocation9 + $0x103]]
        %v794 = vstv %s793
        %v795 = vmul.f32 %v669, %v794
        %v796 = vmul.f32 %v670, %v794
        %v797 = vadd.f32 %v791, %v795
        %v798 = vadd.f32 %v792, %v796
        %vm799 = vcmp.ge.f32.partialorder %v797, 0.0
        %vm800 = vcmp.ge.f32.partialorder %v798, 0.0
        %v801 = vmul.f32 %v797, 0.2
        %v802 = vmul.f32 %v798, 0.2
        %v803 = vsel %vm799, %v797, %v801
        %v804 = vsel %vm800, %v798, %v802
        %s805 = sld [smem:[#allocation9 + $0x4]]
        %v806 = vstv %s805
        %v807 = vmul.f32 %v625, %v806
        %v808 = vmul.f32 %v626, %v806
        %s809 = sld [smem:[#allocation11 + $0x4]]
        %v810 = vstv %s809
        %v811 = vadd.f32 %v807, %v810
        %v812 = vadd.f32 %v808, %v810
        %s813 = sld [smem:[#allocation9 + $0x84]]
        %v814 = vstv %s813
        %v815 = vmul.f32 %v647, %v814
        %v816 = vmul.f32 %v648, %v814
        %v817 = vadd.f32 %v811, %v815
        %v818 = vadd.f32 %v812, %v816
        %s819 = sld [smem:[#allocation9 + $0x104]]
        %v820 = vstv %s819
        %v821 = vmul.f32 %v669, %v820
        %v822 = vmul.f32 %v670, %v820
        %v823 = vadd.f32 %v817, %v821
        %v824 = vadd.f32 %v818, %v822
        %vm825 = vcmp.ge.f32.partialorder %v823, 0.0
        %vm826 = vcmp.ge.f32.partialorder %v824, 0.0
        %v827 = vmul.f32 %v823, 0.2
        %v828 = vmul.f32 %v824, 0.2
        %v829 = vsel %vm825, %v823, %v827
        %v830 = vsel %vm826, %v824, %v828
        %s831 = sld [smem:[#allocation9 + $0x5]]
        %v832 = vstv %s831
        %v833 = vmul.f32 %v625, %v832
        %v834 = vmul.f32 %v626, %v832
        %s835 = sld [smem:[#allocation11 + $0x5]]
        %v836 = vstv %s835
        %v837 = vadd.f32 %v833, %v836
        %v838 = vadd.f32 %v834, %v836
        %s839 = sld [smem:[#allocation9 + $0x85]]
        %v840 = vstv %s839
        %v841 = vmul.f32 %v647, %v840
        %v842 = vmul.f32 %v648, %v840
        %v843 = vadd.f32 %v837, %v841
        %v844 = vadd.f32 %v838, %v842
        %s845 = sld [smem:[#allocation9 + $0x105]]
        %v846 = vstv %s845
        %v847 = vmul.f32 %v669, %v846
        %v848 = vmul.f32 %v670, %v846
        %v849 = vadd.f32 %v843, %v847
        %v850 = vadd.f32 %v844, %v848
        %vm851 = vcmp.ge.f32.partialorder %v849, 0.0
        %vm852 = vcmp.ge.f32.partialorder %v850, 0.0
        %v853 = vmul.f32 %v849, 0.2
        %v854 = vmul.f32 %v850, 0.2
        %v855 = vsel %vm851, %v849, %v853
        %v856 = vsel %vm852, %v850, %v854
        %s857 = sld [smem:[#allocation9 + $0x6]]
        %v858 = vstv %s857
        %v859 = vmul.f32 %v625, %v858
        %v860 = vmul.f32 %v626, %v858
        %s861 = sld [smem:[#allocation11 + $0x6]]
        %v862 = vstv %s861
        %v863 = vadd.f32 %v859, %v862
        %v864 = vadd.f32 %v860, %v862
        %s865 = sld [smem:[#allocation9 + $0x86]]
        %v866 = vstv %s865
        %v867 = vmul.f32 %v647, %v866
        %v868 = vmul.f32 %v648, %v866
        %v869 = vadd.f32 %v863, %v867
        %v870 = vadd.f32 %v864, %v868
        %s871 = sld [smem:[#allocation9 + $0x106]]
        %v872 = vstv %s871
        %v873 = vmul.f32 %v669, %v872
        %v874 = vmul.f32 %v670, %v872
        %v875 = vadd.f32 %v869, %v873
        %v876 = vadd.f32 %v870, %v874
        %vm877 = vcmp.ge.f32.partialorder %v875, 0.0
        %vm878 = vcmp.ge.f32.partialorder %v876, 0.0
        %v879 = vmul.f32 %v875, 0.2
        %v880 = vmul.f32 %v876, 0.2
        %v881 = vsel %vm877, %v875, %v879
        %v882 = vsel %vm878, %v876, %v880
        %s883 = sld [smem:[#allocation9 + $0x7]]
        %v884 = vstv %s883
        %v885 = vmul.f32 %v625, %v884
        %v886 = vmul.f32 %v626, %v884
        %s887 = sld [smem:[#allocation11 + $0x7]]
        %v888 = vstv %s887
        %v889 = vadd.f32 %v885, %v888
        %v890 = vadd.f32 %v886, %v888
        %s891 = sld [smem:[#allocation9 + $0x87]]
        %v892 = vstv %s891
        %v893 = vmul.f32 %v647, %v892
        %v894 = vmul.f32 %v648, %v892
        %v895 = vadd.f32 %v889, %v893
        %v896 = vadd.f32 %v890, %v894
        %s897 = sld [smem:[#allocation9 + $0x107]]
        %v898 = vstv %s897
        %v899 = vmul.f32 %v669, %v898
        %v900 = vmul.f32 %v670, %v898
        %v901 = vadd.f32 %v895, %v899
        %v902 = vadd.f32 %v896, %v900
        %vm903 = vcmp.ge.f32.partialorder %v901, 0.0
        %vm904 = vcmp.ge.f32.partialorder %v902, 0.0
        %v905 = vmul.f32 %v901, 0.2
        %v906 = vmul.f32 %v902, 0.2
        %v907 = vsel %vm903, %v901, %v905
        %v908 = vsel %vm904, %v902, %v906
        %s909 = sld [smem:[#allocation13]]
        %v910 = vstv %s909
        %v911 = vmul.f32 %v725, %v910
        %v912 = vmul.f32 %v726, %v910
        %s913 = sld [smem:[#allocation14]]
        %v914 = vstv %s913
        %v915 = vadd.f32 %v911, %v914
        %v916 = vadd.f32 %v912, %v914
        %s917 = sld [smem:[#allocation13 + $0x80]]
        %v918 = vstv %s917
        %v919 = vmul.f32 %v751, %v918
        %v920 = vmul.f32 %v752, %v918
        %v921 = vadd.f32 %v915, %v919
        %v922 = vadd.f32 %v916, %v920
        %s923 = sld [smem:[#allocation13 + $0x100]]
        %v924 = vstv %s923
        %v925 = vmul.f32 %v777, %v924
        %v926 = vmul.f32 %v778, %v924
        %v927 = vadd.f32 %v921, %v925
        %v928 = vadd.f32 %v922, %v926
        %s929 = sld [smem:[#allocation13 + $0x180]]
        %v930 = vstv %s929
        %v931 = vmul.f32 %v803, %v930
        %v932 = vmul.f32 %v804, %v930
        %v933 = vadd.f32 %v927, %v931
        %v934 = vadd.f32 %v928, %v932
        %s935 = sld [smem:[#allocation13 + $0x200]]
        %v936 = vstv %s935
        %v937 = vmul.f32 %v829, %v936
        %v938 = vmul.f32 %v830, %v936
        %v939 = vadd.f32 %v933, %v937
        %v940 = vadd.f32 %v934, %v938
        %s941 = sld [smem:[#allocation13 + $0x280]]
        %v942 = vstv %s941
        %v943 = vmul.f32 %v855, %v942
        %v944 = vmul.f32 %v856, %v942
        %v945 = vadd.f32 %v939, %v943
        %v946 = vadd.f32 %v940, %v944
        %s947 = sld [smem:[#allocation13 + $0x300]]
        %v948 = vstv %s947
        %v949 = vmul.f32 %v881, %v948
        %v950 = vmul.f32 %v882, %v948
        %v951 = vadd.f32 %v945, %v949
        %v952 = vadd.f32 %v946, %v950
        %s953 = sld [smem:[#allocation13 + $0x380]]
        %v954 = vstv %s953
        %v955 = vmul.f32 %v907, %v954
        %v956 = vmul.f32 %v908, %v954
        %v957 = vadd.f32 %v951, %v955
        %v958 = vadd.f32 %v952, %v956
        %vm959 = vcmp.ge.f32.partialorder %v957, 0.0
        %vm960 = vcmp.ge.f32.partialorder %v958, 0.0
        %v961 = vmul.f32 %v957, 0.2
        %v962 = vmul.f32 %v958, 0.2
        %v963 = vsel %vm959, %v957, %v961
        %v964 = vsel %vm960, %v958, %v962
        %s965 = sld [smem:[#allocation13 + $0x1]]
        %v966 = vstv %s965
        %v967 = vmul.f32 %v725, %v966
        %v968 = vmul.f32 %v726, %v966
        %s969 = sld [smem:[#allocation14 + $0x1]]
        %v970 = vstv %s969
        %v971 = vadd.f32 %v967, %v970
        %v972 = vadd.f32 %v968, %v970
        %s973 = sld [smem:[#allocation13 + $0x81]]
        %v974 = vstv %s973
        %v975 = vmul.f32 %v751, %v974
        %v976 = vmul.f32 %v752, %v974
        %v977 = vadd.f32 %v971, %v975
        %v978 = vadd.f32 %v972, %v976
        %s979 = sld [smem:[#allocation13 + $0x101]]
        %v980 = vstv %s979
        %v981 = vmul.f32 %v777, %v980
        %v982 = vmul.f32 %v778, %v980
        %v983 = vadd.f32 %v977, %v981
        %v984 = vadd.f32 %v978, %v982
        %s985 = sld [smem:[#allocation13 + $0x181]]
        %v986 = vstv %s985
        %v987 = vmul.f32 %v803, %v986
        %v988 = vmul.f32 %v804, %v986
        %v989 = vadd.f32 %v983, %v987
        %v990 = vadd.f32 %v984, %v988
        %s991 = sld [smem:[#allocation13 + $0x201]]
        %v992 = vstv %s991
        %v993 = vmul.f32 %v829, %v992
        %v994 = vmul.f32 %v830, %v992
        %v995 = vadd.f32 %v989, %v993
        %v996 = vadd.f32 %v990, %v994
        %s997 = sld [smem:[#allocation13 + $0x281]]
        %v998 = vstv %s997
        %v999 = vmul.f32 %v855, %v998
        %v1000 = vmul.f32 %v856, %v998
        %v1001 = vadd.f32 %v995, %v999
        %v1002 = vadd.f32 %v996, %v1000
        %s1003 = sld [smem:[#allocation13 + $0x301]]
        %v1004 = vstv %s1003
        %v1005 = vmul.f32 %v881, %v1004
        %v1006 = vmul.f32 %v882, %v1004
        %v1007 = vadd.f32 %v1001, %v1005
        %v1008 = vadd.f32 %v1002, %v1006
        %s1009 = sld [smem:[#allocation13 + $0x381]]
        %v1010 = vstv %s1009
        %v1011 = vmul.f32 %v907, %v1010
        %v1012 = vmul.f32 %v908, %v1010
        %v1013 = vadd.f32 %v1007, %v1011
        %v1014 = vadd.f32 %v1008, %v1012
        %vm1015 = vcmp.ge.f32.partialorder %v1013, 0.0
        %vm1016 = vcmp.ge.f32.partialorder %v1014, 0.0
        %v1017 = vmul.f32 %v1013, 0.2
        %v1018 = vmul.f32 %v1014, 0.2
        %v1019 = vsel %vm1015, %v1013, %v1017
        %v1020 = vsel %vm1016, %v1014, %v1018
        %s1021 = sld [smem:[#allocation13 + $0x2]]
        %v1022 = vstv %s1021
        %v1023 = vmul.f32 %v725, %v1022
        %v1024 = vmul.f32 %v726, %v1022
        %s1025 = sld [smem:[#allocation14 + $0x2]]
        %v1026 = vstv %s1025
        %v1027 = vadd.f32 %v1023, %v1026
        %v1028 = vadd.f32 %v1024, %v1026
        %s1029 = sld [smem:[#allocation13 + $0x82]]
        %v1030 = vstv %s1029
        %v1031 = vmul.f32 %v751, %v1030
        %v1032 = vmul.f32 %v752, %v1030
        %v1033 = vadd.f32 %v1027, %v1031
        %v1034 = vadd.f32 %v1028, %v1032
        %s1035 = sld [smem:[#allocation13 + $0x102]]
        %v1036 = vstv %s1035
        %v1037 = vmul.f32 %v777, %v1036
        %v1038 = vmul.f32 %v778, %v1036
        %v1039 = vadd.f32 %v1033, %v1037
        %v1040 = vadd.f32 %v1034, %v1038
        %s1041 = sld [smem:[#allocation13 + $0x182]]
        %v1042 = vstv %s1041
        %v1043 = vmul.f32 %v803, %v1042
        %v1044 = vmul.f32 %v804, %v1042
        %v1045 = vadd.f32 %v1039, %v1043
        %v1046 = vadd.f32 %v1040, %v1044
        %s1047 = sld [smem:[#allocation13 + $0x202]]
        %v1048 = vstv %s1047
        %v1049 = vmul.f32 %v829, %v1048
        %v1050 = vmul.f32 %v830, %v1048
        %v1051 = vadd.f32 %v1045, %v1049
        %v1052 = vadd.f32 %v1046, %v1050
        %s1053 = sld [smem:[#allocation13 + $0x282]]
        %v1054 = vstv %s1053
        %v1055 = vmul.f32 %v855, %v1054
        %v1056 = vmul.f32 %v856, %v1054
        %v1057 = vadd.f32 %v1051, %v1055
        %v1058 = vadd.f32 %v1052, %v1056
        %s1059 = sld [smem:[#allocation13 + $0x302]]
        %v1060 = vstv %s1059
        %v1061 = vmul.f32 %v881, %v1060
        %v1062 = vmul.f32 %v882, %v1060
        %v1063 = vadd.f32 %v1057, %v1061
        %v1064 = vadd.f32 %v1058, %v1062
        %s1065 = sld [smem:[#allocation13 + $0x382]]
        %v1066 = vstv %s1065
        %v1067 = vmul.f32 %v907, %v1066
        %v1068 = vmul.f32 %v908, %v1066
        %v1069 = vadd.f32 %v1063, %v1067
        %v1070 = vadd.f32 %v1064, %v1068
        %vm1071 = vcmp.ge.f32.partialorder %v1069, 0.0
        %vm1072 = vcmp.ge.f32.partialorder %v1070, 0.0
        %v1073 = vmul.f32 %v1069, 0.2
        %v1074 = vmul.f32 %v1070, 0.2
        %v1075 = vsel %vm1071, %v1069, %v1073
        %v1076 = vsel %vm1072, %v1070, %v1074
        %s1077 = sld [smem:[#allocation13 + $0x3]]
        %v1078 = vstv %s1077
        %v1079 = vmul.f32 %v725, %v1078
        %v1080 = vmul.f32 %v726, %v1078
        %s1081 = sld [smem:[#allocation14 + $0x3]]
        %v1082 = vstv %s1081
        %v1083 = vadd.f32 %v1079, %v1082
        %v1084 = vadd.f32 %v1080, %v1082
        %s1085 = sld [smem:[#allocation13 + $0x83]]
        %v1086 = vstv %s1085
        %v1087 = vmul.f32 %v751, %v1086
        %v1088 = vmul.f32 %v752, %v1086
        %v1089 = vadd.f32 %v1083, %v1087
        %v1090 = vadd.f32 %v1084, %v1088
        %s1091 = sld [smem:[#allocation13 + $0x103]]
        %v1092 = vstv %s1091
        %v1093 = vmul.f32 %v777, %v1092
        %v1094 = vmul.f32 %v778, %v1092
        %v1095 = vadd.f32 %v1089, %v1093
        %v1096 = vadd.f32 %v1090, %v1094
        %s1097 = sld [smem:[#allocation13 + $0x183]]
        %v1098 = vstv %s1097
        %v1099 = vmul.f32 %v803, %v1098
        %v1100 = vmul.f32 %v804, %v1098
        %v1101 = vadd.f32 %v1095, %v1099
        %v1102 = vadd.f32 %v1096, %v1100
        %s1103 = sld [smem:[#allocation13 + $0x203]]
        %v1104 = vstv %s1103
        %v1105 = vmul.f32 %v829, %v1104
        %v1106 = vmul.f32 %v830, %v1104
        %v1107 = vadd.f32 %v1101, %v1105
        %v1108 = vadd.f32 %v1102, %v1106
        %s1109 = sld [smem:[#allocation13 + $0x283]]
        %v1110 = vstv %s1109
        %v1111 = vmul.f32 %v855, %v1110
        %v1112 = vmul.f32 %v856, %v1110
        %v1113 = vadd.f32 %v1107, %v1111
        %v1114 = vadd.f32 %v1108, %v1112
        %s1115 = sld [smem:[#allocation13 + $0x303]]
        %v1116 = vstv %s1115
        %v1117 = vmul.f32 %v881, %v1116
        %v1118 = vmul.f32 %v882, %v1116
        %v1119 = vadd.f32 %v1113, %v1117
        %v1120 = vadd.f32 %v1114, %v1118
        %s1121 = sld [smem:[#allocation13 + $0x383]]
        %v1122 = vstv %s1121
        %v1123 = vmul.f32 %v907, %v1122
        %v1124 = vmul.f32 %v908, %v1122
        %v1125 = vadd.f32 %v1119, %v1123
        %v1126 = vadd.f32 %v1120, %v1124
        %vm1127 = vcmp.ge.f32.partialorder %v1125, 0.0
        %vm1128 = vcmp.ge.f32.partialorder %v1126, 0.0
        %v1129 = vmul.f32 %v1125, 0.2
        %v1130 = vmul.f32 %v1126, 0.2
        %v1131 = vsel %vm1127, %v1125, %v1129
        %v1132 = vsel %vm1128, %v1126, %v1130
        %s1133 = sld [smem:[#allocation13 + $0x4]]
        %v1134 = vstv %s1133
        %v1135 = vmul.f32 %v725, %v1134
        %v1136 = vmul.f32 %v726, %v1134
        %s1137 = sld [smem:[#allocation14 + $0x4]]
        %v1138 = vstv %s1137
        %v1139 = vadd.f32 %v1135, %v1138
        %v1140 = vadd.f32 %v1136, %v1138
        %s1141 = sld [smem:[#allocation13 + $0x84]]
        %v1142 = vstv %s1141
        %v1143 = vmul.f32 %v751, %v1142
        %v1144 = vmul.f32 %v752, %v1142
        %v1145 = vadd.f32 %v1139, %v1143
        %v1146 = vadd.f32 %v1140, %v1144
        %s1147 = sld [smem:[#allocation13 + $0x104]]
        %v1148 = vstv %s1147
        %v1149 = vmul.f32 %v777, %v1148
        %v1150 = vmul.f32 %v778, %v1148
        %v1151 = vadd.f32 %v1145, %v1149
        %v1152 = vadd.f32 %v1146, %v1150
        %s1153 = sld [smem:[#allocation13 + $0x184]]
        %v1154 = vstv %s1153
        %v1155 = vmul.f32 %v803, %v1154
        %v1156 = vmul.f32 %v804, %v1154
        %v1157 = vadd.f32 %v1151, %v1155
        %v1158 = vadd.f32 %v1152, %v1156
        %s1159 = sld [smem:[#allocation13 + $0x204]]
        %v1160 = vstv %s1159
        %v1161 = vmul.f32 %v829, %v1160
        %v1162 = vmul.f32 %v830, %v1160
        %v1163 = vadd.f32 %v1157, %v1161
        %v1164 = vadd.f32 %v1158, %v1162
        %s1165 = sld [smem:[#allocation13 + $0x284]]
        %v1166 = vstv %s1165
        %v1167 = vmul.f32 %v855, %v1166
        %v1168 = vmul.f32 %v856, %v1166
        %v1169 = vadd.f32 %v1163, %v1167
        %v1170 = vadd.f32 %v1164, %v1168
        %s1171 = sld [smem:[#allocation13 + $0x304]]
        %v1172 = vstv %s1171
        %v1173 = vmul.f32 %v881, %v1172
        %v1174 = vmul.f32 %v882, %v1172
        %v1175 = vadd.f32 %v1169, %v1173
        %v1176 = vadd.f32 %v1170, %v1174
        %s1177 = sld [smem:[#allocation13 + $0x384]]
        %v1178 = vstv %s1177
        %v1179 = vmul.f32 %v907, %v1178
        %v1180 = vmul.f32 %v908, %v1178
        %v1181 = vadd.f32 %v1175, %v1179
        %v1182 = vadd.f32 %v1176, %v1180
        %vm1183 = vcmp.ge.f32.partialorder %v1181, 0.0
        %vm1184 = vcmp.ge.f32.partialorder %v1182, 0.0
        %v1185 = vmul.f32 %v1181, 0.2
        %v1186 = vmul.f32 %v1182, 0.2
        %v1187 = vsel %vm1183, %v1181, %v1185
        %v1188 = vsel %vm1184, %v1182, %v1186
        %s1189 = sld [smem:[#allocation13 + $0x5]]
        %v1190 = vstv %s1189
        %v1191 = vmul.f32 %v725, %v1190
        %v1192 = vmul.f32 %v726, %v1190
        %s1193 = sld [smem:[#allocation14 + $0x5]]
        %v1194 = vstv %s1193
        %v1195 = vadd.f32 %v1191, %v1194
        %v1196 = vadd.f32 %v1192, %v1194
        %s1197 = sld [smem:[#allocation13 + $0x85]]
        %v1198 = vstv %s1197
        %v1199 = vmul.f32 %v751, %v1198
        %v1200 = vmul.f32 %v752, %v1198
        %v1201 = vadd.f32 %v1195, %v1199
        %v1202 = vadd.f32 %v1196, %v1200
        %s1203 = sld [smem:[#allocation13 + $0x105]]
        %v1204 = vstv %s1203
        %v1205 = vmul.f32 %v777, %v1204
        %v1206 = vmul.f32 %v778, %v1204
        %v1207 = vadd.f32 %v1201, %v1205
        %v1208 = vadd.f32 %v1202, %v1206
        %s1209 = sld [smem:[#allocation13 + $0x185]]
        %v1210 = vstv %s1209
        %v1211 = vmul.f32 %v803, %v1210
        %v1212 = vmul.f32 %v804, %v1210
        %v1213 = vadd.f32 %v1207, %v1211
        %v1214 = vadd.f32 %v1208, %v1212
        %s1215 = sld [smem:[#allocation13 + $0x205]]
        %v1216 = vstv %s1215
        %v1217 = vmul.f32 %v829, %v1216
        %v1218 = vmul.f32 %v830, %v1216
        %v1219 = vadd.f32 %v1213, %v1217
        %v1220 = vadd.f32 %v1214, %v1218
        %s1221 = sld [smem:[#allocation13 + $0x285]]
        %v1222 = vstv %s1221
        %v1223 = vmul.f32 %v855, %v1222
        %v1224 = vmul.f32 %v856, %v1222
        %v1225 = vadd.f32 %v1219, %v1223
        %v1226 = vadd.f32 %v1220, %v1224
        %s1227 = sld [smem:[#allocation13 + $0x305]]
        %v1228 = vstv %s1227
        %v1229 = vmul.f32 %v881, %v1228
        %v1230 = vmul.f32 %v882, %v1228
        %v1231 = vadd.f32 %v1225, %v1229
        %v1232 = vadd.f32 %v1226, %v1230
        %s1233 = sld [smem:[#allocation13 + $0x385]]
        %v1234 = vstv %s1233
        %v1235 = vmul.f32 %v907, %v1234
        %v1236 = vmul.f32 %v908, %v1234
        %v1237 = vadd.f32 %v1231, %v1235
        %v1238 = vadd.f32 %v1232, %v1236
        %vm1239 = vcmp.ge.f32.partialorder %v1237, 0.0
        %vm1240 = vcmp.ge.f32.partialorder %v1238, 0.0
        %v1241 = vmul.f32 %v1237, 0.2
        %v1242 = vmul.f32 %v1238, 0.2
        %v1243 = vsel %vm1239, %v1237, %v1241
        %v1244 = vsel %vm1240, %v1238, %v1242
        %s1245 = sld [smem:[#allocation13 + $0x6]]
        %v1246 = vstv %s1245
        %v1247 = vmul.f32 %v725, %v1246
        %v1248 = vmul.f32 %v726, %v1246
        %s1249 = sld [smem:[#allocation14 + $0x6]]
        %v1250 = vstv %s1249
        %v1251 = vadd.f32 %v1247, %v1250
        %v1252 = vadd.f32 %v1248, %v1250
        %s1253 = sld [smem:[#allocation13 + $0x86]]
        %v1254 = vstv %s1253
        %v1255 = vmul.f32 %v751, %v1254
        %v1256 = vmul.f32 %v752, %v1254
        %v1257 = vadd.f32 %v1251, %v1255
        %v1258 = vadd.f32 %v1252, %v1256
        %s1259 = sld [smem:[#allocation13 + $0x106]]
        %v1260 = vstv %s1259
        %v1261 = vmul.f32 %v777, %v1260
        %v1262 = vmul.f32 %v778, %v1260
        %v1263 = vadd.f32 %v1257, %v1261
        %v1264 = vadd.f32 %v1258, %v1262
        %s1265 = sld [smem:[#allocation13 + $0x186]]
        %v1266 = vstv %s1265
        %v1267 = vmul.f32 %v803, %v1266
        %v1268 = vmul.f32 %v804, %v1266
        %v1269 = vadd.f32 %v1263, %v1267
        %v1270 = vadd.f32 %v1264, %v1268
        %s1271 = sld [smem:[#allocation13 + $0x206]]
        %v1272 = vstv %s1271
        %v1273 = vmul.f32 %v829, %v1272
        %v1274 = vmul.f32 %v830, %v1272
        %v1275 = vadd.f32 %v1269, %v1273
        %v1276 = vadd.f32 %v1270, %v1274
        %s1277 = sld [smem:[#allocation13 + $0x286]]
        %v1278 = vstv %s1277
        %v1279 = vmul.f32 %v855, %v1278
        %v1280 = vmul.f32 %v856, %v1278
        %v1281 = vadd.f32 %v1275, %v1279
        %v1282 = vadd.f32 %v1276, %v1280
        %s1283 = sld [smem:[#allocation13 + $0x306]]
        %v1284 = vstv %s1283
        %v1285 = vmul.f32 %v881, %v1284
        %v1286 = vmul.f32 %v882, %v1284
        %v1287 = vadd.f32 %v1281, %v1285
        %v1288 = vadd.f32 %v1282, %v1286
        %s1289 = sld [smem:[#allocation13 + $0x386]]
        %v1290 = vstv %s1289
        %v1291 = vmul.f32 %v907, %v1290
        %v1292 = vmul.f32 %v908, %v1290
        %v1293 = vadd.f32 %v1287, %v1291
        %v1294 = vadd.f32 %v1288, %v1292
        %vm1295 = vcmp.ge.f32.partialorder %v1293, 0.0
        %vm1296 = vcmp.ge.f32.partialorder %v1294, 0.0
        %v1297 = vmul.f32 %v1293, 0.2
        %v1298 = vmul.f32 %v1294, 0.2
        %v1299 = vsel %vm1295, %v1293, %v1297
        %v1300 = vsel %vm1296, %v1294, %v1298
        %s1301 = sld [smem:[#allocation13 + $0x7]]
        %v1302 = vstv %s1301
        %v1303 = vmul.f32 %v725, %v1302
        %v1304 = vmul.f32 %v726, %v1302
        %s1305 = sld [smem:[#allocation14 + $0x7]]
        %v1306 = vstv %s1305
        %v1307 = vadd.f32 %v1303, %v1306
        %v1308 = vadd.f32 %v1304, %v1306
        %s1309 = sld [smem:[#allocation13 + $0x87]]
        %v1310 = vstv %s1309
        %v1311 = vmul.f32 %v751, %v1310
        %v1312 = vmul.f32 %v752, %v1310
        %v1313 = vadd.f32 %v1307, %v1311
        %v1314 = vadd.f32 %v1308, %v1312
        %s1315 = sld [smem:[#allocation13 + $0x107]]
        %v1316 = vstv %s1315
        %v1317 = vmul.f32 %v777, %v1316
        %v1318 = vmul.f32 %v778, %v1316
        %v1319 = vadd.f32 %v1313, %v1317
        %v1320 = vadd.f32 %v1314, %v1318
        %s1321 = sld [smem:[#allocation13 + $0x187]]
        %v1322 = vstv %s1321
        %v1323 = vmul.f32 %v803, %v1322
        %v1324 = vmul.f32 %v804, %v1322
        %v1325 = vadd.f32 %v1319, %v1323
        %v1326 = vadd.f32 %v1320, %v1324
        %s1327 = sld [smem:[#allocation13 + $0x207]]
        %v1328 = vstv %s1327
        %v1329 = vmul.f32 %v829, %v1328
        %v1330 = vmul.f32 %v830, %v1328
        %v1331 = vadd.f32 %v1325, %v1329
        %v1332 = vadd.f32 %v1326, %v1330
        %s1333 = sld [smem:[#allocation13 + $0x287]]
        %v1334 = vstv %s1333
        %v1335 = vmul.f32 %v855, %v1334
        %v1336 = vmul.f32 %v856, %v1334
        %v1337 = vadd.f32 %v1331, %v1335
        %v1338 = vadd.f32 %v1332, %v1336
        %s1339 = sld [smem:[#allocation13 + $0x307]]
        %v1340 = vstv %s1339
        %v1341 = vmul.f32 %v881, %v1340
        %v1342 = vmul.f32 %v882, %v1340
        %v1343 = vadd.f32 %v1337, %v1341
        %v1344 = vadd.f32 %v1338, %v1342
        %s1345 = sld [smem:[#allocation13 + $0x387]]
        %v1346 = vstv %s1345
        %v1347 = vmul.f32 %v907, %v1346
        %v1348 = vmul.f32 %v908, %v1346
        %v1349 = vadd.f32 %v1343, %v1347
        %v1350 = vadd.f32 %v1344, %v1348
        %vm1351 = vcmp.ge.f32.partialorder %v1349, 0.0
        %vm1352 = vcmp.ge.f32.partialorder %v1350, 0.0
        %v1353 = vmul.f32 %v1349, 0.2
        %v1354 = vmul.f32 %v1350, 0.2
        %v1355 = vsel %vm1351, %v1349, %v1353
        %v1356 = vsel %vm1352, %v1350, %v1354
        %s1357 = sld [smem:[#allocation16]]
        %v1358 = vstv %s1357
        %v1359 = vmul.f32 %v963, %v1358
        %v1360 = vmul.f32 %v964, %v1358
        %s1361 = sld [smem:[#allocation2]]
        %v1362 = vstv %s1361
        %v1363 = vadd.f32 %v1359, %v1362
        %v1364 = vadd.f32 %v1360, %v1362
        %s1365 = sld [smem:[#allocation16 + $0x80]]
        %v1366 = vstv %s1365
        %v1367 = vmul.f32 %v1019, %v1366
        %v1368 = vmul.f32 %v1020, %v1366
        %v1369 = vadd.f32 %v1363, %v1367
        %v1370 = vadd.f32 %v1364, %v1368
        %s1371 = sld [smem:[#allocation16 + $0x100]]
        %v1372 = vstv %s1371
        %v1373 = vmul.f32 %v1075, %v1372
        %v1374 = vmul.f32 %v1076, %v1372
        %v1375 = vadd.f32 %v1369, %v1373
        %v1376 = vadd.f32 %v1370, %v1374
        %s1377 = sld [smem:[#allocation16 + $0x180]]
        %v1378 = vstv %s1377
        %v1379 = vmul.f32 %v1131, %v1378
        %v1380 = vmul.f32 %v1132, %v1378
        %v1381 = vadd.f32 %v1375, %v1379
        %v1382 = vadd.f32 %v1376, %v1380
        %s1383 = sld [smem:[#allocation16 + $0x200]]
        %v1384 = vstv %s1383
        %v1385 = vmul.f32 %v1187, %v1384
        %v1386 = vmul.f32 %v1188, %v1384
        %v1387 = vadd.f32 %v1381, %v1385
        %v1388 = vadd.f32 %v1382, %v1386
        %s1389 = sld [smem:[#allocation16 + $0x280]]
        %v1390 = vstv %s1389
        %v1391 = vmul.f32 %v1243, %v1390
        %v1392 = vmul.f32 %v1244, %v1390
        %v1393 = vadd.f32 %v1387, %v1391
        %v1394 = vadd.f32 %v1388, %v1392
        %s1395 = sld [smem:[#allocation16 + $0x300]]
        %v1396 = vstv %s1395
        %v1397 = vmul.f32 %v1299, %v1396
        %v1398 = vmul.f32 %v1300, %v1396
        %v1399 = vadd.f32 %v1393, %v1397
        %v1400 = vadd.f32 %v1394, %v1398
        %s1401 = sld [smem:[#allocation16 + $0x380]]
        %v1402 = vstv %s1401
        %v1403 = vmul.f32 %v1355, %v1402
        %v1404 = vmul.f32 %v1356, %v1402
        %v1405 = vadd.f32 %v1399, %v1403
        %v1406 = vadd.f32 %v1400, %v1404
        %v1407 = vmul.f32 %v599, %v702
        %v1408 = vmul.f32 %v602, %v702
        %v1409 = vadd.f32 %v1407, %v706
        %v1410 = vadd.f32 %v1408, %v706
        %v1411 = vmul.f32 %v600, %v710
        %v1412 = vmul.f32 %v603, %v710
        %v1413 = vadd.f32 %v1409, %v1411
        %v1414 = vadd.f32 %v1410, %v1412
        %v1415 = vmul.f32 %v601, %v716
        %v1416 = vmul.f32 %v604, %v716
        %v1417 = vadd.f32 %v1413, %v1415
        %v1418 = vadd.f32 %v1414, %v1416
        %vm1419 = vcmp.ge.f32.partialorder %v1417, 0.0
        %vm1420 = vcmp.ge.f32.partialorder %v1418, 0.0
        %v1421 = vmul.f32 %v1417, 0.2
        %v1422 = vmul.f32 %v1418, 0.2
        %v1423 = vsel %vm1419, %v1417, %v1421
        %v1424 = vsel %vm1420, %v1418, %v1422
        %v1425 = vmul.f32 %v599, %v728
        %v1426 = vmul.f32 %v602, %v728
        %v1427 = vadd.f32 %v1425, %v732
        %v1428 = vadd.f32 %v1426, %v732
        %v1429 = vmul.f32 %v600, %v736
        %v1430 = vmul.f32 %v603, %v736
        %v1431 = vadd.f32 %v1427, %v1429
        %v1432 = vadd.f32 %v1428, %v1430
        %v1433 = vmul.f32 %v601, %v742
        %v1434 = vmul.f32 %v604, %v742
        %v1435 = vadd.f32 %v1431, %v1433
        %v1436 = vadd.f32 %v1432, %v1434
        %vm1437 = vcmp.ge.f32.partialorder %v1435, 0.0
        %vm1438 = vcmp.ge.f32.partialorder %v1436, 0.0
        %v1439 = vmul.f32 %v1435, 0.2
        %v1440 = vmul.f32 %v1436, 0.2
        %v1441 = vsel %vm1437, %v1435, %v1439
        %v1442 = vsel %vm1438, %v1436, %v1440
        %v1443 = vmul.f32 %v599, %v754
        %v1444 = vmul.f32 %v602, %v754
        %v1445 = vadd.f32 %v1443, %v758
        %v1446 = vadd.f32 %v1444, %v758
        %v1447 = vmul.f32 %v600, %v762
        %v1448 = vmul.f32 %v603, %v762
        %v1449 = vadd.f32 %v1445, %v1447
        %v1450 = vadd.f32 %v1446, %v1448
        %v1451 = vmul.f32 %v601, %v768
        %v1452 = vmul.f32 %v604, %v768
        %v1453 = vadd.f32 %v1449, %v1451
        %v1454 = vadd.f32 %v1450, %v1452
        %vm1455 = vcmp.ge.f32.partialorder %v1453, 0.0
        %vm1456 = vcmp.ge.f32.partialorder %v1454, 0.0
        %v1457 = vmul.f32 %v1453, 0.2
        %v1458 = vmul.f32 %v1454, 0.2
        %v1459 = vsel %vm1455, %v1453, %v1457
        %v1460 = vsel %vm1456, %v1454, %v1458
        %v1461 = vmul.f32 %v599, %v780
        %v1462 = vmul.f32 %v602, %v780
        %v1463 = vadd.f32 %v1461, %v784
        %v1464 = vadd.f32 %v1462, %v784
        %v1465 = vmul.f32 %v600, %v788
        %v1466 = vmul.f32 %v603, %v788
        %v1467 = vadd.f32 %v1463, %v1465
        %v1468 = vadd.f32 %v1464, %v1466
        %v1469 = vmul.f32 %v601, %v794
        %v1470 = vmul.f32 %v604, %v794
        %v1471 = vadd.f32 %v1467, %v1469
        %v1472 = vadd.f32 %v1468, %v1470
        %vm1473 = vcmp.ge.f32.partialorder %v1471, 0.0
        %vm1474 = vcmp.ge.f32.partialorder %v1472, 0.0
        %v1475 = vmul.f32 %v1471, 0.2
        %v1476 = vmul.f32 %v1472, 0.2
        %v1477 = vsel %vm1473, %v1471, %v1475
        %v1478 = vsel %vm1474, %v1472, %v1476
        %v1479 = vmul.f32 %v599, %v806
        %v1480 = vmul.f32 %v602, %v806
        %v1481 = vadd.f32 %v1479, %v810
        %v1482 = vadd.f32 %v1480, %v810
        %v1483 = vmul.f32 %v600, %v814
        %v1484 = vmul.f32 %v603, %v814
        %v1485 = vadd.f32 %v1481, %v1483
        %v1486 = vadd.f32 %v1482, %v1484
        %v1487 = vmul.f32 %v601, %v820
        %v1488 = vmul.f32 %v604, %v820
        %v1489 = vadd.f32 %v1485, %v1487
        %v1490 = vadd.f32 %v1486, %v1488
        %vm1491 = vcmp.ge.f32.partialorder %v1489, 0.0
        %vm1492 = vcmp.ge.f32.partialorder %v1490, 0.0
        %v1493 = vmul.f32 %v1489, 0.2
        %v1494 = vmul.f32 %v1490, 0.2
        %v1495 = vsel %vm1491, %v1489, %v1493
        %v1496 = vsel %vm1492, %v1490, %v1494
        %v1497 = vmul.f32 %v599, %v832
        %v1498 = vmul.f32 %v602, %v832
        %v1499 = vadd.f32 %v1497, %v836
        %v1500 = vadd.f32 %v1498, %v836
        %v1501 = vmul.f32 %v600, %v840
        %v1502 = vmul.f32 %v603, %v840
        %v1503 = vadd.f32 %v1499, %v1501
        %v1504 = vadd.f32 %v1500, %v1502
        %v1505 = vmul.f32 %v601, %v846
        %v1506 = vmul.f32 %v604, %v846
        %v1507 = vadd.f32 %v1503, %v1505
        %v1508 = vadd.f32 %v1504, %v1506
        %vm1509 = vcmp.ge.f32.partialorder %v1507, 0.0
        %vm1510 = vcmp.ge.f32.partialorder %v1508, 0.0
        %v1511 = vmul.f32 %v1507, 0.2
        %v1512 = vmul.f32 %v1508, 0.2
        %v1513 = vsel %vm1509, %v1507, %v1511
        %v1514 = vsel %vm1510, %v1508, %v1512
        %v1515 = vmul.f32 %v599, %v858
        %v1516 = vmul.f32 %v602, %v858
        %v1517 = vadd.f32 %v1515, %v862
        %v1518 = vadd.f32 %v1516, %v862
        %v1519 = vmul.f32 %v600, %v866
        %v1520 = vmul.f32 %v603, %v866
        %v1521 = vadd.f32 %v1517, %v1519
        %v1522 = vadd.f32 %v1518, %v1520
        %v1523 = vmul.f32 %v601, %v872
        %v1524 = vmul.f32 %v604, %v872
        %v1525 = vadd.f32 %v1521, %v1523
        %v1526 = vadd.f32 %v1522, %v1524
        %vm1527 = vcmp.ge.f32.partialorder %v1525, 0.0
        %vm1528 = vcmp.ge.f32.partialorder %v1526, 0.0
        %v1529 = vmul.f32 %v1525, 0.2
        %v1530 = vmul.f32 %v1526, 0.2
        %v1531 = vsel %vm1527, %v1525, %v1529
        %v1532 = vsel %vm1528, %v1526, %v1530
        %v1533 = vmul.f32 %v599, %v884
        %v1534 = vmul.f32 %v602, %v884
        %v1535 = vadd.f32 %v1533, %v888
        %v1536 = vadd.f32 %v1534, %v888
        %v1537 = vmul.f32 %v600, %v892
        %v1538 = vmul.f32 %v603, %v892
        %v1539 = vadd.f32 %v1535, %v1537
        %v1540 = vadd.f32 %v1536, %v1538
        %v1541 = vmul.f32 %v601, %v898
        %v1542 = vmul.f32 %v604, %v898
        %v1543 = vadd.f32 %v1539, %v1541
        %v1544 = vadd.f32 %v1540, %v1542
        %vm1545 = vcmp.ge.f32.partialorder %v1543, 0.0
        %vm1546 = vcmp.ge.f32.partialorder %v1544, 0.0
        %v1547 = vmul.f32 %v1543, 0.2
        %v1548 = vmul.f32 %v1544, 0.2
        %v1549 = vsel %vm1545, %v1543, %v1547
        %v1550 = vsel %vm1546, %v1544, %v1548
        %v1551 = vmul.f32 %v1423, %v910
        %v1552 = vmul.f32 %v1424, %v910
        %v1553 = vadd.f32 %v1551, %v914
        %v1554 = vadd.f32 %v1552, %v914
        %v1555 = vmul.f32 %v1441, %v918
        %v1556 = vmul.f32 %v1442, %v918
        %v1557 = vadd.f32 %v1553, %v1555
        %v1558 = vadd.f32 %v1554, %v1556
        %v1559 = vmul.f32 %v1459, %v924
        %v1560 = vmul.f32 %v1460, %v924
        %v1561 = vadd.f32 %v1557, %v1559
        %v1562 = vadd.f32 %v1558, %v1560
        %v1563 = vmul.f32 %v1477, %v930
        %v1564 = vmul.f32 %v1478, %v930
        %v1565 = vadd.f32 %v1561, %v1563
        %v1566 = vadd.f32 %v1562, %v1564
        %v1567 = vmul.f32 %v1495, %v936
        %v1568 = vmul.f32 %v1496, %v936
        %v1569 = vadd.f32 %v1565, %v1567
        %v1570 = vadd.f32 %v1566, %v1568
        %v1571 = vmul.f32 %v1513, %v942
        %v1572 = vmul.f32 %v1514, %v942
        %v1573 = vadd.f32 %v1569, %v1571
        %v1574 = vadd.f32 %v1570, %v1572
        %v1575 = vmul.f32 %v1531, %v948
        %v1576 = vmul.f32 %v1532, %v948
        %v1577 = vadd.f32 %v1573, %v1575
        %v1578 = vadd.f32 %v1574, %v1576
        %v1579 = vmul.f32 %v1549, %v954
        %v1580 = vmul.f32 %v1550, %v954
        %v1581 = vadd.f32 %v1577, %v1579
        %v1582 = vadd.f32 %v1578, %v1580
        %vm1583 = vcmp.ge.f32.partialorder %v1581, 0.0
        %vm1584 = vcmp.ge.f32.partialorder %v1582, 0.0
        %v1585 = vmul.f32 %v1581, 0.2
        %v1586 = vmul.f32 %v1582, 0.2
        %v1587 = vsel %vm1583, %v1581, %v1585
        %v1588 = vsel %vm1584, %v1582, %v1586
        %v1589 = vmul.f32 %v1423, %v966
        %v1590 = vmul.f32 %v1424, %v966
        %v1591 = vadd.f32 %v1589, %v970
        %v1592 = vadd.f32 %v1590, %v970
        %v1593 = vmul.f32 %v1441, %v974
        %v1594 = vmul.f32 %v1442, %v974
        %v1595 = vadd.f32 %v1591, %v1593
        %v1596 = vadd.f32 %v1592, %v1594
        %v1597 = vmul.f32 %v1459, %v980
        %v1598 = vmul.f32 %v1460, %v980
        %v1599 = vadd.f32 %v1595, %v1597
        %v1600 = vadd.f32 %v1596, %v1598
        %v1601 = vmul.f32 %v1477, %v986
        %v1602 = vmul.f32 %v1478, %v986
        %v1603 = vadd.f32 %v1599, %v1601
        %v1604 = vadd.f32 %v1600, %v1602
        %v1605 = vmul.f32 %v1495, %v992
        %v1606 = vmul.f32 %v1496, %v992
        %v1607 = vadd.f32 %v1603, %v1605
        %v1608 = vadd.f32 %v1604, %v1606
        %v1609 = vmul.f32 %v1513, %v998
        %v1610 = vmul.f32 %v1514, %v998
        %v1611 = vadd.f32 %v1607, %v1609
        %v1612 = vadd.f32 %v1608, %v1610
        %v1613 = vmul.f32 %v1531, %v1004
        %v1614 = vmul.f32 %v1532, %v1004
        %v1615 = vadd.f32 %v1611, %v1613
        %v1616 = vadd.f32 %v1612, %v1614
        %v1617 = vmul.f32 %v1549, %v1010
        %v1618 = vmul.f32 %v1550, %v1010
        %v1619 = vadd.f32 %v1615, %v1617
        %v1620 = vadd.f32 %v1616, %v1618
        %vm1621 = vcmp.ge.f32.partialorder %v1619, 0.0
        %vm1622 = vcmp.ge.f32.partialorder %v1620, 0.0
        %v1623 = vmul.f32 %v1619, 0.2
        %v1624 = vmul.f32 %v1620, 0.2
        %v1625 = vsel %vm1621, %v1619, %v1623
        %v1626 = vsel %vm1622, %v1620, %v1624
        %v1627 = vmul.f32 %v1423, %v1022
        %v1628 = vmul.f32 %v1424, %v1022
        %v1629 = vadd.f32 %v1627, %v1026
        %v1630 = vadd.f32 %v1628, %v1026
        %v1631 = vmul.f32 %v1441, %v1030
        %v1632 = vmul.f32 %v1442, %v1030
        %v1633 = vadd.f32 %v1629, %v1631
        %v1634 = vadd.f32 %v1630, %v1632
        %v1635 = vmul.f32 %v1459, %v1036
        %v1636 = vmul.f32 %v1460, %v1036
        %v1637 = vadd.f32 %v1633, %v1635
        %v1638 = vadd.f32 %v1634, %v1636
        %v1639 = vmul.f32 %v1477, %v1042
        %v1640 = vmul.f32 %v1478, %v1042
        %v1641 = vadd.f32 %v1637, %v1639
        %v1642 = vadd.f32 %v1638, %v1640
        %v1643 = vmul.f32 %v1495, %v1048
        %v1644 = vmul.f32 %v1496, %v1048
        %v1645 = vadd.f32 %v1641, %v1643
        %v1646 = vadd.f32 %v1642, %v1644
        %v1647 = vmul.f32 %v1513, %v1054
        %v1648 = vmul.f32 %v1514, %v1054
        %v1649 = vadd.f32 %v1645, %v1647
        %v1650 = vadd.f32 %v1646, %v1648
        %v1651 = vmul.f32 %v1531, %v1060
        %v1652 = vmul.f32 %v1532, %v1060
        %v1653 = vadd.f32 %v1649, %v1651
        %v1654 = vadd.f32 %v1650, %v1652
        %v1655 = vmul.f32 %v1549, %v1066
        %v1656 = vmul.f32 %v1550, %v1066
        %v1657 = vadd.f32 %v1653, %v1655
        %v1658 = vadd.f32 %v1654, %v1656
        %vm1659 = vcmp.ge.f32.partialorder %v1657, 0.0
        %vm1660 = vcmp.ge.f32.partialorder %v1658, 0.0
        %v1661 = vmul.f32 %v1657, 0.2
        %v1662 = vmul.f32 %v1658, 0.2
        %v1663 = vsel %vm1659, %v1657, %v1661
        %v1664 = vsel %vm1660, %v1658, %v1662
        %v1665 = vmul.f32 %v1423, %v1078
        %v1666 = vmul.f32 %v1424, %v1078
        %v1667 = vadd.f32 %v1665, %v1082
        %v1668 = vadd.f32 %v1666, %v1082
        %v1669 = vmul.f32 %v1441, %v1086
        %v1670 = vmul.f32 %v1442, %v1086
        %v1671 = vadd.f32 %v1667, %v1669
        %v1672 = vadd.f32 %v1668, %v1670
        %v1673 = vmul.f32 %v1459, %v1092
        %v1674 = vmul.f32 %v1460, %v1092
        %v1675 = vadd.f32 %v1671, %v1673
        %v1676 = vadd.f32 %v1672, %v1674
        %v1677 = vmul.f32 %v1477, %v1098
        %v1678 = vmul.f32 %v1478, %v1098
        %v1679 = vadd.f32 %v1675, %v1677
        %v1680 = vadd.f32 %v1676, %v1678
        %v1681 = vmul.f32 %v1495, %v1104
        %v1682 = vmul.f32 %v1496, %v1104
        %v1683 = vadd.f32 %v1679, %v1681
        %v1684 = vadd.f32 %v1680, %v1682
        %v1685 = vmul.f32 %v1513, %v1110
        %v1686 = vmul.f32 %v1514, %v1110
        %v1687 = vadd.f32 %v1683, %v1685
        %v1688 = vadd.f32 %v1684, %v1686
        %v1689 = vmul.f32 %v1531, %v1116
        %v1690 = vmul.f32 %v1532, %v1116
        %v1691 = vadd.f32 %v1687, %v1689
        %v1692 = vadd.f32 %v1688, %v1690
        %v1693 = vmul.f32 %v1549, %v1122
        %v1694 = vmul.f32 %v1550, %v1122
        %v1695 = vadd.f32 %v1691, %v1693
        %v1696 = vadd.f32 %v1692, %v1694
        %vm1697 = vcmp.ge.f32.partialorder %v1695, 0.0
        %vm1698 = vcmp.ge.f32.partialorder %v1696, 0.0
        %v1699 = vmul.f32 %v1695, 0.2
        %v1700 = vmul.f32 %v1696, 0.2
        %v1701 = vsel %vm1697, %v1695, %v1699
        %v1702 = vsel %vm1698, %v1696, %v1700
        %v1703 = vmul.f32 %v1423, %v1134
        %v1704 = vmul.f32 %v1424, %v1134
        %v1705 = vadd.f32 %v1703, %v1138
        %v1706 = vadd.f32 %v1704, %v1138
        %v1707 = vmul.f32 %v1441, %v1142
        %v1708 = vmul.f32 %v1442, %v1142
        %v1709 = vadd.f32 %v1705, %v1707
        %v1710 = vadd.f32 %v1706, %v1708
        %v1711 = vmul.f32 %v1459, %v1148
        %v1712 = vmul.f32 %v1460, %v1148
        %v1713 = vadd.f32 %v1709, %v1711
        %v1714 = vadd.f32 %v1710, %v1712
        %v1715 = vmul.f32 %v1477, %v1154
        %v1716 = vmul.f32 %v1478, %v1154
        %v1717 = vadd.f32 %v1713, %v1715
        %v1718 = vadd.f32 %v1714, %v1716
        %v1719 = vmul.f32 %v1495, %v1160
        %v1720 = vmul.f32 %v1496, %v1160
        %v1721 = vadd.f32 %v1717, %v1719
        %v1722 = vadd.f32 %v1718, %v1720
        %v1723 = vmul.f32 %v1513, %v1166
        %v1724 = vmul.f32 %v1514, %v1166
        %v1725 = vadd.f32 %v1721, %v1723
        %v1726 = vadd.f32 %v1722, %v1724
        %v1727 = vmul.f32 %v1531, %v1172
        %v1728 = vmul.f32 %v1532, %v1172
        %v1729 = vadd.f32 %v1725, %v1727
        %v1730 = vadd.f32 %v1726, %v1728
        %v1731 = vmul.f32 %v1549, %v1178
        %v1732 = vmul.f32 %v1550, %v1178
        %v1733 = vadd.f32 %v1729, %v1731
        %v1734 = vadd.f32 %v1730, %v1732
        %vm1735 = vcmp.ge.f32.partialorder %v1733, 0.0
        %vm1736 = vcmp.ge.f32.partialorder %v1734, 0.0
        %v1737 = vmul.f32 %v1733, 0.2
        %v1738 = vmul.f32 %v1734, 0.2
        %v1739 = vsel %vm1735, %v1733, %v1737
        %v1740 = vsel %vm1736, %v1734, %v1738
        %v1741 = vmul.f32 %v1423, %v1190
        %v1742 = vmul.f32 %v1424, %v1190
        %v1743 = vadd.f32 %v1741, %v1194
        %v1744 = vadd.f32 %v1742, %v1194
        %v1745 = vmul.f32 %v1441, %v1198
        %v1746 = vmul.f32 %v1442, %v1198
        %v1747 = vadd.f32 %v1743, %v1745
        %v1748 = vadd.f32 %v1744, %v1746
        %v1749 = vmul.f32 %v1459, %v1204
        %v1750 = vmul.f32 %v1460, %v1204
        %v1751 = vadd.f32 %v1747, %v1749
        %v1752 = vadd.f32 %v1748, %v1750
        %v1753 = vmul.f32 %v1477, %v1210
        %v1754 = vmul.f32 %v1478, %v1210
        %v1755 = vadd.f32 %v1751, %v1753
        %v1756 = vadd.f32 %v1752, %v1754
        %v1757 = vmul.f32 %v1495, %v1216
        %v1758 = vmul.f32 %v1496, %v1216
        %v1759 = vadd.f32 %v1755, %v1757
        %v1760 = vadd.f32 %v1756, %v1758
        %v1761 = vmul.f32 %v1513, %v1222
        %v1762 = vmul.f32 %v1514, %v1222
        %v1763 = vadd.f32 %v1759, %v1761
        %v1764 = vadd.f32 %v1760, %v1762
        %v1765 = vmul.f32 %v1531, %v1228
        %v1766 = vmul.f32 %v1532, %v1228
        %v1767 = vadd.f32 %v1763, %v1765
        %v1768 = vadd.f32 %v1764, %v1766
        %v1769 = vmul.f32 %v1549, %v1234
        %v1770 = vmul.f32 %v1550, %v1234
        %v1771 = vadd.f32 %v1767, %v1769
        %v1772 = vadd.f32 %v1768, %v1770
        %vm1773 = vcmp.ge.f32.partialorder %v1771, 0.0
        %vm1774 = vcmp.ge.f32.partialorder %v1772, 0.0
        %v1775 = vmul.f32 %v1771, 0.2
        %v1776 = vmul.f32 %v1772, 0.2
        %v1777 = vsel %vm1773, %v1771, %v1775
        %v1778 = vsel %vm1774, %v1772, %v1776
        %v1779 = vmul.f32 %v1423, %v1246
        %v1780 = vmul.f32 %v1424, %v1246
        %v1781 = vadd.f32 %v1779, %v1250
        %v1782 = vadd.f32 %v1780, %v1250
        %v1783 = vmul.f32 %v1441, %v1254
        %v1784 = vmul.f32 %v1442, %v1254
        %v1785 = vadd.f32 %v1781, %v1783
        %v1786 = vadd.f32 %v1782, %v1784
        %v1787 = vmul.f32 %v1459, %v1260
        %v1788 = vmul.f32 %v1460, %v1260
        %v1789 = vadd.f32 %v1785, %v1787
        %v1790 = vadd.f32 %v1786, %v1788
        %v1791 = vmul.f32 %v1477, %v1266
        %v1792 = vmul.f32 %v1478, %v1266
        %v1793 = vadd.f32 %v1789, %v1791
        %v1794 = vadd.f32 %v1790, %v1792
        %v1795 = vmul.f32 %v1495, %v1272
        %v1796 = vmul.f32 %v1496, %v1272
        %v1797 = vadd.f32 %v1793, %v1795
        %v1798 = vadd.f32 %v1794, %v1796
        %v1799 = vmul.f32 %v1513, %v1278
        %v1800 = vmul.f32 %v1514, %v1278
        %v1801 = vadd.f32 %v1797, %v1799
        %v1802 = vadd.f32 %v1798, %v1800
        %v1803 = vmul.f32 %v1531, %v1284
        %v1804 = vmul.f32 %v1532, %v1284
        %v1805 = vadd.f32 %v1801, %v1803
        %v1806 = vadd.f32 %v1802, %v1804
        %v1807 = vmul.f32 %v1549, %v1290
        %v1808 = vmul.f32 %v1550, %v1290
        %v1809 = vadd.f32 %v1805, %v1807
        %v1810 = vadd.f32 %v1806, %v1808
        %vm1811 = vcmp.ge.f32.partialorder %v1809, 0.0
        %vm1812 = vcmp.ge.f32.partialorder %v1810, 0.0
        %v1813 = vmul.f32 %v1809, 0.2
        %v1814 = vmul.f32 %v1810, 0.2
        %v1815 = vsel %vm1811, %v1809, %v1813
        %v1816 = vsel %vm1812, %v1810, %v1814
        %v1817 = vmul.f32 %v1423, %v1302
        %v1818 = vmul.f32 %v1424, %v1302
        %v1819 = vadd.f32 %v1817, %v1306
        %v1820 = vadd.f32 %v1818, %v1306
        %v1821 = vmul.f32 %v1441, %v1310
        %v1822 = vmul.f32 %v1442, %v1310
        %v1823 = vadd.f32 %v1819, %v1821
        %v1824 = vadd.f32 %v1820, %v1822
        %v1825 = vmul.f32 %v1459, %v1316
        %v1826 = vmul.f32 %v1460, %v1316
        %v1827 = vadd.f32 %v1823, %v1825
        %v1828 = vadd.f32 %v1824, %v1826
        %v1829 = vmul.f32 %v1477, %v1322
        %v1830 = vmul.f32 %v1478, %v1322
        %v1831 = vadd.f32 %v1827, %v1829
        %v1832 = vadd.f32 %v1828, %v1830
        %v1833 = vmul.f32 %v1495, %v1328
        %v1834 = vmul.f32 %v1496, %v1328
        %v1835 = vadd.f32 %v1831, %v1833
        %v1836 = vadd.f32 %v1832, %v1834
        %v1837 = vmul.f32 %v1513, %v1334
        %v1838 = vmul.f32 %v1514, %v1334
        %v1839 = vadd.f32 %v1835, %v1837
        %v1840 = vadd.f32 %v1836, %v1838
        %v1841 = vmul.f32 %v1531, %v1340
        %v1842 = vmul.f32 %v1532, %v1340
        %v1843 = vadd.f32 %v1839, %v1841
        %v1844 = vadd.f32 %v1840, %v1842
        %v1845 = vmul.f32 %v1549, %v1346
        %v1846 = vmul.f32 %v1550, %v1346
        %v1847 = vadd.f32 %v1843, %v1845
        %v1848 = vadd.f32 %v1844, %v1846
        %vm1849 = vcmp.ge.f32.partialorder %v1847, 0.0
        %vm1850 = vcmp.ge.f32.partialorder %v1848, 0.0
        %v1851 = vmul.f32 %v1847, 0.2
        %v1852 = vmul.f32 %v1848, 0.2
        %v1853 = vsel %vm1849, %v1847, %v1851
        %v1854 = vsel %vm1850, %v1848, %v1852
        %v1855 = vmul.f32 %v1587, %v1358
        %v1856 = vmul.f32 %v1588, %v1358
        %v1857 = vadd.f32 %v1855, %v1362
        %v1858 = vadd.f32 %v1856, %v1362
        %v1859 = vmul.f32 %v1625, %v1366
        %v1860 = vmul.f32 %v1626, %v1366
        %v1861 = vadd.f32 %v1857, %v1859
        %v1862 = vadd.f32 %v1858, %v1860
        %v1863 = vmul.f32 %v1663, %v1372
        %v1864 = vmul.f32 %v1664, %v1372
        %v1865 = vadd.f32 %v1861, %v1863
        %v1866 = vadd.f32 %v1862, %v1864
        %v1867 = vmul.f32 %v1701, %v1378
        %v1868 = vmul.f32 %v1702, %v1378
        %v1869 = vadd.f32 %v1865, %v1867
        %v1870 = vadd.f32 %v1866, %v1868
        %v1871 = vmul.f32 %v1739, %v1384
        %v1872 = vmul.f32 %v1740, %v1384
        %v1873 = vadd.f32 %v1869, %v1871
        %v1874 = vadd.f32 %v1870, %v1872
        %v1875 = vmul.f32 %v1777, %v1390
        %v1876 = vmul.f32 %v1778, %v1390
        %v1877 = vadd.f32 %v1873, %v1875
        %v1878 = vadd.f32 %v1874, %v1876
        %v1879 = vmul.f32 %v1815, %v1396
        %v1880 = vmul.f32 %v1816, %v1396
        %v1881 = vadd.f32 %v1877, %v1879
        %v1882 = vadd.f32 %v1878, %v1880
        %v1883 = vmul.f32 %v1853, %v1402
        %v1884 = vmul.f32 %v1854, %v1402
        %v1885 = vadd.f32 %v1881, %v1883
        %v1886 = vadd.f32 %v1882, %v1884
        %v1887 = vsub.f32 %v1405, 1.0
        %v1888 = vsub.f32 %v1406, 1.0
        %v1889 = vmul.f32 %v1887, %v1887
        %v1890 = vmul.f32 %v1888, %v1888
        %v1891 = vadd.f32 %v1889, %v1890
        %v1892 = vld [vmem:[%s576] sm:$0xff]
        %v1893 = vadd.f32 %v1892, %v1891
        %1894 = vst [vmem:[%s576] sm:$0xff] %v1893
        %v1895 = vmul.f32 %v1405, %v1405
        %v1896 = vmul.f32 %v1406, %v1406
        %v1897 = vadd.f32 %v1895, %v1896
        %s1898 = scalar_lea.vmem %s576, 8 [#allocation21]
        %v1899 = vld [vmem:[%s1898] sm:$0xff]
        %v1900 = vadd.f32 %v1899, %v1897
        %1901 = vst [vmem:[%s1898] sm:$0xff] %v1900
        %v1902 = vsub.f32 %v1885, 1.0
        %v1903 = vsub.f32 %v1886, 1.0
        %v1904 = vmul.f32 %v1902, %v1902
        %v1905 = vmul.f32 %v1903, %v1903
        %v1906 = vadd.f32 %v1904, %v1905
        %s1907 = scalar_lea.vmem %s576, 16 [#allocation21]
        %v1908 = vld [vmem:[%s1907] sm:$0xff]
        %v1909 = vadd.f32 %v1908, %v1906
        %1910 = vst [vmem:[%s1907] sm:$0xff] %v1909
        %v1911 = vsub.f32 %v725, %v1423
        %v1912 = vsub.f32 %v726, %v1424
        %v1913 = vand.u32 2147483647, %v1911
        %v1914 = vand.u32 2147483647, %v1912
        %v1915 = vadd.f32 %v1913, 0.0
        %v1916 = vadd.f32 %v1914, 0.0
        %v1917 = vsub.f32 %v751, %v1441
        %v1918 = vsub.f32 %v752, %v1442
        %v1919 = vand.u32 2147483647, %v1917
        %v1920 = vand.u32 2147483647, %v1918
        %v1921 = vadd.f32 %v1915, %v1919
        %v1922 = vadd.f32 %v1916, %v1920
        %v1923 = vsub.f32 %v777, %v1459
        %v1924 = vsub.f32 %v778, %v1460
        %v1925 = vand.u32 2147483647, %v1923
        %v1926 = vand.u32 2147483647, %v1924
        %v1927 = vadd.f32 %v1921, %v1925
        %v1928 = vadd.f32 %v1922, %v1926
        %v1929 = vsub.f32 %v803, %v1477
        %v1930 = vsub.f32 %v804, %v1478
        %v1931 = vand.u32 2147483647, %v1929
        %v1932 = vand.u32 2147483647, %v1930
        %v1933 = vadd.f32 %v1927, %v1931
        %v1934 = vadd.f32 %v1928, %v1932
        %v1935 = vsub.f32 %v829, %v1495
        %v1936 = vsub.f32 %v830, %v1496
        %v1937 = vand.u32 2147483647, %v1935
        %v1938 = vand.u32 2147483647, %v1936
        %v1939 = vadd.f32 %v1933, %v1937
        %v1940 = vadd.f32 %v1934, %v1938
        %v1941 = vsub.f32 %v855, %v1513
        %v1942 = vsub.f32 %v856, %v1514
        %v1943 = vand.u32 2147483647, %v1941
        %v1944 = vand.u32 2147483647, %v1942
        %v1945 = vadd.f32 %v1939, %v1943
        %v1946 = vadd.f32 %v1940, %v1944
        %v1947 = vsub.f32 %v881, %v1531
        %v1948 = vsub.f32 %v882, %v1532
        %v1949 = vand.u32 2147483647, %v1947
        %v1950 = vand.u32 2147483647, %v1948
        %v1951 = vadd.f32 %v1945, %v1949
        %v1952 = vadd.f32 %v1946, %v1950
        %v1953 = vsub.f32 %v907, %v1549
        %v1954 = vsub.f32 %v908, %v1550
        %v1955 = vand.u32 2147483647, %v1953
        %v1956 = vand.u32 2147483647, %v1954
        %v1957 = vadd.f32 %v1951, %v1955
        %v1958 = vadd.f32 %v1952, %v1956
        %v1959 = vadd.f32 %v1957, %v1958
        %s1960 = scalar_lea.vmem %s576, 24 [#allocation21]
        %v1961 = vld [vmem:[%s1960] sm:$0xff]
        %v1962 = vadd.f32 %v1961, %v1959
        %1963 = vst [vmem:[%s1960] sm:$0xff] %v1962
        %v1964 = vsub.f32 %v963, %v1587
        %v1965 = vsub.f32 %v964, %v1588
        %v1966 = vand.u32 2147483647, %v1964
        %v1967 = vand.u32 2147483647, %v1965
        %v1968 = vadd.f32 %v1966, 0.0
        %v1969 = vadd.f32 %v1967, 0.0
        %v1970 = vsub.f32 %v1019, %v1625
        %v1971 = vsub.f32 %v1020, %v1626
        %v1972 = vand.u32 2147483647, %v1970
        %v1973 = vand.u32 2147483647, %v1971
        %v1974 = vadd.f32 %v1968, %v1972
        %v1975 = vadd.f32 %v1969, %v1973
        %v1976 = vsub.f32 %v1075, %v1663
        %v1977 = vsub.f32 %v1076, %v1664
        %v1978 = vand.u32 2147483647, %v1976
        %v1979 = vand.u32 2147483647, %v1977
        %v1980 = vadd.f32 %v1974, %v1978
        %v1981 = vadd.f32 %v1975, %v1979
        %v1982 = vsub.f32 %v1131, %v1701
        %v1983 = vsub.f32 %v1132, %v1702
        %v1984 = vand.u32 2147483647, %v1982
        %v1985 = vand.u32 2147483647, %v1983
        %v1986 = vadd.f32 %v1980, %v1984
        %v1987 = vadd.f32 %v1981, %v1985
        %v1988 = vsub.f32 %v1187, %v1739
        %v1989 = vsub.f32 %v1188, %v1740
        %v1990 = vand.u32 2147483647, %v1988
        %v1991 = vand.u32 2147483647, %v1989
        %v1992 = vadd.f32 %v1986, %v1990
        %v1993 = vadd.f32 %v1987, %v1991
        %v1994 = vsub.f32 %v1243, %v1777
        %v1995 = vsub.f32 %v1244, %v1778
        %v1996 = vand.u32 2147483647, %v1994
        %v1997 = vand.u32 2147483647, %v1995
        %v1998 = vadd.f32 %v1992, %v1996
        %v1999 = vadd.f32 %v1993, %v1997
        %v2000 = vsub.f32 %v1299, %v1815
        %v2001 = vsub.f32 %v1300, %v1816
        %v2002 = vand.u32 2147483647, %v2000
        %v2003 = vand.u32 2147483647, %v2001
        %v2004 = vadd.f32 %v1998, %v2002
        %v2005 = vadd.f32 %v1999, %v2003
        %v2006 = vsub.f32 %v1355, %v1853
        %v2007 = vsub.f32 %v1356, %v1854
        %v2008 = vand.u32 2147483647, %v2006
        %v2009 = vand.u32 2147483647, %v2007
        %v2010 = vadd.f32 %v2004, %v2008
        %v2011 = vadd.f32 %v2005, %v2009
        %v2012 = vadd.f32 %v2010, %v2011
        %s2013 = scalar_lea.vmem %s576, 32 [#allocation21]
        %v2014 = vld [vmem:[%s2013] sm:$0xff]
        %v2015 = vadd.f32 %v2014, %v2012
        %2016 = vst [vmem:[%s2013] sm:$0xff] %v2015
        %v2017 = vsub.f32 %v625, %v599
        %v2018 = vsub.f32 %v626, %v602
        %v2019 = vand.u32 2147483647, %v2017
        %v2020 = vand.u32 2147483647, %v2018
        %v2021 = vadd.f32 %v2019, 0.0
        %v2022 = vadd.f32 %v2020, 0.0
        %v2023 = vsub.f32 %v647, %v600
        %v2024 = vsub.f32 %v648, %v603
        %v2025 = vand.u32 2147483647, %v2023
        %v2026 = vand.u32 2147483647, %v2024
        %v2027 = vadd.f32 %v2021, %v2025
        %v2028 = vadd.f32 %v2022, %v2026
        %v2029 = vsub.f32 %v669, %v601
        %v2030 = vsub.f32 %v670, %v604
        %v2031 = vand.u32 2147483647, %v2029
        %v2032 = vand.u32 2147483647, %v2030
        %v2033 = vadd.f32 %v2027, %v2031
        %v2034 = vadd.f32 %v2028, %v2032
        %v2035 = vadd.f32 %v2033, %v2034
        %s2036 = scalar_lea.vmem %s576, 40 [#allocation21]
        %v2037 = vld [vmem:[%s2036] sm:$0xff]
        %v2038 = vadd.f32 %v2037, %v2035
        %2039 = vst [vmem:[%s2036] sm:$0xff] %v2038
        %s2040 = sand.u32 %s293, 1
        %s2041 = scalar_lea.sflag [#allocation5], %s2040
        %s2042 = sand.u32 %s293, 1
        %s2043 = smul.addr %s2042, 48
        %s2044 = scalar_lea.vmem [#allocation20], %s2043
        %s2045 = sand.u32 %s319, 1
        %s2046 = scalar_lea.sflag [#allocation22], %s2045
        %s2047 = sand.u32 %s319, 1
        %s2048 = smul.addr %s2047, 48
        %s2049 = scalar_lea.vmem [#allocation21], %s2048
        // Predicated region
        $region101: #{tpu_custom_call.1} parent=59 // pred_check
          %p2050 = pneg %p303
        $region102: #{tpu_custom_call.1} parent=59 // pred_check_branch
          %2052 = sbr.rel (%p2050) target = $region104
        $region103: #{tpu_custom_call.1} parent=59 // pred_region
          %s2053 = smul.u32 %s45, 2
          %s2054 = sadd.s32 %s2053, %s46
          %2056 = vsyncadd %s2041, 0
          %s2057 = smul.addr %s2054, 8
          %s2058 = scalar_lea.hbm %s10, %s2057
          %s2059 = sshll.u32 %s2044, 4
          %s2060 = int_to_ptr.vmem [resolvable:$true] %s2059
          %s2061 = sshll.u32 %s2058, 4
          %s2062 = int_to_ptr.hbm [resolvable:$true] %s2061
          %2067 = dma.vmem_to_hbm [thread:$0]  %s2060, 768, %s2062, %s2041, 128, 512, 8
        $region104: #{tpu_custom_call.1} parent=59 // pred_fallthru
          _
        // Predicated region
        $region105: #{tpu_custom_call.1} parent=59 // pred_check
          %p2068 = pneg %p329
        $region106: #{tpu_custom_call.1} parent=59 // pred_check_branch
          %2070 = sbr.rel (%p2068) target = $region108
        $region107: #{tpu_custom_call.1} parent=59 // pred_region
          %2072 = vsyncadd %s2046, 0
          %s2073 = smul.addr %s45, 6
          %s2074 = smul.addr %s2073, 8
          %s2075 = scalar_lea.hbm %s11, %s2074
          %s2076 = sshll.u32 %s2049, 4
          %s2077 = int_to_ptr.vmem [resolvable:$true] %s2076
          %s2078 = sshll.u32 %s2075, 4
          %s2079 = int_to_ptr.hbm [resolvable:$true] %s2078
          %2084 = dma.vmem_to_hbm [thread:$0]  %s2077, 768, %s2079, %s2046, 128, 128, 8
        $region108: #{tpu_custom_call.1} parent=59 // pred_fallthru
          _
      $region60: #{tpu_custom_call.1} parent=5 // pred_fallthru
        _
      %p2085 = scmp.le.s32.totalorder 2, %s36
      // Predicated region
      $region109: #{tpu_custom_call.1} parent=5 // pred_check
        %p2086 = pneg %p2085
      $region110: #{tpu_custom_call.1} parent=5 // pred_check_branch
        %2088 = sbr.rel (%p2086) target = $region112
      $region111: #{tpu_custom_call.1} parent=5 // pred_region
        %s2089 = ssub.s32 %s36, 2
        // Predicated region
        $region113: #{tpu_custom_call.1} parent=111 // pred_check
          %p2090 = pneg %p309
        $region114: #{tpu_custom_call.1} parent=111 // pred_check_branch
          %2092 = sbr.rel (%p2090) target = $region116
        $region115: #{tpu_custom_call.1} parent=111 // pred_region
          %s2093 = sand.u32 %s294, 1
          %s2094 = scalar_lea.sflag [#allocation5], %s2093
          %s2095 = sand.u32 %s294, 1
          %s2096 = smul.addr %s2095, 48
          %s2097 = scalar_lea.vmem [#allocation20], %s2096
          %2099 = dma.done %s2094, 768
        $region116: #{tpu_custom_call.1} parent=111 // pred_fallthru
          _
        // Predicated region
        $region117: #{tpu_custom_call.1} parent=111 // pred_check
          %p2100 = pneg %p335
        $region118: #{tpu_custom_call.1} parent=111 // pred_check_branch
          %2102 = sbr.rel (%p2100) target = $region120
        $region119: #{tpu_custom_call.1} parent=111 // pred_region
          %s2103 = sand.u32 %s320, 1
          %s2104 = scalar_lea.sflag [#allocation22], %s2103
          %s2105 = sand.u32 %s320, 1
          %s2106 = smul.addr %s2105, 48
          %s2107 = scalar_lea.vmem [#allocation21], %s2106
          %2109 = dma.done %s2104, 768
        $region120: #{tpu_custom_call.1} parent=111 // pred_fallthru
          _
      $region112: #{tpu_custom_call.1} parent=5 // pred_fallthru
        _
    $region6: #{tpu_custom_call.1} parent=1 // loop_footer
      %s40 = sadd.s32 1, %s36
    $region7: #{tpu_custom_call.1} parent=1 // loop_footer_branch
      %35 = sbr.rel target = $region3
    $region8: #{tpu_custom_call.1} parent=1 // loop_exit
      _
    %2110 = vsyncpa [#allocation4], 1
    %s2111 = scalar_lea.sflag [#allocation4], 1
    %2112 = vsyncpa %s2111, 1
    %2113 = vsyncpa [#allocation19], 1
    %s2114 = scalar_lea.sflag [#allocation19], 1
    %2115 = vsyncpa %s2114, 1
    %2116 = vsyncpa [#allocation5], 1
    %s2117 = scalar_lea.sflag [#allocation5], 1
    %2118 = vsyncpa %s2117, 1
    %2119 = vsyncpa [#allocation22], 1
    %s2120 = scalar_lea.sflag [#allocation22], 1
    %2121 = vsyncpa %s2120, 1
    %2122 = vsyncpa [#allocation6], 1
    %s2123 = scalar_lea.sflag [#allocation6], 1
    %2124 = vsyncpa %s2123, 1
    %2125 = vsyncpa [#allocation10], 1
    %2126 = vsyncpa [#allocation7], 1
    %s2127 = scalar_lea.sflag [#allocation7], 1
    %2128 = vsyncpa %s2127, 1
    %2129 = vsyncpa [#allocation12], 1
    %2130 = vsyncpa [#allocation15], 1

</llo_original>
